<compile_context>
chip_gen: v7x
topology: tpu7x:2x2x1
jax: 0.10.0
libtpu: 0.0.40
codegen_flags: <defaults>
</compile_context>

<pallas_src>
import jax
import jax.numpy as jnp
from jax.experimental import pallas as pl
from jax.experimental.pallas import tpu as pltpu


def _maxplus(acc, t):
    """out[i, j] = max_k ( acc[i, k] + t[k, j] )  — tropical matmul, no [N,N,N] temp."""
    K = t.shape[0]
    out = acc[:, 0:1] + t[0:1, :]
    if K <= 64:
        # static unroll: pure VALU adds / maxes on [N, N] tiles
        for k in range(1, K):
            out = jnp.maximum(out, acc[:, k:k + 1] + t[k:k + 1, :])
    else:
        def body(k, o):
            a_k = jax.lax.dynamic_slice_in_dim(acc, k, 1, axis=1)
            t_k = jax.lax.dynamic_slice_in_dim(t, k, 1, axis=0)
            return jnp.maximum(o, a_k + t_k)
        out = jax.lax.fori_loop(1, K, body, out)
    return out


def _path_scorer_kernel(chains_ref, t_ref, o_ref):
    """Grid = (B,).

    chains_ref : SMEM [Nc, L] int32 (scalar prefetch)
    t_ref      : VMEM [R, N, N]   transitions of this batch, relation dim leading
    o_ref      : VMEM [Nc, N, N]  output slab of this batch
    """
    Nc, L = chains_ref.shape

    for c in range(Nc):                                        # Nc, L are static & small
        acc = t_ref[chains_ref[c, 0]].astype(jnp.float32)      # [N, N]
        for l in range(1, L):
            t_l = t_ref[chains_ref[c, l]].astype(jnp.float32)  # [N, N]
            acc = _maxplus(acc, t_l)
        o_ref[c] = acc.astype(o_ref.dtype)


def path_scorer(transitions, chains):
    """transitions: [B, N, N, R] float32, chains: [Nc, L] int -> [B, N, N, Nc]."""
    B, N, _, R = transitions.shape
    Nc, L = chains.shape
    # defensive clamp: out-of-range relation ids would otherwise silently read garbage
    chains = jnp.clip(chains.astype(jnp.int32), 0, R - 1)

    # relation dim leading so the per-hop gather is a cheap major-dim dynamic index
    t_rnn = jnp.transpose(transitions, (0, 3, 1, 2))           # [B, R, N, N]

    out = pl.pallas_call(
        _path_scorer_kernel,
        out_shape=jax.ShapeDtypeStruct((B, Nc, N, N), transitions.dtype),
        grid_spec=pltpu.PrefetchScalarGridSpec(
            num_scalar_prefetch=1,
            grid=(B,),
            in_specs=[
                # one DMA per batch: the whole relation stack (batch dim squeezed)
                pl.BlockSpec((None, R, N, N), lambda b, ch: (b, 0, 0, 0)),
            ],
            # one writeback per batch: the full [Nc, N, N] result slab
            out_specs=pl.BlockSpec((None, Nc, N, N), lambda b, ch: (b, 0, 0, 0)),
        ),
        compiler_params=pltpu.CompilerParams(
            dimension_semantics=("parallel",)
        ),
    )(chains, t_rnn)

    # back to PyTorch output convention [B, N, N, Nc]
    return jnp.transpose(out, (0, 2, 3, 1))


def path_scorer_ref(transitions, chains):
    """Pure-JAX reference matching the PyTorch forward exactly."""
    Nc, L = chains.shape
    scores = transitions[..., chains[:, 0]]                     # [B, N, N, Nc]
    for i in range(1, L):
        t_i = transitions[..., chains[:, i]]                    # [B, N, N, Nc]
        scores = jnp.max(scores[:, :, :, None, :] + t_i[:, None, :, :, :], axis=2)
    return scores


if __name__ == "__main__":
    key = jax.random.PRNGKey(0)
    k1, k2 = jax.random.split(key)

    B, N, R = 2, 16, 5        # R = 2*2 + 1 relations
    Nc, L = 4, 3              # 4 chains of length 3

    transitions = jax.random.normal(k1, (B, N, N, R), dtype=jnp.float32)
    chains = jax.random.randint(k2, (Nc, L), 0, R, dtype=jnp.int32)

    out = jax.block_until_ready(path_scorer(transitions, chains))
    ref = jax.block_until_ready(path_scorer_ref(transitions, chains))

    assert out.shape == (B, N, N, Nc), out.shape
    assert jnp.allclose(out, ref, atol=1e-5, rtol=1e-5), "mismatch vs reference"
    print("KERNEL_OK")
</pallas_src>

<mosaic_0001>
module attributes {stable_mosaic.version = 11 : i64} {
  func.func @_path_scorer_kernel(%arg0: i32, %arg1: memref<4x3xi32, #tpu.memory_space<smem>>, %arg2: memref<1x5x16x16xf32, #tpu.memory_space<vmem>>, %arg3: memref<1x4x16x16xf32, #tpu.memory_space<vmem>>) attributes {dimension_semantics = [#tpu.dimension_semantics<parallel>], iteration_bounds = array<i64: 2>, scalar_prefetch = 1 : i64, scratch_operands = 0 : i64, tpu.core_type = #tpu.core_type<tc>, window_params = [{transform_indices = @transform_0, window_bounds = array<i64: 1, 5, 16, 16>}, {transform_indices = @transform_1, window_bounds = array<i64: 1, 4, 16, 16>}]} {
    %c0 = arith.constant 0 : index
    %c0_0 = arith.constant 0 : index
    %0 = memref.load %arg1[%c0, %c0_0] : memref<4x3xi32, #tpu.memory_space<smem>>
    %c0_1 = arith.constant 0 : index
    %1 = arith.index_cast %0 : i32 to index
    %c0_2 = arith.constant 0 : index
    %c0_3 = arith.constant 0 : index
    %2 = vector.load %arg2[%c0_1, %1, %c0_2, %c0_3] : memref<1x5x16x16xf32, #tpu.memory_space<vmem>>, vector<1x1x16x16xf32>
    %3 = vector.shape_cast %2 : vector<1x1x16x16xf32> to vector<16x16xf32>
    %c0_4 = arith.constant 0 : index
    %c1 = arith.constant 1 : index
    %4 = memref.load %arg1[%c0_4, %c1] : memref<4x3xi32, #tpu.memory_space<smem>>
    %c0_5 = arith.constant 0 : index
    %5 = arith.index_cast %4 : i32 to index
    %c0_6 = arith.constant 0 : index
    %c0_7 = arith.constant 0 : index
    %6 = vector.load %arg2[%c0_5, %5, %c0_6, %c0_7] : memref<1x5x16x16xf32, #tpu.memory_space<vmem>>, vector<1x1x16x16xf32>
    %7 = vector.shape_cast %6 : vector<1x1x16x16xf32> to vector<16x16xf32>
    %8 = vector.extract_strided_slice %3 {offsets = [0, 0], sizes = [16, 1], strides = [1, 1]} : vector<16x16xf32> to vector<16x1xf32>
    %9 = vector.extract_strided_slice %7 {offsets = [0, 0], sizes = [1, 16], strides = [1, 1]} : vector<16x16xf32> to vector<1x16xf32>
    %10 = vector.broadcast %8 : vector<16x1xf32> to vector<16x16xf32>
    %11 = vector.broadcast %9 : vector<1x16xf32> to vector<16x16xf32>
    %12 = arith.addf %10, %11 : vector<16x16xf32>
    %13 = vector.extract_strided_slice %3 {offsets = [0, 1], sizes = [16, 1], strides = [1, 1]} : vector<16x16xf32> to vector<16x1xf32>
    %14 = vector.extract_strided_slice %7 {offsets = [1, 0], sizes = [1, 16], strides = [1, 1]} : vector<16x16xf32> to vector<1x16xf32>
    %15 = vector.broadcast %13 : vector<16x1xf32> to vector<16x16xf32>
    %16 = vector.broadcast %14 : vector<1x16xf32> to vector<16x16xf32>
    %17 = arith.addf %15, %16 : vector<16x16xf32>
    %18 = arith.maximumf %12, %17 : vector<16x16xf32>
    %19 = vector.extract_strided_slice %3 {offsets = [0, 2], sizes = [16, 1], strides = [1, 1]} : vector<16x16xf32> to vector<16x1xf32>
    %20 = vector.extract_strided_slice %7 {offsets = [2, 0], sizes = [1, 16], strides = [1, 1]} : vector<16x16xf32> to vector<1x16xf32>
    %21 = vector.broadcast %19 : vector<16x1xf32> to vector<16x16xf32>
    %22 = vector.broadcast %20 : vector<1x16xf32> to vector<16x16xf32>
    %23 = arith.addf %21, %22 : vector<16x16xf32>
    %24 = arith.maximumf %18, %23 : vector<16x16xf32>
    %25 = vector.extract_strided_slice %3 {offsets = [0, 3], sizes = [16, 1], strides = [1, 1]} : vector<16x16xf32> to vector<16x1xf32>
    %26 = vector.extract_strided_slice %7 {offsets = [3, 0], sizes = [1, 16], strides = [1, 1]} : vector<16x16xf32> to vector<1x16xf32>
    %27 = vector.broadcast %25 : vector<16x1xf32> to vector<16x16xf32>
    %28 = vector.broadcast %26 : vector<1x16xf32> to vector<16x16xf32>
    %29 = arith.addf %27, %28 : vector<16x16xf32>
    %30 = arith.maximumf %24, %29 : vector<16x16xf32>
    %31 = vector.extract_strided_slice %3 {offsets = [0, 4], sizes = [16, 1], strides = [1, 1]} : vector<16x16xf32> to vector<16x1xf32>
    %32 = vector.extract_strided_slice %7 {offsets = [4, 0], sizes = [1, 16], strides = [1, 1]} : vector<16x16xf32> to vector<1x16xf32>
    %33 = vector.broadcast %31 : vector<16x1xf32> to vector<16x16xf32>
    %34 = vector.broadcast %32 : vector<1x16xf32> to vector<16x16xf32>
    %35 = arith.addf %33, %34 : vector<16x16xf32>
    %36 = arith.maximumf %30, %35 : vector<16x16xf32>
    %37 = vector.extract_strided_slice %3 {offsets = [0, 5], sizes = [16, 1], strides = [1, 1]} : vector<16x16xf32> to vector<16x1xf32>
    %38 = vector.extract_strided_slice %7 {offsets = [5, 0], sizes = [1, 16], strides = [1, 1]} : vector<16x16xf32> to vector<1x16xf32>
    %39 = vector.broadcast %37 : vector<16x1xf32> to vector<16x16xf32>
    %40 = vector.broadcast %38 : vector<1x16xf32> to vector<16x16xf32>
    %41 = arith.addf %39, %40 : vector<16x16xf32>
    %42 = arith.maximumf %36, %41 : vector<16x16xf32>
    %43 = vector.extract_strided_slice %3 {offsets = [0, 6], sizes = [16, 1], strides = [1, 1]} : vector<16x16xf32> to vector<16x1xf32>
    %44 = vector.extract_strided_slice %7 {offsets = [6, 0], sizes = [1, 16], strides = [1, 1]} : vector<16x16xf32> to vector<1x16xf32>
    %45 = vector.broadcast %43 : vector<16x1xf32> to vector<16x16xf32>
    %46 = vector.broadcast %44 : vector<1x16xf32> to vector<16x16xf32>
    %47 = arith.addf %45, %46 : vector<16x16xf32>
    %48 = arith.maximumf %42, %47 : vector<16x16xf32>
    %49 = vector.extract_strided_slice %3 {offsets = [0, 7], sizes = [16, 1], strides = [1, 1]} : vector<16x16xf32> to vector<16x1xf32>
    %50 = vector.extract_strided_slice %7 {offsets = [7, 0], sizes = [1, 16], strides = [1, 1]} : vector<16x16xf32> to vector<1x16xf32>
    %51 = vector.broadcast %49 : vector<16x1xf32> to vector<16x16xf32>
    %52 = vector.broadcast %50 : vector<1x16xf32> to vector<16x16xf32>
    %53 = arith.addf %51, %52 : vector<16x16xf32>
    %54 = arith.maximumf %48, %53 : vector<16x16xf32>
    %55 = vector.extract_strided_slice %3 {offsets = [0, 8], sizes = [16, 1], strides = [1, 1]} : vector<16x16xf32> to vector<16x1xf32>
    %56 = vector.extract_strided_slice %7 {offsets = [8, 0], sizes = [1, 16], strides = [1, 1]} : vector<16x16xf32> to vector<1x16xf32>
    %57 = vector.broadcast %55 : vector<16x1xf32> to vector<16x16xf32>
    %58 = vector.broadcast %56 : vector<1x16xf32> to vector<16x16xf32>
    %59 = arith.addf %57, %58 : vector<16x16xf32>
    %60 = arith.maximumf %54, %59 : vector<16x16xf32>
    %61 = vector.extract_strided_slice %3 {offsets = [0, 9], sizes = [16, 1], strides = [1, 1]} : vector<16x16xf32> to vector<16x1xf32>
    %62 = vector.extract_strided_slice %7 {offsets = [9, 0], sizes = [1, 16], strides = [1, 1]} : vector<16x16xf32> to vector<1x16xf32>
    %63 = vector.broadcast %61 : vector<16x1xf32> to vector<16x16xf32>
    %64 = vector.broadcast %62 : vector<1x16xf32> to vector<16x16xf32>
    %65 = arith.addf %63, %64 : vector<16x16xf32>
    %66 = arith.maximumf %60, %65 : vector<16x16xf32>
    %67 = vector.extract_strided_slice %3 {offsets = [0, 10], sizes = [16, 1], strides = [1, 1]} : vector<16x16xf32> to vector<16x1xf32>
    %68 = vector.extract_strided_slice %7 {offsets = [10, 0], sizes = [1, 16], strides = [1, 1]} : vector<16x16xf32> to vector<1x16xf32>
    %69 = vector.broadcast %67 : vector<16x1xf32> to vector<16x16xf32>
    %70 = vector.broadcast %68 : vector<1x16xf32> to vector<16x16xf32>
    %71 = arith.addf %69, %70 : vector<16x16xf32>
    %72 = arith.maximumf %66, %71 : vector<16x16xf32>
    %73 = vector.extract_strided_slice %3 {offsets = [0, 11], sizes = [16, 1], strides = [1, 1]} : vector<16x16xf32> to vector<16x1xf32>
    %74 = vector.extract_strided_slice %7 {offsets = [11, 0], sizes = [1, 16], strides = [1, 1]} : vector<16x16xf32> to vector<1x16xf32>
    %75 = vector.broadcast %73 : vector<16x1xf32> to vector<16x16xf32>
    %76 = vector.broadcast %74 : vector<1x16xf32> to vector<16x16xf32>
    %77 = arith.addf %75, %76 : vector<16x16xf32>
    %78 = arith.maximumf %72, %77 : vector<16x16xf32>
    %79 = vector.extract_strided_slice %3 {offsets = [0, 12], sizes = [16, 1], strides = [1, 1]} : vector<16x16xf32> to vector<16x1xf32>
    %80 = vector.extract_strided_slice %7 {offsets = [12, 0], sizes = [1, 16], strides = [1, 1]} : vector<16x16xf32> to vector<1x16xf32>
    %81 = vector.broadcast %79 : vector<16x1xf32> to vector<16x16xf32>
    %82 = vector.broadcast %80 : vector<1x16xf32> to vector<16x16xf32>
    %83 = arith.addf %81, %82 : vector<16x16xf32>
    %84 = arith.maximumf %78, %83 : vector<16x16xf32>
    %85 = vector.extract_strided_slice %3 {offsets = [0, 13], sizes = [16, 1], strides = [1, 1]} : vector<16x16xf32> to vector<16x1xf32>
    %86 = vector.extract_strided_slice %7 {offsets = [13, 0], sizes = [1, 16], strides = [1, 1]} : vector<16x16xf32> to vector<1x16xf32>
    %87 = vector.broadcast %85 : vector<16x1xf32> to vector<16x16xf32>
    %88 = vector.broadcast %86 : vector<1x16xf32> to vector<16x16xf32>
    %89 = arith.addf %87, %88 : vector<16x16xf32>
    %90 = arith.maximumf %84, %89 : vector<16x16xf32>
    %91 = vector.extract_strided_slice %3 {offsets = [0, 14], sizes = [16, 1], strides = [1, 1]} : vector<16x16xf32> to vector<16x1xf32>
    %92 = vector.extract_strided_slice %7 {offsets = [14, 0], sizes = [1, 16], strides = [1, 1]} : vector<16x16xf32> to vector<1x16xf32>
    %93 = vector.broadcast %91 : vector<16x1xf32> to vector<16x16xf32>
    %94 = vector.broadcast %92 : vector<1x16xf32> to vector<16x16xf32>
    %95 = arith.addf %93, %94 : vector<16x16xf32>
    %96 = arith.maximumf %90, %95 : vector<16x16xf32>
    %97 = vector.extract_strided_slice %3 {offsets = [0, 15], sizes = [16, 1], strides = [1, 1]} : vector<16x16xf32> to vector<16x1xf32>
    %98 = vector.extract_strided_slice %7 {offsets = [15, 0], sizes = [1, 16], strides = [1, 1]} : vector<16x16xf32> to vector<1x16xf32>
    %99 = vector.broadcast %97 : vector<16x1xf32> to vector<16x16xf32>
    %100 = vector.broadcast %98 : vector<1x16xf32> to vector<16x16xf32>
    %101 = arith.addf %99, %100 : vector<16x16xf32>
    %102 = arith.maximumf %96, %101 : vector<16x16xf32>
    %c0_8 = arith.constant 0 : index
    %c2 = arith.constant 2 : index
    %103 = memref.load %arg1[%c0_8, %c2] : memref<4x3xi32, #tpu.memory_space<smem>>
    %c0_9 = arith.constant 0 : index
    %104 = arith.index_cast %103 : i32 to index
    %c0_10 = arith.constant 0 : index
    %c0_11 = arith.constant 0 : index
    %105 = vector.load %arg2[%c0_9, %104, %c0_10, %c0_11] : memref<1x5x16x16xf32, #tpu.memory_space<vmem>>, vector<1x1x16x16xf32>
    %106 = vector.shape_cast %105 : vector<1x1x16x16xf32> to vector<16x16xf32>
    %107 = vector.extract_strided_slice %102 {offsets = [0, 0], sizes = [16, 1], strides = [1, 1]} : vector<16x16xf32> to vector<16x1xf32>
    %108 = vector.extract_strided_slice %106 {offsets = [0, 0], sizes = [1, 16], strides = [1, 1]} : vector<16x16xf32> to vector<1x16xf32>
    %109 = vector.broadcast %107 : vector<16x1xf32> to vector<16x16xf32>
    %110 = vector.broadcast %108 : vector<1x16xf32> to vector<16x16xf32>
    %111 = arith.addf %109, %110 : vector<16x16xf32>
    %112 = vector.extract_strided_slice %102 {offsets = [0, 1], sizes = [16, 1], strides = [1, 1]} : vector<16x16xf32> to vector<16x1xf32>
    %113 = vector.extract_strided_slice %106 {offsets = [1, 0], sizes = [1, 16], strides = [1, 1]} : vector<16x16xf32> to vector<1x16xf32>
    %114 = vector.broadcast %112 : vector<16x1xf32> to vector<16x16xf32>
    %115 = vector.broadcast %113 : vector<1x16xf32> to vector<16x16xf32>
    %116 = arith.addf %114, %115 : vector<16x16xf32>
    %117 = arith.maximumf %111, %116 : vector<16x16xf32>
    %118 = vector.extract_strided_slice %102 {offsets = [0, 2], sizes = [16, 1], strides = [1, 1]} : vector<16x16xf32> to vector<16x1xf32>
    %119 = vector.extract_strided_slice %106 {offsets = [2, 0], sizes = [1, 16], strides = [1, 1]} : vector<16x16xf32> to vector<1x16xf32>
    %120 = vector.broadcast %118 : vector<16x1xf32> to vector<16x16xf32>
    %121 = vector.broadcast %119 : vector<1x16xf32> to vector<16x16xf32>
    %122 = arith.addf %120, %121 : vector<16x16xf32>
    %123 = arith.maximumf %117, %122 : vector<16x16xf32>
    %124 = vector.extract_strided_slice %102 {offsets = [0, 3], sizes = [16, 1], strides = [1, 1]} : vector<16x16xf32> to vector<16x1xf32>
    %125 = vector.extract_strided_slice %106 {offsets = [3, 0], sizes = [1, 16], strides = [1, 1]} : vector<16x16xf32> to vector<1x16xf32>
    %126 = vector.broadcast %124 : vector<16x1xf32> to vector<16x16xf32>
    %127 = vector.broadcast %125 : vector<1x16xf32> to vector<16x16xf32>
    %128 = arith.addf %126, %127 : vector<16x16xf32>
    %129 = arith.maximumf %123, %128 : vector<16x16xf32>
    %130 = vector.extract_strided_slice %102 {offsets = [0, 4], sizes = [16, 1], strides = [1, 1]} : vector<16x16xf32> to vector<16x1xf32>
    %131 = vector.extract_strided_slice %106 {offsets = [4, 0], sizes = [1, 16], strides = [1, 1]} : vector<16x16xf32> to vector<1x16xf32>
    %132 = vector.broadcast %130 : vector<16x1xf32> to vector<16x16xf32>
    %133 = vector.broadcast %131 : vector<1x16xf32> to vector<16x16xf32>
    %134 = arith.addf %132, %133 : vector<16x16xf32>
    %135 = arith.maximumf %129, %134 : vector<16x16xf32>
    %136 = vector.extract_strided_slice %102 {offsets = [0, 5], sizes = [16, 1], strides = [1, 1]} : vector<16x16xf32> to vector<16x1xf32>
    %137 = vector.extract_strided_slice %106 {offsets = [5, 0], sizes = [1, 16], strides = [1, 1]} : vector<16x16xf32> to vector<1x16xf32>
    %138 = vector.broadcast %136 : vector<16x1xf32> to vector<16x16xf32>
    %139 = vector.broadcast %137 : vector<1x16xf32> to vector<16x16xf32>
    %140 = arith.addf %138, %139 : vector<16x16xf32>
    %141 = arith.maximumf %135, %140 : vector<16x16xf32>
    %142 = vector.extract_strided_slice %102 {offsets = [0, 6], sizes = [16, 1], strides = [1, 1]} : vector<16x16xf32> to vector<16x1xf32>
    %143 = vector.extract_strided_slice %106 {offsets = [6, 0], sizes = [1, 16], strides = [1, 1]} : vector<16x16xf32> to vector<1x16xf32>
    %144 = vector.broadcast %142 : vector<16x1xf32> to vector<16x16xf32>
    %145 = vector.broadcast %143 : vector<1x16xf32> to vector<16x16xf32>
    %146 = arith.addf %144, %145 : vector<16x16xf32>
    %147 = arith.maximumf %141, %146 : vector<16x16xf32>
    %148 = vector.extract_strided_slice %102 {offsets = [0, 7], sizes = [16, 1], strides = [1, 1]} : vector<16x16xf32> to vector<16x1xf32>
    %149 = vector.extract_strided_slice %106 {offsets = [7, 0], sizes = [1, 16], strides = [1, 1]} : vector<16x16xf32> to vector<1x16xf32>
    %150 = vector.broadcast %148 : vector<16x1xf32> to vector<16x16xf32>
    %151 = vector.broadcast %149 : vector<1x16xf32> to vector<16x16xf32>
    %152 = arith.addf %150, %151 : vector<16x16xf32>
    %153 = arith.maximumf %147, %152 : vector<16x16xf32>
    %154 = vector.extract_strided_slice %102 {offsets = [0, 8], sizes = [16, 1], strides = [1, 1]} : vector<16x16xf32> to vector<16x1xf32>
    %155 = vector.extract_strided_slice %106 {offsets = [8, 0], sizes = [1, 16], strides = [1, 1]} : vector<16x16xf32> to vector<1x16xf32>
    %156 = vector.broadcast %154 : vector<16x1xf32> to vector<16x16xf32>
    %157 = vector.broadcast %155 : vector<1x16xf32> to vector<16x16xf32>
    %158 = arith.addf %156, %157 : vector<16x16xf32>
    %159 = arith.maximumf %153, %158 : vector<16x16xf32>
    %160 = vector.extract_strided_slice %102 {offsets = [0, 9], sizes = [16, 1], strides = [1, 1]} : vector<16x16xf32> to vector<16x1xf32>
    %161 = vector.extract_strided_slice %106 {offsets = [9, 0], sizes = [1, 16], strides = [1, 1]} : vector<16x16xf32> to vector<1x16xf32>
    %162 = vector.broadcast %160 : vector<16x1xf32> to vector<16x16xf32>
    %163 = vector.broadcast %161 : vector<1x16xf32> to vector<16x16xf32>
    %164 = arith.addf %162, %163 : vector<16x16xf32>
    %165 = arith.maximumf %159, %164 : vector<16x16xf32>
    %166 = vector.extract_strided_slice %102 {offsets = [0, 10], sizes = [16, 1], strides = [1, 1]} : vector<16x16xf32> to vector<16x1xf32>
    %167 = vector.extract_strided_slice %106 {offsets = [10, 0], sizes = [1, 16], strides = [1, 1]} : vector<16x16xf32> to vector<1x16xf32>
    %168 = vector.broadcast %166 : vector<16x1xf32> to vector<16x16xf32>
    %169 = vector.broadcast %167 : vector<1x16xf32> to vector<16x16xf32>
    %170 = arith.addf %168, %169 : vector<16x16xf32>
    %171 = arith.maximumf %165, %170 : vector<16x16xf32>
    %172 = vector.extract_strided_slice %102 {offsets = [0, 11], sizes = [16, 1], strides = [1, 1]} : vector<16x16xf32> to vector<16x1xf32>
    %173 = vector.extract_strided_slice %106 {offsets = [11, 0], sizes = [1, 16], strides = [1, 1]} : vector<16x16xf32> to vector<1x16xf32>
    %174 = vector.broadcast %172 : vector<16x1xf32> to vector<16x16xf32>
    %175 = vector.broadcast %173 : vector<1x16xf32> to vector<16x16xf32>
    %176 = arith.addf %174, %175 : vector<16x16xf32>
    %177 = arith.maximumf %171, %176 : vector<16x16xf32>
    %178 = vector.extract_strided_slice %102 {offsets = [0, 12], sizes = [16, 1], strides = [1, 1]} : vector<16x16xf32> to vector<16x1xf32>
    %179 = vector.extract_strided_slice %106 {offsets = [12, 0], sizes = [1, 16], strides = [1, 1]} : vector<16x16xf32> to vector<1x16xf32>
    %180 = vector.broadcast %178 : vector<16x1xf32> to vector<16x16xf32>
    %181 = vector.broadcast %179 : vector<1x16xf32> to vector<16x16xf32>
    %182 = arith.addf %180, %181 : vector<16x16xf32>
    %183 = arith.maximumf %177, %182 : vector<16x16xf32>
    %184 = vector.extract_strided_slice %102 {offsets = [0, 13], sizes = [16, 1], strides = [1, 1]} : vector<16x16xf32> to vector<16x1xf32>
    %185 = vector.extract_strided_slice %106 {offsets = [13, 0], sizes = [1, 16], strides = [1, 1]} : vector<16x16xf32> to vector<1x16xf32>
    %186 = vector.broadcast %184 : vector<16x1xf32> to vector<16x16xf32>
    %187 = vector.broadcast %185 : vector<1x16xf32> to vector<16x16xf32>
    %188 = arith.addf %186, %187 : vector<16x16xf32>
    %189 = arith.maximumf %183, %188 : vector<16x16xf32>
    %190 = vector.extract_strided_slice %102 {offsets = [0, 14], sizes = [16, 1], strides = [1, 1]} : vector<16x16xf32> to vector<16x1xf32>
    %191 = vector.extract_strided_slice %106 {offsets = [14, 0], sizes = [1, 16], strides = [1, 1]} : vector<16x16xf32> to vector<1x16xf32>
    %192 = vector.broadcast %190 : vector<16x1xf32> to vector<16x16xf32>
    %193 = vector.broadcast %191 : vector<1x16xf32> to vector<16x16xf32>
    %194 = arith.addf %192, %193 : vector<16x16xf32>
    %195 = arith.maximumf %189, %194 : vector<16x16xf32>
    %196 = vector.extract_strided_slice %102 {offsets = [0, 15], sizes = [16, 1], strides = [1, 1]} : vector<16x16xf32> to vector<16x1xf32>
    %197 = vector.extract_strided_slice %106 {offsets = [15, 0], sizes = [1, 16], strides = [1, 1]} : vector<16x16xf32> to vector<1x16xf32>
    %198 = vector.broadcast %196 : vector<16x1xf32> to vector<16x16xf32>
    %199 = vector.broadcast %197 : vector<1x16xf32> to vector<16x16xf32>
    %200 = arith.addf %198, %199 : vector<16x16xf32>
    %201 = arith.maximumf %195, %200 : vector<16x16xf32>
    %c0_12 = arith.constant 0 : index
    %c0_13 = arith.constant 0 : index
    %c0_14 = arith.constant 0 : index
    %c0_15 = arith.constant 0 : index
    %202 = vector.load %arg3[%c0_12, %c0_13, %c0_14, %c0_15] : memref<1x4x16x16xf32, #tpu.memory_space<vmem>>, vector<1x1x16x16xf32>
    %203 = vector.shape_cast %202 : vector<1x1x16x16xf32> to vector<16x16xf32>
    %204 = vector.shape_cast %201 : vector<16x16xf32> to vector<1x1x16x16xf32>
    tpu.vector_store %arg3[%c0_12, %c0_13, %c0_14, %c0_15], %204 {strides = array<i32>} : memref<1x4x16x16xf32, #tpu.memory_space<vmem>>, vector<1x1x16x16xf32>,
    %c1_16 = arith.constant 1 : index
    %c0_17 = arith.constant 0 : index
    %205 = memref.load %arg1[%c1_16, %c0_17] : memref<4x3xi32, #tpu.memory_space<smem>>
    %c0_18 = arith.constant 0 : index
    %206 = arith.index_cast %205 : i32 to index
    %c0_19 = arith.constant 0 : index
    %c0_20 = arith.constant 0 : index
    %207 = vector.load %arg2[%c0_18, %206, %c0_19, %c0_20] : memref<1x5x16x16xf32, #tpu.memory_space<vmem>>, vector<1x1x16x16xf32>
    %208 = vector.shape_cast %207 : vector<1x1x16x16xf32> to vector<16x16xf32>
    %c1_21 = arith.constant 1 : index
    %c1_22 = arith.constant 1 : index
    %209 = memref.load %arg1[%c1_21, %c1_22] : memref<4x3xi32, #tpu.memory_space<smem>>
    %c0_23 = arith.constant 0 : index
    %210 = arith.index_cast %209 : i32 to index
    %c0_24 = arith.constant 0 : index
    %c0_25 = arith.constant 0 : index
    %211 = vector.load %arg2[%c0_23, %210, %c0_24, %c0_25] : memref<1x5x16x16xf32, #tpu.memory_space<vmem>>, vector<1x1x16x16xf32>
    %212 = vector.shape_cast %211 : vector<1x1x16x16xf32> to vector<16x16xf32>
    %213 = vector.extract_strided_slice %208 {offsets = [0, 0], sizes = [16, 1], strides = [1, 1]} : vector<16x16xf32> to vector<16x1xf32>
    %214 = vector.extract_strided_slice %212 {offsets = [0, 0], sizes = [1, 16], strides = [1, 1]} : vector<16x16xf32> to vector<1x16xf32>
    %215 = vector.broadcast %213 : vector<16x1xf32> to vector<16x16xf32>
    %216 = vector.broadcast %214 : vector<1x16xf32> to vector<16x16xf32>
    %217 = arith.addf %215, %216 : vector<16x16xf32>
    %218 = vector.extract_strided_slice %208 {offsets = [0, 1], sizes = [16, 1], strides = [1, 1]} : vector<16x16xf32> to vector<16x1xf32>
    %219 = vector.extract_strided_slice %212 {offsets = [1, 0], sizes = [1, 16], strides = [1, 1]} : vector<16x16xf32> to vector<1x16xf32>
    %220 = vector.broadcast %218 : vector<16x1xf32> to vector<16x16xf32>
    %221 = vector.broadcast %219 : vector<1x16xf32> to vector<16x16xf32>
    %222 = arith.addf %220, %221 : vector<16x16xf32>
    %223 = arith.maximumf %217, %222 : vector<16x16xf32>
    %224 = vector.extract_strided_slice %208 {offsets = [0, 2], sizes = [16, 1], strides = [1, 1]} : vector<16x16xf32> to vector<16x1xf32>
    %225 = vector.extract_strided_slice %212 {offsets = [2, 0], sizes = [1, 16], strides = [1, 1]} : vector<16x16xf32> to vector<1x16xf32>
    %226 = vector.broadcast %224 : vector<16x1xf32> to vector<16x16xf32>
    %227 = vector.broadcast %225 : vector<1x16xf32> to vector<16x16xf32>
    %228 = arith.addf %226, %227 : vector<16x16xf32>
    %229 = arith.maximumf %223, %228 : vector<16x16xf32>
    %230 = vector.extract_strided_slice %208 {offsets = [0, 3], sizes = [16, 1], strides = [1, 1]} : vector<16x16xf32> to vector<16x1xf32>
    %231 = vector.extract_strided_slice %212 {offsets = [3, 0], sizes = [1, 16], strides = [1, 1]} : vector<16x16xf32> to vector<1x16xf32>
    %232 = vector.broadcast %230 : vector<16x1xf32> to vector<16x16xf32>
    %233 = vector.broadcast %231 : vector<1x16xf32> to vector<16x16xf32>
    %234 = arith.addf %232, %233 : vector<16x16xf32>
    %235 = arith.maximumf %229, %234 : vector<16x16xf32>
    %236 = vector.extract_strided_slice %208 {offsets = [0, 4], sizes = [16, 1], strides = [1, 1]} : vector<16x16xf32> to vector<16x1xf32>
    %237 = vector.extract_strided_slice %212 {offsets = [4, 0], sizes = [1, 16], strides = [1, 1]} : vector<16x16xf32> to vector<1x16xf32>
    %238 = vector.broadcast %236 : vector<16x1xf32> to vector<16x16xf32>
    %239 = vector.broadcast %237 : vector<1x16xf32> to vector<16x16xf32>
    %240 = arith.addf %238, %239 : vector<16x16xf32>
    %241 = arith.maximumf %235, %240 : vector<16x16xf32>
    %242 = vector.extract_strided_slice %208 {offsets = [0, 5], sizes = [16, 1], strides = [1, 1]} : vector<16x16xf32> to vector<16x1xf32>
    %243 = vector.extract_strided_slice %212 {offsets = [5, 0], sizes = [1, 16], strides = [1, 1]} : vector<16x16xf32> to vector<1x16xf32>
    %244 = vector.broadcast %242 : vector<16x1xf32> to vector<16x16xf32>
    %245 = vector.broadcast %243 : vector<1x16xf32> to vector<16x16xf32>
    %246 = arith.addf %244, %245 : vector<16x16xf32>
    %247 = arith.maximumf %241, %246 : vector<16x16xf32>
    %248 = vector.extract_strided_slice %208 {offsets = [0, 6], sizes = [16, 1], strides = [1, 1]} : vector<16x16xf32> to vector<16x1xf32>
    %249 = vector.extract_strided_slice %212 {offsets = [6, 0], sizes = [1, 16], strides = [1, 1]} : vector<16x16xf32> to vector<1x16xf32>
    %250 = vector.broadcast %248 : vector<16x1xf32> to vector<16x16xf32>
    %251 = vector.broadcast %249 : vector<1x16xf32> to vector<16x16xf32>
    %252 = arith.addf %250, %251 : vector<16x16xf32>
    %253 = arith.maximumf %247, %252 : vector<16x16xf32>
    %254 = vector.extract_strided_slice %208 {offsets = [0, 7], sizes = [16, 1], strides = [1, 1]} : vector<16x16xf32> to vector<16x1xf32>
    %255 = vector.extract_strided_slice %212 {offsets = [7, 0], sizes = [1, 16], strides = [1, 1]} : vector<16x16xf32> to vector<1x16xf32>
    %256 = vector.broadcast %254 : vector<16x1xf32> to vector<16x16xf32>
    %257 = vector.broadcast %255 : vector<1x16xf32> to vector<16x16xf32>
    %258 = arith.addf %256, %257 : vector<16x16xf32>
    %259 = arith.maximumf %253, %258 : vector<16x16xf32>
    %260 = vector.extract_strided_slice %208 {offsets = [0, 8], sizes = [16, 1], strides = [1, 1]} : vector<16x16xf32> to vector<16x1xf32>
    %261 = vector.extract_strided_slice %212 {offsets = [8, 0], sizes = [1, 16], strides = [1, 1]} : vector<16x16xf32> to vector<1x16xf32>
    %262 = vector.broadcast %260 : vector<16x1xf32> to vector<16x16xf32>
    %263 = vector.broadcast %261 : vector<1x16xf32> to vector<16x16xf32>
    %264 = arith.addf %262, %263 : vector<16x16xf32>
    %265 = arith.maximumf %259, %264 : vector<16x16xf32>
    %266 = vector.extract_strided_slice %208 {offsets = [0, 9], sizes = [16, 1], strides = [1, 1]} : vector<16x16xf32> to vector<16x1xf32>
    %267 = vector.extract_strided_slice %212 {offsets = [9, 0], sizes = [1, 16], strides = [1, 1]} : vector<16x16xf32> to vector<1x16xf32>
    %268 = vector.broadcast %266 : vector<16x1xf32> to vector<16x16xf32>
    %269 = vector.broadcast %267 : vector<1x16xf32> to vector<16x16xf32>
    %270 = arith.addf %268, %269 : vector<16x16xf32>
    %271 = arith.maximumf %265, %270 : vector<16x16xf32>
    %272 = vector.extract_strided_slice %208 {offsets = [0, 10], sizes = [16, 1], strides = [1, 1]} : vector<16x16xf32> to vector<16x1xf32>
    %273 = vector.extract_strided_slice %212 {offsets = [10, 0], sizes = [1, 16], strides = [1, 1]} : vector<16x16xf32> to vector<1x16xf32>
    %274 = vector.broadcast %272 : vector<16x1xf32> to vector<16x16xf32>
    %275 = vector.broadcast %273 : vector<1x16xf32> to vector<16x16xf32>
    %276 = arith.addf %274, %275 : vector<16x16xf32>
    %277 = arith.maximumf %271, %276 : vector<16x16xf32>
    %278 = vector.extract_strided_slice %208 {offsets = [0, 11], sizes = [16, 1], strides = [1, 1]} : vector<16x16xf32> to vector<16x1xf32>
    %279 = vector.extract_strided_slice %212 {offsets = [11, 0], sizes = [1, 16], strides = [1, 1]} : vector<16x16xf32> to vector<1x16xf32>
    %280 = vector.broadcast %278 : vector<16x1xf32> to vector<16x16xf32>
    %281 = vector.broadcast %279 : vector<1x16xf32> to vector<16x16xf32>
    %282 = arith.addf %280, %281 : vector<16x16xf32>
    %283 = arith.maximumf %277, %282 : vector<16x16xf32>
    %284 = vector.extract_strided_slice %208 {offsets = [0, 12], sizes = [16, 1], strides = [1, 1]} : vector<16x16xf32> to vector<16x1xf32>
    %285 = vector.extract_strided_slice %212 {offsets = [12, 0], sizes = [1, 16], strides = [1, 1]} : vector<16x16xf32> to vector<1x16xf32>
    %286 = vector.broadcast %284 : vector<16x1xf32> to vector<16x16xf32>
    %287 = vector.broadcast %285 : vector<1x16xf32> to vector<16x16xf32>
    %288 = arith.addf %286, %287 : vector<16x16xf32>
    %289 = arith.maximumf %283, %288 : vector<16x16xf32>
    %290 = vector.extract_strided_slice %208 {offsets = [0, 13], sizes = [16, 1], strides = [1, 1]} : vector<16x16xf32> to vector<16x1xf32>
    %291 = vector.extract_strided_slice %212 {offsets = [13, 0], sizes = [1, 16], strides = [1, 1]} : vector<16x16xf32> to vector<1x16xf32>
    %292 = vector.broadcast %290 : vector<16x1xf32> to vector<16x16xf32>
    %293 = vector.broadcast %291 : vector<1x16xf32> to vector<16x16xf32>
    %294 = arith.addf %292, %293 : vector<16x16xf32>
    %295 = arith.maximumf %289, %294 : vector<16x16xf32>
    %296 = vector.extract_strided_slice %208 {offsets = [0, 14], sizes = [16, 1], strides = [1, 1]} : vector<16x16xf32> to vector<16x1xf32>
    %297 = vector.extract_strided_slice %212 {offsets = [14, 0], sizes = [1, 16], strides = [1, 1]} : vector<16x16xf32> to vector<1x16xf32>
    %298 = vector.broadcast %296 : vector<16x1xf32> to vector<16x16xf32>
    %299 = vector.broadcast %297 : vector<1x16xf32> to vector<16x16xf32>
    %300 = arith.addf %298, %299 : vector<16x16xf32>
    %301 = arith.maximumf %295, %300 : vector<16x16xf32>
    %302 = vector.extract_strided_slice %208 {offsets = [0, 15], sizes = [16, 1], strides = [1, 1]} : vector<16x16xf32> to vector<16x1xf32>
    %303 = vector.extract_strided_slice %212 {offsets = [15, 0], sizes = [1, 16], strides = [1, 1]} : vector<16x16xf32> to vector<1x16xf32>
    %304 = vector.broadcast %302 : vector<16x1xf32> to vector<16x16xf32>
    %305 = vector.broadcast %303 : vector<1x16xf32> to vector<16x16xf32>
    %306 = arith.addf %304, %305 : vector<16x16xf32>
    %307 = arith.maximumf %301, %306 : vector<16x16xf32>
    %c1_26 = arith.constant 1 : index
    %c2_27 = arith.constant 2 : index
    %308 = memref.load %arg1[%c1_26, %c2_27] : memref<4x3xi32, #tpu.memory_space<smem>>
    %c0_28 = arith.constant 0 : index
    %309 = arith.index_cast %308 : i32 to index
    %c0_29 = arith.constant 0 : index
    %c0_30 = arith.constant 0 : index
    %310 = vector.load %arg2[%c0_28, %309, %c0_29, %c0_30] : memref<1x5x16x16xf32, #tpu.memory_space<vmem>>, vector<1x1x16x16xf32>
    %311 = vector.shape_cast %310 : vector<1x1x16x16xf32> to vector<16x16xf32>
    %312 = vector.extract_strided_slice %307 {offsets = [0, 0], sizes = [16, 1], strides = [1, 1]} : vector<16x16xf32> to vector<16x1xf32>
    %313 = vector.extract_strided_slice %311 {offsets = [0, 0], sizes = [1, 16], strides = [1, 1]} : vector<16x16xf32> to vector<1x16xf32>
    %314 = vector.broadcast %312 : vector<16x1xf32> to vector<16x16xf32>
    %315 = vector.broadcast %313 : vector<1x16xf32> to vector<16x16xf32>
    %316 = arith.addf %314, %315 : vector<16x16xf32>
    %317 = vector.extract_strided_slice %307 {offsets = [0, 1], sizes = [16, 1], strides = [1, 1]} : vector<16x16xf32> to vector<16x1xf32>
    %318 = vector.extract_strided_slice %311 {offsets = [1, 0], sizes = [1, 16], strides = [1, 1]} : vector<16x16xf32> to vector<1x16xf32>
    %319 = vector.broadcast %317 : vector<16x1xf32> to vector<16x16xf32>
    %320 = vector.broadcast %318 : vector<1x16xf32> to vector<16x16xf32>
    %321 = arith.addf %319, %320 : vector<16x16xf32>
    %322 = arith.maximumf %316, %321 : vector<16x16xf32>
    %323 = vector.extract_strided_slice %307 {offsets = [0, 2], sizes = [16, 1], strides = [1, 1]} : vector<16x16xf32> to vector<16x1xf32>
    %324 = vector.extract_strided_slice %311 {offsets = [2, 0], sizes = [1, 16], strides = [1, 1]} : vector<16x16xf32> to vector<1x16xf32>
    %325 = vector.broadcast %323 : vector<16x1xf32> to vector<16x16xf32>
    %326 = vector.broadcast %324 : vector<1x16xf32> to vector<16x16xf32>
    %327 = arith.addf %325, %326 : vector<16x16xf32>
    %328 = arith.maximumf %322, %327 : vector<16x16xf32>
    %329 = vector.extract_strided_slice %307 {offsets = [0, 3], sizes = [16, 1], strides = [1, 1]} : vector<16x16xf32> to vector<16x1xf32>
    %330 = vector.extract_strided_slice %311 {offsets = [3, 0], sizes = [1, 16], strides = [1, 1]} : vector<16x16xf32> to vector<1x16xf32>
    %331 = vector.broadcast %329 : vector<16x1xf32> to vector<16x16xf32>
    %332 = vector.broadcast %330 : vector<1x16xf32> to vector<16x16xf32>
    %333 = arith.addf %331, %332 : vector<16x16xf32>
    %334 = arith.maximumf %328, %333 : vector<16x16xf32>
    %335 = vector.extract_strided_slice %307 {offsets = [0, 4], sizes = [16, 1], strides = [1, 1]} : vector<16x16xf32> to vector<16x1xf32>
    %336 = vector.extract_strided_slice %311 {offsets = [4, 0], sizes = [1, 16], strides = [1, 1]} : vector<16x16xf32> to vector<1x16xf32>
    %337 = vector.broadcast %335 : vector<16x1xf32> to vector<16x16xf32>
    %338 = vector.broadcast %336 : vector<1x16xf32> to vector<16x16xf32>
    %339 = arith.addf %337, %338 : vector<16x16xf32>
    %340 = arith.maximumf %334, %339 : vector<16x16xf32>
    %341 = vector.extract_strided_slice %307 {offsets = [0, 5], sizes = [16, 1], strides = [1, 1]} : vector<16x16xf32> to vector<16x1xf32>
    %342 = vector.extract_strided_slice %311 {offsets = [5, 0], sizes = [1, 16], strides = [1, 1]} : vector<16x16xf32> to vector<1x16xf32>
    %343 = vector.broadcast %341 : vector<16x1xf32> to vector<16x16xf32>
    %344 = vector.broadcast %342 : vector<1x16xf32> to vector<16x16xf32>
    %345 = arith.addf %343, %344 : vector<16x16xf32>
    %346 = arith.maximumf %340, %345 : vector<16x16xf32>
    %347 = vector.extract_strided_slice %307 {offsets = [0, 6], sizes = [16, 1], strides = [1, 1]} : vector<16x16xf32> to vector<16x1xf32>
    %348 = vector.extract_strided_slice %311 {offsets = [6, 0], sizes = [1, 16], strides = [1, 1]} : vector<16x16xf32> to vector<1x16xf32>
    %349 = vector.broadcast %347 : vector<16x1xf32> to vector<16x16xf32>
    %350 = vector.broadcast %348 : vector<1x16xf32> to vector<16x16xf32>
    %351 = arith.addf %349, %350 : vector<16x16xf32>
    %352 = arith.maximumf %346, %351 : vector<16x16xf32>
    %353 = vector.extract_strided_slice %307 {offsets = [0, 7], sizes = [16, 1], strides = [1, 1]} : vector<16x16xf32> to vector<16x1xf32>
    %354 = vector.extract_strided_slice %311 {offsets = [7, 0], sizes = [1, 16], strides = [1, 1]} : vector<16x16xf32> to vector<1x16xf32>
    %355 = vector.broadcast %353 : vector<16x1xf32> to vector<16x16xf32>
    %356 = vector.broadcast %354 : vector<1x16xf32> to vector<16x16xf32>
    %357 = arith.addf %355, %356 : vector<16x16xf32>
    %358 = arith.maximumf %352, %357 : vector<16x16xf32>
    %359 = vector.extract_strided_slice %307 {offsets = [0, 8], sizes = [16, 1], strides = [1, 1]} : vector<16x16xf32> to vector<16x1xf32>
    %360 = vector.extract_strided_slice %311 {offsets = [8, 0], sizes = [1, 16], strides = [1, 1]} : vector<16x16xf32> to vector<1x16xf32>
    %361 = vector.broadcast %359 : vector<16x1xf32> to vector<16x16xf32>
    %362 = vector.broadcast %360 : vector<1x16xf32> to vector<16x16xf32>
    %363 = arith.addf %361, %362 : vector<16x16xf32>
    %364 = arith.maximumf %358, %363 : vector<16x16xf32>
    %365 = vector.extract_strided_slice %307 {offsets = [0, 9], sizes = [16, 1], strides = [1, 1]} : vector<16x16xf32> to vector<16x1xf32>
    %366 = vector.extract_strided_slice %311 {offsets = [9, 0], sizes = [1, 16], strides = [1, 1]} : vector<16x16xf32> to vector<1x16xf32>
    %367 = vector.broadcast %365 : vector<16x1xf32> to vector<16x16xf32>
    %368 = vector.broadcast %366 : vector<1x16xf32> to vector<16x16xf32>
    %369 = arith.addf %367, %368 : vector<16x16xf32>
    %370 = arith.maximumf %364, %369 : vector<16x16xf32>
    %371 = vector.extract_strided_slice %307 {offsets = [0, 10], sizes = [16, 1], strides = [1, 1]} : vector<16x16xf32> to vector<16x1xf32>
    %372 = vector.extract_strided_slice %311 {offsets = [10, 0], sizes = [1, 16], strides = [1, 1]} : vector<16x16xf32> to vector<1x16xf32>
    %373 = vector.broadcast %371 : vector<16x1xf32> to vector<16x16xf32>
    %374 = vector.broadcast %372 : vector<1x16xf32> to vector<16x16xf32>
    %375 = arith.addf %373, %374 : vector<16x16xf32>
    %376 = arith.maximumf %370, %375 : vector<16x16xf32>
    %377 = vector.extract_strided_slice %307 {offsets = [0, 11], sizes = [16, 1], strides = [1, 1]} : vector<16x16xf32> to vector<16x1xf32>
    %378 = vector.extract_strided_slice %311 {offsets = [11, 0], sizes = [1, 16], strides = [1, 1]} : vector<16x16xf32> to vector<1x16xf32>
    %379 = vector.broadcast %377 : vector<16x1xf32> to vector<16x16xf32>
    %380 = vector.broadcast %378 : vector<1x16xf32> to vector<16x16xf32>
    %381 = arith.addf %379, %380 : vector<16x16xf32>
    %382 = arith.maximumf %376, %381 : vector<16x16xf32>
    %383 = vector.extract_strided_slice %307 {offsets = [0, 12], sizes = [16, 1], strides = [1, 1]} : vector<16x16xf32> to vector<16x1xf32>
    %384 = vector.extract_strided_slice %311 {offsets = [12, 0], sizes = [1, 16], strides = [1, 1]} : vector<16x16xf32> to vector<1x16xf32>
    %385 = vector.broadcast %383 : vector<16x1xf32> to vector<16x16xf32>
    %386 = vector.broadcast %384 : vector<1x16xf32> to vector<16x16xf32>
    %387 = arith.addf %385, %386 : vector<16x16xf32>
    %388 = arith.maximumf %382, %387 : vector<16x16xf32>
    %389 = vector.extract_strided_slice %307 {offsets = [0, 13], sizes = [16, 1], strides = [1, 1]} : vector<16x16xf32> to vector<16x1xf32>
    %390 = vector.extract_strided_slice %311 {offsets = [13, 0], sizes = [1, 16], strides = [1, 1]} : vector<16x16xf32> to vector<1x16xf32>
    %391 = vector.broadcast %389 : vector<16x1xf32> to vector<16x16xf32>
    %392 = vector.broadcast %390 : vector<1x16xf32> to vector<16x16xf32>
    %393 = arith.addf %391, %392 : vector<16x16xf32>
    %394 = arith.maximumf %388, %393 : vector<16x16xf32>
    %395 = vector.extract_strided_slice %307 {offsets = [0, 14], sizes = [16, 1], strides = [1, 1]} : vector<16x16xf32> to vector<16x1xf32>
    %396 = vector.extract_strided_slice %311 {offsets = [14, 0], sizes = [1, 16], strides = [1, 1]} : vector<16x16xf32> to vector<1x16xf32>
    %397 = vector.broadcast %395 : vector<16x1xf32> to vector<16x16xf32>
    %398 = vector.broadcast %396 : vector<1x16xf32> to vector<16x16xf32>
    %399 = arith.addf %397, %398 : vector<16x16xf32>
    %400 = arith.maximumf %394, %399 : vector<16x16xf32>
    %401 = vector.extract_strided_slice %307 {offsets = [0, 15], sizes = [16, 1], strides = [1, 1]} : vector<16x16xf32> to vector<16x1xf32>
    %402 = vector.extract_strided_slice %311 {offsets = [15, 0], sizes = [1, 16], strides = [1, 1]} : vector<16x16xf32> to vector<1x16xf32>
    %403 = vector.broadcast %401 : vector<16x1xf32> to vector<16x16xf32>
    %404 = vector.broadcast %402 : vector<1x16xf32> to vector<16x16xf32>
    %405 = arith.addf %403, %404 : vector<16x16xf32>
    %406 = arith.maximumf %400, %405 : vector<16x16xf32>
    %c0_31 = arith.constant 0 : index
    %c1_32 = arith.constant 1 : index
    %c0_33 = arith.constant 0 : index
    %c0_34 = arith.constant 0 : index
    %407 = vector.load %arg3[%c0_31, %c1_32, %c0_33, %c0_34] : memref<1x4x16x16xf32, #tpu.memory_space<vmem>>, vector<1x1x16x16xf32>
    %408 = vector.shape_cast %407 : vector<1x1x16x16xf32> to vector<16x16xf32>
    %409 = vector.shape_cast %406 : vector<16x16xf32> to vector<1x1x16x16xf32>
    tpu.vector_store %arg3[%c0_31, %c1_32, %c0_33, %c0_34], %409 {strides = array<i32>} : memref<1x4x16x16xf32, #tpu.memory_space<vmem>>, vector<1x1x16x16xf32>,
    %c2_35 = arith.constant 2 : index
    %c0_36 = arith.constant 0 : index
    %410 = memref.load %arg1[%c2_35, %c0_36] : memref<4x3xi32, #tpu.memory_space<smem>>
    %c0_37 = arith.constant 0 : index
    %411 = arith.index_cast %410 : i32 to index
    %c0_38 = arith.constant 0 : index
    %c0_39 = arith.constant 0 : index
    %412 = vector.load %arg2[%c0_37, %411, %c0_38, %c0_39] : memref<1x5x16x16xf32, #tpu.memory_space<vmem>>, vector<1x1x16x16xf32>
    %413 = vector.shape_cast %412 : vector<1x1x16x16xf32> to vector<16x16xf32>
    %c2_40 = arith.constant 2 : index
    %c1_41 = arith.constant 1 : index
    %414 = memref.load %arg1[%c2_40, %c1_41] : memref<4x3xi32, #tpu.memory_space<smem>>
    %c0_42 = arith.constant 0 : index
    %415 = arith.index_cast %414 : i32 to index
    %c0_43 = arith.constant 0 : index
    %c0_44 = arith.constant 0 : index
    %416 = vector.load %arg2[%c0_42, %415, %c0_43, %c0_44] : memref<1x5x16x16xf32, #tpu.memory_space<vmem>>, vector<1x1x16x16xf32>
    %417 = vector.shape_cast %416 : vector<1x1x16x16xf32> to vector<16x16xf32>
    %418 = vector.extract_strided_slice %413 {offsets = [0, 0], sizes = [16, 1], strides = [1, 1]} : vector<16x16xf32> to vector<16x1xf32>
    %419 = vector.extract_strided_slice %417 {offsets = [0, 0], sizes = [1, 16], strides = [1, 1]} : vector<16x16xf32> to vector<1x16xf32>
    %420 = vector.broadcast %418 : vector<16x1xf32> to vector<16x16xf32>
    %421 = vector.broadcast %419 : vector<1x16xf32> to vector<16x16xf32>
    %422 = arith.addf %420, %421 : vector<16x16xf32>
    %423 = vector.extract_strided_slice %413 {offsets = [0, 1], sizes = [16, 1], strides = [1, 1]} : vector<16x16xf32> to vector<16x1xf32>
    %424 = vector.extract_strided_slice %417 {offsets = [1, 0], sizes = [1, 16], strides = [1, 1]} : vector<16x16xf32> to vector<1x16xf32>
    %425 = vector.broadcast %423 : vector<16x1xf32> to vector<16x16xf32>
    %426 = vector.broadcast %424 : vector<1x16xf32> to vector<16x16xf32>
    %427 = arith.addf %425, %426 : vector<16x16xf32>
    %428 = arith.maximumf %422, %427 : vector<16x16xf32>
    %429 = vector.extract_strided_slice %413 {offsets = [0, 2], sizes = [16, 1], strides = [1, 1]} : vector<16x16xf32> to vector<16x1xf32>
    %430 = vector.extract_strided_slice %417 {offsets = [2, 0], sizes = [1, 16], strides = [1, 1]} : vector<16x16xf32> to vector<1x16xf32>
    %431 = vector.broadcast %429 : vector<16x1xf32> to vector<16x16xf32>
    %432 = vector.broadcast %430 : vector<1x16xf32> to vector<16x16xf32>
    %433 = arith.addf %431, %432 : vector<16x16xf32>
    %434 = arith.maximumf %428, %433 : vector<16x16xf32>
    %435 = vector.extract_strided_slice %413 {offsets = [0, 3], sizes = [16, 1], strides = [1, 1]} : vector<16x16xf32> to vector<16x1xf32>
    %436 = vector.extract_strided_slice %417 {offsets = [3, 0], sizes = [1, 16], strides = [1, 1]} : vector<16x16xf32> to vector<1x16xf32>
    %437 = vector.broadcast %435 : vector<16x1xf32> to vector<16x16xf32>
    %438 = vector.broadcast %436 : vector<1x16xf32> to vector<16x16xf32>
    %439 = arith.addf %437, %438 : vector<16x16xf32>
    %440 = arith.maximumf %434, %439 : vector<16x16xf32>
    %441 = vector.extract_strided_slice %413 {offsets = [0, 4], sizes = [16, 1], strides = [1, 1]} : vector<16x16xf32> to vector<16x1xf32>
    %442 = vector.extract_strided_slice %417 {offsets = [4, 0], sizes = [1, 16], strides = [1, 1]} : vector<16x16xf32> to vector<1x16xf32>
    %443 = vector.broadcast %441 : vector<16x1xf32> to vector<16x16xf32>
    %444 = vector.broadcast %442 : vector<1x16xf32> to vector<16x16xf32>
    %445 = arith.addf %443, %444 : vector<16x16xf32>
    %446 = arith.maximumf %440, %445 : vector<16x16xf32>
    %447 = vector.extract_strided_slice %413 {offsets = [0, 5], sizes = [16, 1], strides = [1, 1]} : vector<16x16xf32> to vector<16x1xf32>
    %448 = vector.extract_strided_slice %417 {offsets = [5, 0], sizes = [1, 16], strides = [1, 1]} : vector<16x16xf32> to vector<1x16xf32>
    %449 = vector.broadcast %447 : vector<16x1xf32> to vector<16x16xf32>
    %450 = vector.broadcast %448 : vector<1x16xf32> to vector<16x16xf32>
    %451 = arith.addf %449, %450 : vector<16x16xf32>
    %452 = arith.maximumf %446, %451 : vector<16x16xf32>
    %453 = vector.extract_strided_slice %413 {offsets = [0, 6], sizes = [16, 1], strides = [1, 1]} : vector<16x16xf32> to vector<16x1xf32>
    %454 = vector.extract_strided_slice %417 {offsets = [6, 0], sizes = [1, 16], strides = [1, 1]} : vector<16x16xf32> to vector<1x16xf32>
    %455 = vector.broadcast %453 : vector<16x1xf32> to vector<16x16xf32>
    %456 = vector.broadcast %454 : vector<1x16xf32> to vector<16x16xf32>
    %457 = arith.addf %455, %456 : vector<16x16xf32>
    %458 = arith.maximumf %452, %457 : vector<16x16xf32>
    %459 = vector.extract_strided_slice %413 {offsets = [0, 7], sizes = [16, 1], strides = [1, 1]} : vector<16x16xf32> to vector<16x1xf32>
    %460 = vector.extract_strided_slice %417 {offsets = [7, 0], sizes = [1, 16], strides = [1, 1]} : vector<16x16xf32> to vector<1x16xf32>
    %461 = vector.broadcast %459 : vector<16x1xf32> to vector<16x16xf32>
    %462 = vector.broadcast %460 : vector<1x16xf32> to vector<16x16xf32>
    %463 = arith.addf %461, %462 : vector<16x16xf32>
    %464 = arith.maximumf %458, %463 : vector<16x16xf32>
    %465 = vector.extract_strided_slice %413 {offsets = [0, 8], sizes = [16, 1], strides = [1, 1]} : vector<16x16xf32> to vector<16x1xf32>
    %466 = vector.extract_strided_slice %417 {offsets = [8, 0], sizes = [1, 16], strides = [1, 1]} : vector<16x16xf32> to vector<1x16xf32>
    %467 = vector.broadcast %465 : vector<16x1xf32> to vector<16x16xf32>
    %468 = vector.broadcast %466 : vector<1x16xf32> to vector<16x16xf32>
    %469 = arith.addf %467, %468 : vector<16x16xf32>
    %470 = arith.maximumf %464, %469 : vector<16x16xf32>
    %471 = vector.extract_strided_slice %413 {offsets = [0, 9], sizes = [16, 1], strides = [1, 1]} : vector<16x16xf32> to vector<16x1xf32>
    %472 = vector.extract_strided_slice %417 {offsets = [9, 0], sizes = [1, 16], strides = [1, 1]} : vector<16x16xf32> to vector<1x16xf32>
    %473 = vector.broadcast %471 : vector<16x1xf32> to vector<16x16xf32>
    %474 = vector.broadcast %472 : vector<1x16xf32> to vector<16x16xf32>
    %475 = arith.addf %473, %474 : vector<16x16xf32>
    %476 = arith.maximumf %470, %475 : vector<16x16xf32>
    %477 = vector.extract_strided_slice %413 {offsets = [0, 10], sizes = [16, 1], strides = [1, 1]} : vector<16x16xf32> to vector<16x1xf32>
    %478 = vector.extract_strided_slice %417 {offsets = [10, 0], sizes = [1, 16], strides = [1, 1]} : vector<16x16xf32> to vector<1x16xf32>
    %479 = vector.broadcast %477 : vector<16x1xf32> to vector<16x16xf32>
    %480 = vector.broadcast %478 : vector<1x16xf32> to vector<16x16xf32>
    %481 = arith.addf %479, %480 : vector<16x16xf32>
    %482 = arith.maximumf %476, %481 : vector<16x16xf32>
    %483 = vector.extract_strided_slice %413 {offsets = [0, 11], sizes = [16, 1], strides = [1, 1]} : vector<16x16xf32> to vector<16x1xf32>
    %484 = vector.extract_strided_slice %417 {offsets = [11, 0], sizes = [1, 16], strides = [1, 1]} : vector<16x16xf32> to vector<1x16xf32>
    %485 = vector.broadcast %483 : vector<16x1xf32> to vector<16x16xf32>
    %486 = vector.broadcast %484 : vector<1x16xf32> to vector<16x16xf32>
    %487 = arith.addf %485, %486 : vector<16x16xf32>
    %488 = arith.maximumf %482, %487 : vector<16x16xf32>
    %489 = vector.extract_strided_slice %413 {offsets = [0, 12], sizes = [16, 1], strides = [1, 1]} : vector<16x16xf32> to vector<16x1xf32>
    %490 = vector.extract_strided_slice %417 {offsets = [12, 0], sizes = [1, 16], strides = [1, 1]} : vector<16x16xf32> to vector<1x16xf32>
    %491 = vector.broadcast %489 : vector<16x1xf32> to vector<16x16xf32>
    %492 = vector.broadcast %490 : vector<1x16xf32> to vector<16x16xf32>
    %493 = arith.addf %491, %492 : vector<16x16xf32>
    %494 = arith.maximumf %488, %493 : vector<16x16xf32>
    %495 = vector.extract_strided_slice %413 {offsets = [0, 13], sizes = [16, 1], strides = [1, 1]} : vector<16x16xf32> to vector<16x1xf32>
    %496 = vector.extract_strided_slice %417 {offsets = [13, 0], sizes = [1, 16], strides = [1, 1]} : vector<16x16xf32> to vector<1x16xf32>
    %497 = vector.broadcast %495 : vector<16x1xf32> to vector<16x16xf32>
    %498 = vector.broadcast %496 : vector<1x16xf32> to vector<16x16xf32>
    %499 = arith.addf %497, %498 : vector<16x16xf32>
    %500 = arith.maximumf %494, %499 : vector<16x16xf32>
    %501 = vector.extract_strided_slice %413 {offsets = [0, 14], sizes = [16, 1], strides = [1, 1]} : vector<16x16xf32> to vector<16x1xf32>
    %502 = vector.extract_strided_slice %417 {offsets = [14, 0], sizes = [1, 16], strides = [1, 1]} : vector<16x16xf32> to vector<1x16xf32>
    %503 = vector.broadcast %501 : vector<16x1xf32> to vector<16x16xf32>
    %504 = vector.broadcast %502 : vector<1x16xf32> to vector<16x16xf32>
    %505 = arith.addf %503, %504 : vector<16x16xf32>
    %506 = arith.maximumf %500, %505 : vector<16x16xf32>
    %507 = vector.extract_strided_slice %413 {offsets = [0, 15], sizes = [16, 1], strides = [1, 1]} : vector<16x16xf32> to vector<16x1xf32>
    %508 = vector.extract_strided_slice %417 {offsets = [15, 0], sizes = [1, 16], strides = [1, 1]} : vector<16x16xf32> to vector<1x16xf32>
    %509 = vector.broadcast %507 : vector<16x1xf32> to vector<16x16xf32>
    %510 = vector.broadcast %508 : vector<1x16xf32> to vector<16x16xf32>
    %511 = arith.addf %509, %510 : vector<16x16xf32>
    %512 = arith.maximumf %506, %511 : vector<16x16xf32>
    %c2_45 = arith.constant 2 : index
    %c2_46 = arith.constant 2 : index
    %513 = memref.load %arg1[%c2_45, %c2_46] : memref<4x3xi32, #tpu.memory_space<smem>>
    %c0_47 = arith.constant 0 : index
    %514 = arith.index_cast %513 : i32 to index
    %c0_48 = arith.constant 0 : index
    %c0_49 = arith.constant 0 : index
    %515 = vector.load %arg2[%c0_47, %514, %c0_48, %c0_49] : memref<1x5x16x16xf32, #tpu.memory_space<vmem>>, vector<1x1x16x16xf32>
    %516 = vector.shape_cast %515 : vector<1x1x16x16xf32> to vector<16x16xf32>
    %517 = vector.extract_strided_slice %512 {offsets = [0, 0], sizes = [16, 1], strides = [1, 1]} : vector<16x16xf32> to vector<16x1xf32>
    %518 = vector.extract_strided_slice %516 {offsets = [0, 0], sizes = [1, 16], strides = [1, 1]} : vector<16x16xf32> to vector<1x16xf32>
    %519 = vector.broadcast %517 : vector<16x1xf32> to vector<16x16xf32>
    %520 = vector.broadcast %518 : vector<1x16xf32> to vector<16x16xf32>
    %521 = arith.addf %519, %520 : vector<16x16xf32>
    %522 = vector.extract_strided_slice %512 {offsets = [0, 1], sizes = [16, 1], strides = [1, 1]} : vector<16x16xf32> to vector<16x1xf32>
    %523 = vector.extract_strided_slice %516 {offsets = [1, 0], sizes = [1, 16], strides = [1, 1]} : vector<16x16xf32> to vector<1x16xf32>
    %524 = vector.broadcast %522 : vector<16x1xf32> to vector<16x16xf32>
    %525 = vector.broadcast %523 : vector<1x16xf32> to vector<16x16xf32>
    %526 = arith.addf %524, %525 : vector<16x16xf32>
    %527 = arith.maximumf %521, %526 : vector<16x16xf32>
    %528 = vector.extract_strided_slice %512 {offsets = [0, 2], sizes = [16, 1], strides = [1, 1]} : vector<16x16xf32> to vector<16x1xf32>
    %529 = vector.extract_strided_slice %516 {offsets = [2, 0], sizes = [1, 16], strides = [1, 1]} : vector<16x16xf32> to vector<1x16xf32>
    %530 = vector.broadcast %528 : vector<16x1xf32> to vector<16x16xf32>
    %531 = vector.broadcast %529 : vector<1x16xf32> to vector<16x16xf32>
    %532 = arith.addf %530, %531 : vector<16x16xf32>
    %533 = arith.maximumf %527, %532 : vector<16x16xf32>
    %534 = vector.extract_strided_slice %512 {offsets = [0, 3], sizes = [16, 1], strides = [1, 1]} : vector<16x16xf32> to vector<16x1xf32>
    %535 = vector.extract_strided_slice %516 {offsets = [3, 0], sizes = [1, 16], strides = [1, 1]} : vector<16x16xf32> to vector<1x16xf32>
    %536 = vector.broadcast %534 : vector<16x1xf32> to vector<16x16xf32>
    %537 = vector.broadcast %535 : vector<1x16xf32> to vector<16x16xf32>
    %538 = arith.addf %536, %537 : vector<16x16xf32>
    %539 = arith.maximumf %533, %538 : vector<16x16xf32>
    %540 = vector.extract_strided_slice %512 {offsets = [0, 4], sizes = [16, 1], strides = [1, 1]} : vector<16x16xf32> to vector<16x1xf32>
    %541 = vector.extract_strided_slice %516 {offsets = [4, 0], sizes = [1, 16], strides = [1, 1]} : vector<16x16xf32> to vector<1x16xf32>
    %542 = vector.broadcast %540 : vector<16x1xf32> to vector<16x16xf32>
    %543 = vector.broadcast %541 : vector<1x16xf32> to vector<16x16xf32>
    %544 = arith.addf %542, %543 : vector<16x16xf32>
    %545 = arith.maximumf %539, %544 : vector<16x16xf32>
    %546 = vector.extract_strided_slice %512 {offsets = [0, 5], sizes = [16, 1], strides = [1, 1]} : vector<16x16xf32> to vector<16x1xf32>
    %547 = vector.extract_strided_slice %516 {offsets = [5, 0], sizes = [1, 16], strides = [1, 1]} : vector<16x16xf32> to vector<1x16xf32>
    %548 = vector.broadcast %546 : vector<16x1xf32> to vector<16x16xf32>
    %549 = vector.broadcast %547 : vector<1x16xf32> to vector<16x16xf32>
    %550 = arith.addf %548, %549 : vector<16x16xf32>
    %551 = arith.maximumf %545, %550 : vector<16x16xf32>
    %552 = vector.extract_strided_slice %512 {offsets = [0, 6], sizes = [16, 1], strides = [1, 1]} : vector<16x16xf32> to vector<16x1xf32>
    %553 = vector.extract_strided_slice %516 {offsets = [6, 0], sizes = [1, 16], strides = [1, 1]} : vector<16x16xf32> to vector<1x16xf32>
    %554 = vector.broadcast %552 : vector<16x1xf32> to vector<16x16xf32>
    %555 = vector.broadcast %553 : vector<1x16xf32> to vector<16x16xf32>
    %556 = arith.addf %554, %555 : vector<16x16xf32>
    %557 = arith.maximumf %551, %556 : vector<16x16xf32>
    %558 = vector.extract_strided_slice %512 {offsets = [0, 7], sizes = [16, 1], strides = [1, 1]} : vector<16x16xf32> to vector<16x1xf32>
    %559 = vector.extract_strided_slice %516 {offsets = [7, 0], sizes = [1, 16], strides = [1, 1]} : vector<16x16xf32> to vector<1x16xf32>
    %560 = vector.broadcast %558 : vector<16x1xf32> to vector<16x16xf32>
    %561 = vector.broadcast %559 : vector<1x16xf32> to vector<16x16xf32>
    %562 = arith.addf %560, %561 : vector<16x16xf32>
    %563 = arith.maximumf %557, %562 : vector<16x16xf32>
    %564 = vector.extract_strided_slice %512 {offsets = [0, 8], sizes = [16, 1], strides = [1, 1]} : vector<16x16xf32> to vector<16x1xf32>
    %565 = vector.extract_strided_slice %516 {offsets = [8, 0], sizes = [1, 16], strides = [1, 1]} : vector<16x16xf32> to vector<1x16xf32>
    %566 = vector.broadcast %564 : vector<16x1xf32> to vector<16x16xf32>
    %567 = vector.broadcast %565 : vector<1x16xf32> to vector<16x16xf32>
    %568 = arith.addf %566, %567 : vector<16x16xf32>
    %569 = arith.maximumf %563, %568 : vector<16x16xf32>
    %570 = vector.extract_strided_slice %512 {offsets = [0, 9], sizes = [16, 1], strides = [1, 1]} : vector<16x16xf32> to vector<16x1xf32>
    %571 = vector.extract_strided_slice %516 {offsets = [9, 0], sizes = [1, 16], strides = [1, 1]} : vector<16x16xf32> to vector<1x16xf32>
    %572 = vector.broadcast %570 : vector<16x1xf32> to vector<16x16xf32>
    %573 = vector.broadcast %571 : vector<1x16xf32> to vector<16x16xf32>
    %574 = arith.addf %572, %573 : vector<16x16xf32>
    %575 = arith.maximumf %569, %574 : vector<16x16xf32>
    %576 = vector.extract_strided_slice %512 {offsets = [0, 10], sizes = [16, 1], strides = [1, 1]} : vector<16x16xf32> to vector<16x1xf32>
    %577 = vector.extract_strided_slice %516 {offsets = [10, 0], sizes = [1, 16], strides = [1, 1]} : vector<16x16xf32> to vector<1x16xf32>
    %578 = vector.broadcast %576 : vector<16x1xf32> to vector<16x16xf32>
    %579 = vector.broadcast %577 : vector<1x16xf32> to vector<16x16xf32>
    %580 = arith.addf %578, %579 : vector<16x16xf32>
    %581 = arith.maximumf %575, %580 : vector<16x16xf32>
    %582 = vector.extract_strided_slice %512 {offsets = [0, 11], sizes = [16, 1], strides = [1, 1]} : vector<16x16xf32> to vector<16x1xf32>
    %583 = vector.extract_strided_slice %516 {offsets = [11, 0], sizes = [1, 16], strides = [1, 1]} : vector<16x16xf32> to vector<1x16xf32>
    %584 = vector.broadcast %582 : vector<16x1xf32> to vector<16x16xf32>
    %585 = vector.broadcast %583 : vector<1x16xf32> to vector<16x16xf32>
    %586 = arith.addf %584, %585 : vector<16x16xf32>
    %587 = arith.maximumf %581, %586 : vector<16x16xf32>
    %588 = vector.extract_strided_slice %512 {offsets = [0, 12], sizes = [16, 1], strides = [1, 1]} : vector<16x16xf32> to vector<16x1xf32>
    %589 = vector.extract_strided_slice %516 {offsets = [12, 0], sizes = [1, 16], strides = [1, 1]} : vector<16x16xf32> to vector<1x16xf32>
    %590 = vector.broadcast %588 : vector<16x1xf32> to vector<16x16xf32>
    %591 = vector.broadcast %589 : vector<1x16xf32> to vector<16x16xf32>
    %592 = arith.addf %590, %591 : vector<16x16xf32>
    %593 = arith.maximumf %587, %592 : vector<16x16xf32>
    %594 = vector.extract_strided_slice %512 {offsets = [0, 13], sizes = [16, 1], strides = [1, 1]} : vector<16x16xf32> to vector<16x1xf32>
    %595 = vector.extract_strided_slice %516 {offsets = [13, 0], sizes = [1, 16], strides = [1, 1]} : vector<16x16xf32> to vector<1x16xf32>
    %596 = vector.broadcast %594 : vector<16x1xf32> to vector<16x16xf32>
    %597 = vector.broadcast %595 : vector<1x16xf32> to vector<16x16xf32>
    %598 = arith.addf %596, %597 : vector<16x16xf32>
    %599 = arith.maximumf %593, %598 : vector<16x16xf32>
    %600 = vector.extract_strided_slice %512 {offsets = [0, 14], sizes = [16, 1], strides = [1, 1]} : vector<16x16xf32> to vector<16x1xf32>
    %601 = vector.extract_strided_slice %516 {offsets = [14, 0], sizes = [1, 16], strides = [1, 1]} : vector<16x16xf32> to vector<1x16xf32>
    %602 = vector.broadcast %600 : vector<16x1xf32> to vector<16x16xf32>
    %603 = vector.broadcast %601 : vector<1x16xf32> to vector<16x16xf32>
    %604 = arith.addf %602, %603 : vector<16x16xf32>
    %605 = arith.maximumf %599, %604 : vector<16x16xf32>
    %606 = vector.extract_strided_slice %512 {offsets = [0, 15], sizes = [16, 1], strides = [1, 1]} : vector<16x16xf32> to vector<16x1xf32>
    %607 = vector.extract_strided_slice %516 {offsets = [15, 0], sizes = [1, 16], strides = [1, 1]} : vector<16x16xf32> to vector<1x16xf32>
    %608 = vector.broadcast %606 : vector<16x1xf32> to vector<16x16xf32>
    %609 = vector.broadcast %607 : vector<1x16xf32> to vector<16x16xf32>
    %610 = arith.addf %608, %609 : vector<16x16xf32>
    %611 = arith.maximumf %605, %610 : vector<16x16xf32>
    %c0_50 = arith.constant 0 : index
    %c2_51 = arith.constant 2 : index
    %c0_52 = arith.constant 0 : index
    %c0_53 = arith.constant 0 : index
    %612 = vector.load %arg3[%c0_50, %c2_51, %c0_52, %c0_53] : memref<1x4x16x16xf32, #tpu.memory_space<vmem>>, vector<1x1x16x16xf32>
    %613 = vector.shape_cast %612 : vector<1x1x16x16xf32> to vector<16x16xf32>
    %614 = vector.shape_cast %611 : vector<16x16xf32> to vector<1x1x16x16xf32>
    tpu.vector_store %arg3[%c0_50, %c2_51, %c0_52, %c0_53], %614 {strides = array<i32>} : memref<1x4x16x16xf32, #tpu.memory_space<vmem>>, vector<1x1x16x16xf32>,
    %c3 = arith.constant 3 : index
    %c0_54 = arith.constant 0 : index
    %615 = memref.load %arg1[%c3, %c0_54] : memref<4x3xi32, #tpu.memory_space<smem>>
    %c0_55 = arith.constant 0 : index
    %616 = arith.index_cast %615 : i32 to index
    %c0_56 = arith.constant 0 : index
    %c0_57 = arith.constant 0 : index
    %617 = vector.load %arg2[%c0_55, %616, %c0_56, %c0_57] : memref<1x5x16x16xf32, #tpu.memory_space<vmem>>, vector<1x1x16x16xf32>
    %618 = vector.shape_cast %617 : vector<1x1x16x16xf32> to vector<16x16xf32>
    %c3_58 = arith.constant 3 : index
    %c1_59 = arith.constant 1 : index
    %619 = memref.load %arg1[%c3_58, %c1_59] : memref<4x3xi32, #tpu.memory_space<smem>>
    %c0_60 = arith.constant 0 : index
    %620 = arith.index_cast %619 : i32 to index
    %c0_61 = arith.constant 0 : index
    %c0_62 = arith.constant 0 : index
    %621 = vector.load %arg2[%c0_60, %620, %c0_61, %c0_62] : memref<1x5x16x16xf32, #tpu.memory_space<vmem>>, vector<1x1x16x16xf32>
    %622 = vector.shape_cast %621 : vector<1x1x16x16xf32> to vector<16x16xf32>
    %623 = vector.extract_strided_slice %618 {offsets = [0, 0], sizes = [16, 1], strides = [1, 1]} : vector<16x16xf32> to vector<16x1xf32>
    %624 = vector.extract_strided_slice %622 {offsets = [0, 0], sizes = [1, 16], strides = [1, 1]} : vector<16x16xf32> to vector<1x16xf32>
    %625 = vector.broadcast %623 : vector<16x1xf32> to vector<16x16xf32>
    %626 = vector.broadcast %624 : vector<1x16xf32> to vector<16x16xf32>
    %627 = arith.addf %625, %626 : vector<16x16xf32>
    %628 = vector.extract_strided_slice %618 {offsets = [0, 1], sizes = [16, 1], strides = [1, 1]} : vector<16x16xf32> to vector<16x1xf32>
    %629 = vector.extract_strided_slice %622 {offsets = [1, 0], sizes = [1, 16], strides = [1, 1]} : vector<16x16xf32> to vector<1x16xf32>
    %630 = vector.broadcast %628 : vector<16x1xf32> to vector<16x16xf32>
    %631 = vector.broadcast %629 : vector<1x16xf32> to vector<16x16xf32>
    %632 = arith.addf %630, %631 : vector<16x16xf32>
    %633 = arith.maximumf %627, %632 : vector<16x16xf32>
    %634 = vector.extract_strided_slice %618 {offsets = [0, 2], sizes = [16, 1], strides = [1, 1]} : vector<16x16xf32> to vector<16x1xf32>
    %635 = vector.extract_strided_slice %622 {offsets = [2, 0], sizes = [1, 16], strides = [1, 1]} : vector<16x16xf32> to vector<1x16xf32>
    %636 = vector.broadcast %634 : vector<16x1xf32> to vector<16x16xf32>
    %637 = vector.broadcast %635 : vector<1x16xf32> to vector<16x16xf32>
    %638 = arith.addf %636, %637 : vector<16x16xf32>
    %639 = arith.maximumf %633, %638 : vector<16x16xf32>
    %640 = vector.extract_strided_slice %618 {offsets = [0, 3], sizes = [16, 1], strides = [1, 1]} : vector<16x16xf32> to vector<16x1xf32>
    %641 = vector.extract_strided_slice %622 {offsets = [3, 0], sizes = [1, 16], strides = [1, 1]} : vector<16x16xf32> to vector<1x16xf32>
    %642 = vector.broadcast %640 : vector<16x1xf32> to vector<16x16xf32>
    %643 = vector.broadcast %641 : vector<1x16xf32> to vector<16x16xf32>
    %644 = arith.addf %642, %643 : vector<16x16xf32>
    %645 = arith.maximumf %639, %644 : vector<16x16xf32>
    %646 = vector.extract_strided_slice %618 {offsets = [0, 4], sizes = [16, 1], strides = [1, 1]} : vector<16x16xf32> to vector<16x1xf32>
    %647 = vector.extract_strided_slice %622 {offsets = [4, 0], sizes = [1, 16], strides = [1, 1]} : vector<16x16xf32> to vector<1x16xf32>
    %648 = vector.broadcast %646 : vector<16x1xf32> to vector<16x16xf32>
    %649 = vector.broadcast %647 : vector<1x16xf32> to vector<16x16xf32>
    %650 = arith.addf %648, %649 : vector<16x16xf32>
    %651 = arith.maximumf %645, %650 : vector<16x16xf32>
    %652 = vector.extract_strided_slice %618 {offsets = [0, 5], sizes = [16, 1], strides = [1, 1]} : vector<16x16xf32> to vector<16x1xf32>
    %653 = vector.extract_strided_slice %622 {offsets = [5, 0], sizes = [1, 16], strides = [1, 1]} : vector<16x16xf32> to vector<1x16xf32>
    %654 = vector.broadcast %652 : vector<16x1xf32> to vector<16x16xf32>
    %655 = vector.broadcast %653 : vector<1x16xf32> to vector<16x16xf32>
    %656 = arith.addf %654, %655 : vector<16x16xf32>
    %657 = arith.maximumf %651, %656 : vector<16x16xf32>
    %658 = vector.extract_strided_slice %618 {offsets = [0, 6], sizes = [16, 1], strides = [1, 1]} : vector<16x16xf32> to vector<16x1xf32>
    %659 = vector.extract_strided_slice %622 {offsets = [6, 0], sizes = [1, 16], strides = [1, 1]} : vector<16x16xf32> to vector<1x16xf32>
    %660 = vector.broadcast %658 : vector<16x1xf32> to vector<16x16xf32>
    %661 = vector.broadcast %659 : vector<1x16xf32> to vector<16x16xf32>
    %662 = arith.addf %660, %661 : vector<16x16xf32>
    %663 = arith.maximumf %657, %662 : vector<16x16xf32>
    %664 = vector.extract_strided_slice %618 {offsets = [0, 7], sizes = [16, 1], strides = [1, 1]} : vector<16x16xf32> to vector<16x1xf32>
    %665 = vector.extract_strided_slice %622 {offsets = [7, 0], sizes = [1, 16], strides = [1, 1]} : vector<16x16xf32> to vector<1x16xf32>
    %666 = vector.broadcast %664 : vector<16x1xf32> to vector<16x16xf32>
    %667 = vector.broadcast %665 : vector<1x16xf32> to vector<16x16xf32>
    %668 = arith.addf %666, %667 : vector<16x16xf32>
    %669 = arith.maximumf %663, %668 : vector<16x16xf32>
    %670 = vector.extract_strided_slice %618 {offsets = [0, 8], sizes = [16, 1], strides = [1, 1]} : vector<16x16xf32> to vector<16x1xf32>
    %671 = vector.extract_strided_slice %622 {offsets = [8, 0], sizes = [1, 16], strides = [1, 1]} : vector<16x16xf32> to vector<1x16xf32>
    %672 = vector.broadcast %670 : vector<16x1xf32> to vector<16x16xf32>
    %673 = vector.broadcast %671 : vector<1x16xf32> to vector<16x16xf32>
    %674 = arith.addf %672, %673 : vector<16x16xf32>
    %675 = arith.maximumf %669, %674 : vector<16x16xf32>
    %676 = vector.extract_strided_slice %618 {offsets = [0, 9], sizes = [16, 1], strides = [1, 1]} : vector<16x16xf32> to vector<16x1xf32>
    %677 = vector.extract_strided_slice %622 {offsets = [9, 0], sizes = [1, 16], strides = [1, 1]} : vector<16x16xf32> to vector<1x16xf32>
    %678 = vector.broadcast %676 : vector<16x1xf32> to vector<16x16xf32>
    %679 = vector.broadcast %677 : vector<1x16xf32> to vector<16x16xf32>
    %680 = arith.addf %678, %679 : vector<16x16xf32>
    %681 = arith.maximumf %675, %680 : vector<16x16xf32>
    %682 = vector.extract_strided_slice %618 {offsets = [0, 10], sizes = [16, 1], strides = [1, 1]} : vector<16x16xf32> to vector<16x1xf32>
    %683 = vector.extract_strided_slice %622 {offsets = [10, 0], sizes = [1, 16], strides = [1, 1]} : vector<16x16xf32> to vector<1x16xf32>
    %684 = vector.broadcast %682 : vector<16x1xf32> to vector<16x16xf32>
    %685 = vector.broadcast %683 : vector<1x16xf32> to vector<16x16xf32>
    %686 = arith.addf %684, %685 : vector<16x16xf32>
    %687 = arith.maximumf %681, %686 : vector<16x16xf32>
    %688 = vector.extract_strided_slice %618 {offsets = [0, 11], sizes = [16, 1], strides = [1, 1]} : vector<16x16xf32> to vector<16x1xf32>
    %689 = vector.extract_strided_slice %622 {offsets = [11, 0], sizes = [1, 16], strides = [1, 1]} : vector<16x16xf32> to vector<1x16xf32>
    %690 = vector.broadcast %688 : vector<16x1xf32> to vector<16x16xf32>
    %691 = vector.broadcast %689 : vector<1x16xf32> to vector<16x16xf32>
    %692 = arith.addf %690, %691 : vector<16x16xf32>
    %693 = arith.maximumf %687, %692 : vector<16x16xf32>
    %694 = vector.extract_strided_slice %618 {offsets = [0, 12], sizes = [16, 1], strides = [1, 1]} : vector<16x16xf32> to vector<16x1xf32>
    %695 = vector.extract_strided_slice %622 {offsets = [12, 0], sizes = [1, 16], strides = [1, 1]} : vector<16x16xf32> to vector<1x16xf32>
    %696 = vector.broadcast %694 : vector<16x1xf32> to vector<16x16xf32>
    %697 = vector.broadcast %695 : vector<1x16xf32> to vector<16x16xf32>
    %698 = arith.addf %696, %697 : vector<16x16xf32>
    %699 = arith.maximumf %693, %698 : vector<16x16xf32>
    %700 = vector.extract_strided_slice %618 {offsets = [0, 13], sizes = [16, 1], strides = [1, 1]} : vector<16x16xf32> to vector<16x1xf32>
    %701 = vector.extract_strided_slice %622 {offsets = [13, 0], sizes = [1, 16], strides = [1, 1]} : vector<16x16xf32> to vector<1x16xf32>
    %702 = vector.broadcast %700 : vector<16x1xf32> to vector<16x16xf32>
    %703 = vector.broadcast %701 : vector<1x16xf32> to vector<16x16xf32>
    %704 = arith.addf %702, %703 : vector<16x16xf32>
    %705 = arith.maximumf %699, %704 : vector<16x16xf32>
    %706 = vector.extract_strided_slice %618 {offsets = [0, 14], sizes = [16, 1], strides = [1, 1]} : vector<16x16xf32> to vector<16x1xf32>
    %707 = vector.extract_strided_slice %622 {offsets = [14, 0], sizes = [1, 16], strides = [1, 1]} : vector<16x16xf32> to vector<1x16xf32>
    %708 = vector.broadcast %706 : vector<16x1xf32> to vector<16x16xf32>
    %709 = vector.broadcast %707 : vector<1x16xf32> to vector<16x16xf32>
    %710 = arith.addf %708, %709 : vector<16x16xf32>
    %711 = arith.maximumf %705, %710 : vector<16x16xf32>
    %712 = vector.extract_strided_slice %618 {offsets = [0, 15], sizes = [16, 1], strides = [1, 1]} : vector<16x16xf32> to vector<16x1xf32>
    %713 = vector.extract_strided_slice %622 {offsets = [15, 0], sizes = [1, 16], strides = [1, 1]} : vector<16x16xf32> to vector<1x16xf32>
    %714 = vector.broadcast %712 : vector<16x1xf32> to vector<16x16xf32>
    %715 = vector.broadcast %713 : vector<1x16xf32> to vector<16x16xf32>
    %716 = arith.addf %714, %715 : vector<16x16xf32>
    %717 = arith.maximumf %711, %716 : vector<16x16xf32>
    %c3_63 = arith.constant 3 : index
    %c2_64 = arith.constant 2 : index
    %718 = memref.load %arg1[%c3_63, %c2_64] : memref<4x3xi32, #tpu.memory_space<smem>>
    %c0_65 = arith.constant 0 : index
    %719 = arith.index_cast %718 : i32 to index
    %c0_66 = arith.constant 0 : index
    %c0_67 = arith.constant 0 : index
    %720 = vector.load %arg2[%c0_65, %719, %c0_66, %c0_67] : memref<1x5x16x16xf32, #tpu.memory_space<vmem>>, vector<1x1x16x16xf32>
    %721 = vector.shape_cast %720 : vector<1x1x16x16xf32> to vector<16x16xf32>
    %722 = vector.extract_strided_slice %717 {offsets = [0, 0], sizes = [16, 1], strides = [1, 1]} : vector<16x16xf32> to vector<16x1xf32>
    %723 = vector.extract_strided_slice %721 {offsets = [0, 0], sizes = [1, 16], strides = [1, 1]} : vector<16x16xf32> to vector<1x16xf32>
    %724 = vector.broadcast %722 : vector<16x1xf32> to vector<16x16xf32>
    %725 = vector.broadcast %723 : vector<1x16xf32> to vector<16x16xf32>
    %726 = arith.addf %724, %725 : vector<16x16xf32>
    %727 = vector.extract_strided_slice %717 {offsets = [0, 1], sizes = [16, 1], strides = [1, 1]} : vector<16x16xf32> to vector<16x1xf32>
    %728 = vector.extract_strided_slice %721 {offsets = [1, 0], sizes = [1, 16], strides = [1, 1]} : vector<16x16xf32> to vector<1x16xf32>
    %729 = vector.broadcast %727 : vector<16x1xf32> to vector<16x16xf32>
    %730 = vector.broadcast %728 : vector<1x16xf32> to vector<16x16xf32>
    %731 = arith.addf %729, %730 : vector<16x16xf32>
    %732 = arith.maximumf %726, %731 : vector<16x16xf32>
    %733 = vector.extract_strided_slice %717 {offsets = [0, 2], sizes = [16, 1], strides = [1, 1]} : vector<16x16xf32> to vector<16x1xf32>
    %734 = vector.extract_strided_slice %721 {offsets = [2, 0], sizes = [1, 16], strides = [1, 1]} : vector<16x16xf32> to vector<1x16xf32>
    %735 = vector.broadcast %733 : vector<16x1xf32> to vector<16x16xf32>
    %736 = vector.broadcast %734 : vector<1x16xf32> to vector<16x16xf32>
    %737 = arith.addf %735, %736 : vector<16x16xf32>
    %738 = arith.maximumf %732, %737 : vector<16x16xf32>
    %739 = vector.extract_strided_slice %717 {offsets = [0, 3], sizes = [16, 1], strides = [1, 1]} : vector<16x16xf32> to vector<16x1xf32>
    %740 = vector.extract_strided_slice %721 {offsets = [3, 0], sizes = [1, 16], strides = [1, 1]} : vector<16x16xf32> to vector<1x16xf32>
    %741 = vector.broadcast %739 : vector<16x1xf32> to vector<16x16xf32>
    %742 = vector.broadcast %740 : vector<1x16xf32> to vector<16x16xf32>
    %743 = arith.addf %741, %742 : vector<16x16xf32>
    %744 = arith.maximumf %738, %743 : vector<16x16xf32>
    %745 = vector.extract_strided_slice %717 {offsets = [0, 4], sizes = [16, 1], strides = [1, 1]} : vector<16x16xf32> to vector<16x1xf32>
    %746 = vector.extract_strided_slice %721 {offsets = [4, 0], sizes = [1, 16], strides = [1, 1]} : vector<16x16xf32> to vector<1x16xf32>
    %747 = vector.broadcast %745 : vector<16x1xf32> to vector<16x16xf32>
    %748 = vector.broadcast %746 : vector<1x16xf32> to vector<16x16xf32>
    %749 = arith.addf %747, %748 : vector<16x16xf32>
    %750 = arith.maximumf %744, %749 : vector<16x16xf32>
    %751 = vector.extract_strided_slice %717 {offsets = [0, 5], sizes = [16, 1], strides = [1, 1]} : vector<16x16xf32> to vector<16x1xf32>
    %752 = vector.extract_strided_slice %721 {offsets = [5, 0], sizes = [1, 16], strides = [1, 1]} : vector<16x16xf32> to vector<1x16xf32>
    %753 = vector.broadcast %751 : vector<16x1xf32> to vector<16x16xf32>
    %754 = vector.broadcast %752 : vector<1x16xf32> to vector<16x16xf32>
    %755 = arith.addf %753, %754 : vector<16x16xf32>
    %756 = arith.maximumf %750, %755 : vector<16x16xf32>
    %757 = vector.extract_strided_slice %717 {offsets = [0, 6], sizes = [16, 1], strides = [1, 1]} : vector<16x16xf32> to vector<16x1xf32>
    %758 = vector.extract_strided_slice %721 {offsets = [6, 0], sizes = [1, 16], strides = [1, 1]} : vector<16x16xf32> to vector<1x16xf32>
    %759 = vector.broadcast %757 : vector<16x1xf32> to vector<16x16xf32>
    %760 = vector.broadcast %758 : vector<1x16xf32> to vector<16x16xf32>
    %761 = arith.addf %759, %760 : vector<16x16xf32>
    %762 = arith.maximumf %756, %761 : vector<16x16xf32>
    %763 = vector.extract_strided_slice %717 {offsets = [0, 7], sizes = [16, 1], strides = [1, 1]} : vector<16x16xf32> to vector<16x1xf32>
    %764 = vector.extract_strided_slice %721 {offsets = [7, 0], sizes = [1, 16], strides = [1, 1]} : vector<16x16xf32> to vector<1x16xf32>
    %765 = vector.broadcast %763 : vector<16x1xf32> to vector<16x16xf32>
    %766 = vector.broadcast %764 : vector<1x16xf32> to vector<16x16xf32>
    %767 = arith.addf %765, %766 : vector<16x16xf32>
    %768 = arith.maximumf %762, %767 : vector<16x16xf32>
    %769 = vector.extract_strided_slice %717 {offsets = [0, 8], sizes = [16, 1], strides = [1, 1]} : vector<16x16xf32> to vector<16x1xf32>
    %770 = vector.extract_strided_slice %721 {offsets = [8, 0], sizes = [1, 16], strides = [1, 1]} : vector<16x16xf32> to vector<1x16xf32>
    %771 = vector.broadcast %769 : vector<16x1xf32> to vector<16x16xf32>
    %772 = vector.broadcast %770 : vector<1x16xf32> to vector<16x16xf32>
    %773 = arith.addf %771, %772 : vector<16x16xf32>
    %774 = arith.maximumf %768, %773 : vector<16x16xf32>
    %775 = vector.extract_strided_slice %717 {offsets = [0, 9], sizes = [16, 1], strides = [1, 1]} : vector<16x16xf32> to vector<16x1xf32>
    %776 = vector.extract_strided_slice %721 {offsets = [9, 0], sizes = [1, 16], strides = [1, 1]} : vector<16x16xf32> to vector<1x16xf32>
    %777 = vector.broadcast %775 : vector<16x1xf32> to vector<16x16xf32>
    %778 = vector.broadcast %776 : vector<1x16xf32> to vector<16x16xf32>
    %779 = arith.addf %777, %778 : vector<16x16xf32>
    %780 = arith.maximumf %774, %779 : vector<16x16xf32>
    %781 = vector.extract_strided_slice %717 {offsets = [0, 10], sizes = [16, 1], strides = [1, 1]} : vector<16x16xf32> to vector<16x1xf32>
    %782 = vector.extract_strided_slice %721 {offsets = [10, 0], sizes = [1, 16], strides = [1, 1]} : vector<16x16xf32> to vector<1x16xf32>
    %783 = vector.broadcast %781 : vector<16x1xf32> to vector<16x16xf32>
    %784 = vector.broadcast %782 : vector<1x16xf32> to vector<16x16xf32>
    %785 = arith.addf %783, %784 : vector<16x16xf32>
    %786 = arith.maximumf %780, %785 : vector<16x16xf32>
    %787 = vector.extract_strided_slice %717 {offsets = [0, 11], sizes = [16, 1], strides = [1, 1]} : vector<16x16xf32> to vector<16x1xf32>
    %788 = vector.extract_strided_slice %721 {offsets = [11, 0], sizes = [1, 16], strides = [1, 1]} : vector<16x16xf32> to vector<1x16xf32>
    %789 = vector.broadcast %787 : vector<16x1xf32> to vector<16x16xf32>
    %790 = vector.broadcast %788 : vector<1x16xf32> to vector<16x16xf32>
    %791 = arith.addf %789, %790 : vector<16x16xf32>
    %792 = arith.maximumf %786, %791 : vector<16x16xf32>
    %793 = vector.extract_strided_slice %717 {offsets = [0, 12], sizes = [16, 1], strides = [1, 1]} : vector<16x16xf32> to vector<16x1xf32>
    %794 = vector.extract_strided_slice %721 {offsets = [12, 0], sizes = [1, 16], strides = [1, 1]} : vector<16x16xf32> to vector<1x16xf32>
    %795 = vector.broadcast %793 : vector<16x1xf32> to vector<16x16xf32>
    %796 = vector.broadcast %794 : vector<1x16xf32> to vector<16x16xf32>
    %797 = arith.addf %795, %796 : vector<16x16xf32>
    %798 = arith.maximumf %792, %797 : vector<16x16xf32>
    %799 = vector.extract_strided_slice %717 {offsets = [0, 13], sizes = [16, 1], strides = [1, 1]} : vector<16x16xf32> to vector<16x1xf32>
    %800 = vector.extract_strided_slice %721 {offsets = [13, 0], sizes = [1, 16], strides = [1, 1]} : vector<16x16xf32> to vector<1x16xf32>
    %801 = vector.broadcast %799 : vector<16x1xf32> to vector<16x16xf32>
    %802 = vector.broadcast %800 : vector<1x16xf32> to vector<16x16xf32>
    %803 = arith.addf %801, %802 : vector<16x16xf32>
    %804 = arith.maximumf %798, %803 : vector<16x16xf32>
    %805 = vector.extract_strided_slice %717 {offsets = [0, 14], sizes = [16, 1], strides = [1, 1]} : vector<16x16xf32> to vector<16x1xf32>
    %806 = vector.extract_strided_slice %721 {offsets = [14, 0], sizes = [1, 16], strides = [1, 1]} : vector<16x16xf32> to vector<1x16xf32>
    %807 = vector.broadcast %805 : vector<16x1xf32> to vector<16x16xf32>
    %808 = vector.broadcast %806 : vector<1x16xf32> to vector<16x16xf32>
    %809 = arith.addf %807, %808 : vector<16x16xf32>
    %810 = arith.maximumf %804, %809 : vector<16x16xf32>
    %811 = vector.extract_strided_slice %717 {offsets = [0, 15], sizes = [16, 1], strides = [1, 1]} : vector<16x16xf32> to vector<16x1xf32>
    %812 = vector.extract_strided_slice %721 {offsets = [15, 0], sizes = [1, 16], strides = [1, 1]} : vector<16x16xf32> to vector<1x16xf32>
    %813 = vector.broadcast %811 : vector<16x1xf32> to vector<16x16xf32>
    %814 = vector.broadcast %812 : vector<1x16xf32> to vector<16x16xf32>
    %815 = arith.addf %813, %814 : vector<16x16xf32>
    %816 = arith.maximumf %810, %815 : vector<16x16xf32>
    %c0_68 = arith.constant 0 : index
    %c3_69 = arith.constant 3 : index
    %c0_70 = arith.constant 0 : index
    %c0_71 = arith.constant 0 : index
    %817 = vector.load %arg3[%c0_68, %c3_69, %c0_70, %c0_71] : memref<1x4x16x16xf32, #tpu.memory_space<vmem>>, vector<1x1x16x16xf32>
    %818 = vector.shape_cast %817 : vector<1x1x16x16xf32> to vector<16x16xf32>
    %819 = vector.shape_cast %816 : vector<16x16xf32> to vector<1x1x16x16xf32>
    tpu.vector_store %arg3[%c0_68, %c3_69, %c0_70, %c0_71], %819 {strides = array<i32>} : memref<1x4x16x16xf32, #tpu.memory_space<vmem>>, vector<1x1x16x16xf32>,
    return
  }
  func.func @transform_0(%arg0: i32, %arg1: memref<4x3xi32, #tpu.memory_space<smem>>) -> (i32, i32, i32, i32) {
    %c0_i32 = arith.constant 0 : i32
    %c0_i32_0 = arith.constant 0 : i32
    %c0_i32_1 = arith.constant 0 : i32
    %c0_i32_2 = arith.constant 0 : i32
    return %arg0, %c0_i32, %c0_i32_0, %c0_i32_1 : i32, i32, i32, i32
  }
  func.func @transform_1(%arg0: i32, %arg1: memref<4x3xi32, #tpu.memory_space<smem>>) -> (i32, i32, i32, i32) {
    %c0_i32 = arith.constant 0 : i32
    %c0_i32_0 = arith.constant 0 : i32
    %c0_i32_1 = arith.constant 0 : i32
    %c0_i32_2 = arith.constant 0 : i32
    return %arg0, %c0_i32, %c0_i32_0, %c0_i32_1 : i32, i32, i32, i32
  }
}

</mosaic_0001>

<llo_original>
// kernel: tpu_custom_call.1
$region0: #{tpu_custom_call.1}
  #allocation0 [shape = 'u32[]', space=smem, size = 0x4, offset = 0x4, fixed_abs, tag = 'smem constant byte address 0x4 - core index']
  #allocation1 [shape = 'u32[144,128]{1,0:T(1,128)}', space=vmem, size = 0x12000, scoped, tag = 'internal scratch']
  #allocation2 [shape = 's32[1]{0}', space=sflag, size = 0x4, scoped, tag = 'scoped memory for tpu_custom_call.1']
  #allocation3 [shape = 'u8[2048]{0}', space=smem, size = 0x800, scoped, tag = 'prefetched SMEM operand 0']
  %s0 = inlined_call_operand.hbm [shape: s32[4,3], index: 0, kind: input, shape index: {}]
  %s1 = inlined_call_operand.hbm [shape: f32[2,5,16,16], index: 1, kind: input, shape index: {}]
  %s2 = inlined_call_operand.hbm [shape: f32[2,4,16,16], index: 2, kind: output, shape index: {}]
  %s3 = sld [smem:[#allocation0]]
  $region41: #{tpu_custom_call.1} parent=0
    _
  %s5 = ssub.s32 1, %s3
  %s6 = scalar_select 0, %s5, %s3
  %8 = dma.hbm_to_smem %s0, 64, [#allocation3], [#allocation2]
  %9 = dma.done [#allocation2], 64
  %10 = sfence
  $region1: #{tpu_custom_call.1} parent=0
    #allocation4 [shape = 'u8[81920]{0}', space=vmem, size = 0x14000, scoped, tag = 'input window, operand 1']
    #allocation5 [shape = 's32[2]{0}', space=sflag, size = 0x8, scoped, tag = 'scoped memory for tpu_custom_call.1']
    #allocation6 [shape = 's32[2]{0}', space=sflag, size = 0x8, scoped, tag = 'scoped memory for tpu_custom_call.1']
    #allocation7 [shape = 'u8[65536]{0}', space=vmem, size = 0x10000, scoped, tag = 'output window, operand 0']
    %11 = vsyncpa [#allocation5], 0
    %s12 = scalar_lea.sflag [#allocation5], 1
    %13 = vsyncpa %s12, 0
    %14 = vsyncpa [#allocation6], 0
    %s15 = scalar_lea.sflag [#allocation6], 1
    %16 = vsyncpa %s15, 0
    loop: start=0, step=1, limit=4
    $region2: #{tpu_custom_call.1} parent=1 // loop_pre_header
      _
    $region3: #{tpu_custom_call.1} parent=1 // loop_header
      %s18 = sphi 0, %s22
      %p19 = scmp.ge.s32.totalorder %s18, 4
      %s28 = sphi 0, %s30
      %s31 = sphi 0, %s28
      %s32 = sphi 0, %s31
      %s48 = sphi 0, %s32
      %s54 = sphi 0, %s56
      %s57 = sphi 0, %s54
      %s58 = sphi 0, %s57
      %s74 = sphi 0, %s58
    $region4: #{tpu_custom_call.1} parent=1 // loop_header_branch
      %21 = sbr.rel (%p19) target = $region8
    $region5: #{tpu_custom_call.1} parent=1 // loop_body
      %s23 = ssub.s32 %s18, 1
      %s24 = ssub.s32 %s18, 2
      %s25 = sadd.s32 %s18, 1
      %s26 = ssub.s32 %s18, %s25
      %p27 = scmp.eq.s32.totalorder %s26, 0
      %s29 = sadd.s32 %s28, 1
      %s30 = scalar_select %p27, %s28, %s29
      %p33 = pneg %p27
      %p34 = scmp.eq.s32.totalorder %s18, 1
      %p35 = por %p33, %p34
      %p36 = scmp.ne.s32.totalorder %s28, %s31
      %p37 = scmp.eq.s32.totalorder %s18, 0
      %p38 = por %p36, %p37
      %p39 = scmp.ne.s32.totalorder %s28, %s31
      %p40 = scmp.eq.s32.totalorder %s23, 1
      %p41 = por %p39, %p40
      %p42 = scmp.ne.s32.totalorder %s31, %s32
      %p43 = scmp.eq.s32.totalorder %s23, 0
      %p44 = por %p42, %p43
      %p45 = scmp.ne.s32.totalorder %s31, %s32
      %p46 = scmp.eq.s32.totalorder %s24, 1
      %p47 = por %p45, %p46
      %p49 = scmp.ne.s32.totalorder %s32, %s48
      %p50 = scmp.eq.s32.totalorder %s24, 0
      %p51 = por %p49, %p50
      %s52 = ssub.s32 %s18, %s25
      %p53 = scmp.eq.s32.totalorder %s52, 0
      %s55 = sadd.s32 %s54, 1
      %s56 = scalar_select %p53, %s54, %s55
      %p59 = pneg %p53
      %p60 = scmp.eq.s32.totalorder %s18, 1
      %p61 = por %p59, %p60
      %p62 = scmp.ne.s32.totalorder %s54, %s57
      %p63 = scmp.eq.s32.totalorder %s18, 0
      %p64 = por %p62, %p63
      %p65 = scmp.ne.s32.totalorder %s54, %s57
      %p66 = scmp.eq.s32.totalorder %s23, 1
      %p67 = por %p65, %p66
      %p68 = scmp.ne.s32.totalorder %s57, %s58
      %p69 = scmp.eq.s32.totalorder %s23, 0
      %p70 = por %p68, %p69
      %p71 = scmp.ne.s32.totalorder %s57, %s58
      %p72 = scmp.eq.s32.totalorder %s24, 1
      %p73 = por %p71, %p72
      %p75 = scmp.ne.s32.totalorder %s58, %s74
      %p76 = scmp.eq.s32.totalorder %s24, 0
      %p77 = por %p75, %p76
      %p78 = scmp.le.s32.totalorder 1, %s18
      %p79 = scmp.lt.s32.totalorder %s18, 3
      %p80 = pnand %p78, %p79
      %p81 = pneg %p80
      // Predicated region
      $region9: #{tpu_custom_call.1} parent=5 // pred_check
        _
      $region10: #{tpu_custom_call.1} parent=5 // pred_check_branch
        %83 = sbr.rel (%p80) target = $region12
      $region11: #{tpu_custom_call.1} parent=5 // pred_region
        %s84 = ssub.s32 %s18, 1
      $region12: #{tpu_custom_call.1} parent=5 // pred_fallthru
        _
      %p85 = scmp.lt.s32.totalorder %s18, 2
      // Predicated region
      $region13: #{tpu_custom_call.1} parent=5 // pred_check
        %p86 = pneg %p85
      $region14: #{tpu_custom_call.1} parent=5 // pred_check_branch
        %88 = sbr.rel (%p86) target = $region16
      $region15: #{tpu_custom_call.1} parent=5 // pred_region
        // Predicated region
        $region17: #{tpu_custom_call.1} parent=15 // pred_check
          %p89 = pneg %p38
        $region18: #{tpu_custom_call.1} parent=15 // pred_check_branch
          %91 = sbr.rel (%p89) target = $region20
        $region19: #{tpu_custom_call.1} parent=15 // pred_region
          %s92 = sand.u32 %s28, 1
          %s93 = scalar_lea.sflag [#allocation5], %s92
          %s94 = sand.u32 %s28, 1
          %s95 = smul.addr %s94, 80
          %s96 = scalar_lea.vmem [#allocation4], %s95
          %s98 = ssub.s32 1280, 1280
          %99 = vsyncadd %s93, %s98
          %s100 = smul.addr %s18, 10
          %s101 = smul.addr %s100, 128
          %s102 = scalar_lea.hbm %s1, %s101
          %s103 = sshll.u32 %s96, 4
          %s104 = int_to_ptr.vmem [resolvable:$true] %s103
          %109 = dma.hbm_to_vmem [thread:$0]  %s102, 1280, %s104, %s93, 128, 128, 8
        $region20: #{tpu_custom_call.1} parent=15 // pred_fallthru
          _
      $region16: #{tpu_custom_call.1} parent=5 // pred_fallthru
        _
      %p110 = scmp.le.s32.totalorder 1, %s18
      %p111 = scmp.lt.s32.totalorder %s18, 3
      %p112 = pnand %p110, %p111
      %p113 = pneg %p112
      // Predicated region
      $region21: #{tpu_custom_call.1} parent=5 // pred_check
        _
      $region22: #{tpu_custom_call.1} parent=5 // pred_check_branch
        %115 = sbr.rel (%p112) target = $region24
      $region23: #{tpu_custom_call.1} parent=5 // pred_region
        %s116 = ssub.s32 %s18, 1
        %s117 = sand.u32 %s31, 1
        %s118 = scalar_lea.sflag [#allocation5], %s117
        %s119 = sand.u32 %s31, 1
        %s120 = smul.addr %s119, 80
        %s121 = scalar_lea.vmem [#allocation4], %s120
        // Predicated region
        $region25: #{tpu_custom_call.1} parent=23 // pred_check
          %p122 = pneg %p44
        $region26: #{tpu_custom_call.1} parent=23 // pred_check_branch
          %124 = sbr.rel (%p122) target = $region28
        $region27: #{tpu_custom_call.1} parent=23 // pred_region
          %125 = dma.done %s118, 1280
        $region28: #{tpu_custom_call.1} parent=23 // pred_fallthru
          _
        %s126 = sand.u32 %s31, 1
        %s127 = scalar_lea.sflag [#allocation5], %s126
        %s128 = sand.u32 %s31, 1
        %s129 = smul.addr %s128, 80
        %s130 = scalar_lea.vmem [#allocation4], %s129
        %p131 = pneg %p44
        %p132 = pneg %p41
        %p133 = pneg %p70
        %p134 = pneg %p67
        %s135 = sand.u32 %s57, 1
        %s136 = scalar_lea.sflag [#allocation6], %s135
        %s137 = sand.u32 %s57, 1
        %s138 = smul.addr %s137, 64
        %s139 = scalar_lea.vmem [#allocation7], %s138
        %s140 = sld [smem:[#allocation3]]
        %s141 = smul.u32 %s140, 16
        %s142 = scalar_lea.vmem %s121, %s141 [#allocation4]
        %v143 = vld [vmem:[%s142] sm:$0xff]
        %v144 = vld [vmem:[%s142 + $0x8] sm:$0xff]
        %s145 = sld [smem:[#allocation3 + $0x1]]
        %s146 = smul.u32 %s145, 16
        %s147 = scalar_lea.vmem %s121, %s146 [#allocation4]
        %v148 = vld [vmem:[%s147] sm:$0xff]
        %v149 = vld [vmem:[%s147 + $0x8] sm:$0xff]
        %151 = vset.pattern.permute.xlu0 0
        %152 = vperm.xlu0 %151, %v143
        %v153 = vpop.permute.xlu0 %152
        %156 = vset.pattern.permute.xlu0 0
        %157 = vperm.xlu0 %156, %v144
        %v158 = vpop.permute.xlu0 %157
        %v160 = vlaneseq
        %v161 = vshrl.u32 %v160, 7
        %v162 = vsub.s32 0, %v161
        %v163 = vrot.slane %v148, %v162
        %v164 = vadd.f32 %v153, %v163
        %v165 = vadd.f32 %v158, %v163
        %166 = vset.pattern.permute.xlu0 1
        %167 = vperm.xlu0 %166, %v143
        %v168 = vpop.permute.xlu0 %167
        %170 = vset.pattern.permute.xlu0 1
        %171 = vperm.xlu0 %170, %v144
        %v172 = vpop.permute.xlu0 %171
        %v174 = vlaneseq
        %v175 = vshrl.u32 %v174, 7
        %v176 = vsub.s32 1, %v175
        %v177 = vrot.slane %v148, %v176
        %v178 = vadd.f32 %v168, %v177
        %v179 = vadd.f32 %v172, %v177
        %v180 = vmax.f32 %v164, %v178
        %v181 = vmax.f32 %v165, %v179
        %182 = vset.pattern.permute.xlu0 2
        %183 = vperm.xlu0 %182, %v143
        %v184 = vpop.permute.xlu0 %183
        %186 = vset.pattern.permute.xlu0 2
        %187 = vperm.xlu0 %186, %v144
        %v188 = vpop.permute.xlu0 %187
        %v190 = vlaneseq
        %v191 = vshrl.u32 %v190, 7
        %v192 = vsub.s32 2, %v191
        %v193 = vrot.slane %v148, %v192
        %v194 = vadd.f32 %v184, %v193
        %v195 = vadd.f32 %v188, %v193
        %v196 = vmax.f32 %v180, %v194
        %v197 = vmax.f32 %v181, %v195
        %198 = vset.pattern.permute.xlu0 3
        %199 = vperm.xlu0 %198, %v143
        %v200 = vpop.permute.xlu0 %199
        %202 = vset.pattern.permute.xlu0 3
        %203 = vperm.xlu0 %202, %v144
        %v204 = vpop.permute.xlu0 %203
        %v206 = vlaneseq
        %v207 = vshrl.u32 %v206, 7
        %v208 = vsub.s32 3, %v207
        %v209 = vrot.slane %v148, %v208
        %v210 = vadd.f32 %v200, %v209
        %v211 = vadd.f32 %v204, %v209
        %v212 = vmax.f32 %v196, %v210
        %v213 = vmax.f32 %v197, %v211
        %214 = vset.pattern.permute.xlu0 4
        %215 = vperm.xlu0 %214, %v143
        %v216 = vpop.permute.xlu0 %215
        %218 = vset.pattern.permute.xlu0 4
        %219 = vperm.xlu0 %218, %v144
        %v220 = vpop.permute.xlu0 %219
        %v222 = vlaneseq
        %v223 = vshrl.u32 %v222, 7
        %v224 = vsub.s32 4, %v223
        %v225 = vrot.slane %v148, %v224
        %v226 = vadd.f32 %v216, %v225
        %v227 = vadd.f32 %v220, %v225
        %v228 = vmax.f32 %v212, %v226
        %v229 = vmax.f32 %v213, %v227
        %230 = vset.pattern.permute.xlu0 5
        %231 = vperm.xlu0 %230, %v143
        %v232 = vpop.permute.xlu0 %231
        %234 = vset.pattern.permute.xlu0 5
        %235 = vperm.xlu0 %234, %v144
        %v236 = vpop.permute.xlu0 %235
        %v238 = vlaneseq
        %v239 = vshrl.u32 %v238, 7
        %v240 = vsub.s32 5, %v239
        %v241 = vrot.slane %v148, %v240
        %v242 = vadd.f32 %v232, %v241
        %v243 = vadd.f32 %v236, %v241
        %v244 = vmax.f32 %v228, %v242
        %v245 = vmax.f32 %v229, %v243
        %246 = vset.pattern.permute.xlu0 6
        %247 = vperm.xlu0 %246, %v143
        %v248 = vpop.permute.xlu0 %247
        %250 = vset.pattern.permute.xlu0 6
        %251 = vperm.xlu0 %250, %v144
        %v252 = vpop.permute.xlu0 %251
        %v254 = vlaneseq
        %v255 = vshrl.u32 %v254, 7
        %v256 = vsub.s32 6, %v255
        %v257 = vrot.slane %v148, %v256
        %v258 = vadd.f32 %v248, %v257
        %v259 = vadd.f32 %v252, %v257
        %v260 = vmax.f32 %v244, %v258
        %v261 = vmax.f32 %v245, %v259
        %262 = vset.pattern.permute.xlu0 7
        %263 = vperm.xlu0 %262, %v143
        %v264 = vpop.permute.xlu0 %263
        %266 = vset.pattern.permute.xlu0 7
        %267 = vperm.xlu0 %266, %v144
        %v268 = vpop.permute.xlu0 %267
        %v270 = vlaneseq
        %v271 = vshrl.u32 %v270, 7
        %v272 = vsub.s32 7, %v271
        %v273 = vrot.slane %v148, %v272
        %v274 = vadd.f32 %v264, %v273
        %v275 = vadd.f32 %v268, %v273
        %v276 = vmax.f32 %v260, %v274
        %v277 = vmax.f32 %v261, %v275
        %278 = vset.pattern.permute.xlu0 8
        %279 = vperm.xlu0 %278, %v143
        %v280 = vpop.permute.xlu0 %279
        %282 = vset.pattern.permute.xlu0 8
        %283 = vperm.xlu0 %282, %v144
        %v284 = vpop.permute.xlu0 %283
        %v286 = vlaneseq
        %v287 = vshrl.u32 %v286, 7
        %v288 = vsub.s32 0, %v287
        %v289 = vrot.slane %v149, %v288
        %v290 = vadd.f32 %v280, %v289
        %v291 = vadd.f32 %v284, %v289
        %v292 = vmax.f32 %v276, %v290
        %v293 = vmax.f32 %v277, %v291
        %294 = vset.pattern.permute.xlu0 9
        %295 = vperm.xlu0 %294, %v143
        %v296 = vpop.permute.xlu0 %295
        %298 = vset.pattern.permute.xlu0 9
        %299 = vperm.xlu0 %298, %v144
        %v300 = vpop.permute.xlu0 %299
        %v302 = vlaneseq
        %v303 = vshrl.u32 %v302, 7
        %v304 = vsub.s32 1, %v303
        %v305 = vrot.slane %v149, %v304
        %v306 = vadd.f32 %v296, %v305
        %v307 = vadd.f32 %v300, %v305
        %v308 = vmax.f32 %v292, %v306
        %v309 = vmax.f32 %v293, %v307
        %310 = vset.pattern.permute.xlu0 10
        %311 = vperm.xlu0 %310, %v143
        %v312 = vpop.permute.xlu0 %311
        %314 = vset.pattern.permute.xlu0 10
        %315 = vperm.xlu0 %314, %v144
        %v316 = vpop.permute.xlu0 %315
        %v318 = vlaneseq
        %v319 = vshrl.u32 %v318, 7
        %v320 = vsub.s32 2, %v319
        %v321 = vrot.slane %v149, %v320
        %v322 = vadd.f32 %v312, %v321
        %v323 = vadd.f32 %v316, %v321
        %v324 = vmax.f32 %v308, %v322
        %v325 = vmax.f32 %v309, %v323
        %326 = vset.pattern.permute.xlu0 11
        %327 = vperm.xlu0 %326, %v143
        %v328 = vpop.permute.xlu0 %327
        %330 = vset.pattern.permute.xlu0 11
        %331 = vperm.xlu0 %330, %v144
        %v332 = vpop.permute.xlu0 %331
        %v334 = vlaneseq
        %v335 = vshrl.u32 %v334, 7
        %v336 = vsub.s32 3, %v335
        %v337 = vrot.slane %v149, %v336
        %v338 = vadd.f32 %v328, %v337
        %v339 = vadd.f32 %v332, %v337
        %v340 = vmax.f32 %v324, %v338
        %v341 = vmax.f32 %v325, %v339
        %342 = vset.pattern.permute.xlu0 12
        %343 = vperm.xlu0 %342, %v143
        %v344 = vpop.permute.xlu0 %343
        %346 = vset.pattern.permute.xlu0 12
        %347 = vperm.xlu0 %346, %v144
        %v348 = vpop.permute.xlu0 %347
        %v350 = vlaneseq
        %v351 = vshrl.u32 %v350, 7
        %v352 = vsub.s32 4, %v351
        %v353 = vrot.slane %v149, %v352
        %v354 = vadd.f32 %v344, %v353
        %v355 = vadd.f32 %v348, %v353
        %v356 = vmax.f32 %v340, %v354
        %v357 = vmax.f32 %v341, %v355
        %358 = vset.pattern.permute.xlu0 13
        %359 = vperm.xlu0 %358, %v143
        %v360 = vpop.permute.xlu0 %359
        %362 = vset.pattern.permute.xlu0 13
        %363 = vperm.xlu0 %362, %v144
        %v364 = vpop.permute.xlu0 %363
        %v366 = vlaneseq
        %v367 = vshrl.u32 %v366, 7
        %v368 = vsub.s32 5, %v367
        %v369 = vrot.slane %v149, %v368
        %v370 = vadd.f32 %v360, %v369
        %v371 = vadd.f32 %v364, %v369
        %v372 = vmax.f32 %v356, %v370
        %v373 = vmax.f32 %v357, %v371
        %374 = vset.pattern.permute.xlu0 14
        %375 = vperm.xlu0 %374, %v143
        %v376 = vpop.permute.xlu0 %375
        %378 = vset.pattern.permute.xlu0 14
        %379 = vperm.xlu0 %378, %v144
        %v380 = vpop.permute.xlu0 %379
        %v382 = vlaneseq
        %v383 = vshrl.u32 %v382, 7
        %v384 = vsub.s32 6, %v383
        %v385 = vrot.slane %v149, %v384
        %v386 = vadd.f32 %v376, %v385
        %v387 = vadd.f32 %v380, %v385
        %v388 = vmax.f32 %v372, %v386
        %v389 = vmax.f32 %v373, %v387
        %390 = vset.pattern.permute.xlu0 15
        %391 = vperm.xlu0 %390, %v143
        %v392 = vpop.permute.xlu0 %391
        %394 = vset.pattern.permute.xlu0 15
        %395 = vperm.xlu0 %394, %v144
        %v396 = vpop.permute.xlu0 %395
        %v398 = vlaneseq
        %v399 = vshrl.u32 %v398, 7
        %v400 = vsub.s32 7, %v399
        %v401 = vrot.slane %v149, %v400
        %v402 = vadd.f32 %v392, %v401
        %v403 = vadd.f32 %v396, %v401
        %v404 = vmax.f32 %v388, %v402
        %v405 = vmax.f32 %v389, %v403
        %s406 = sld [smem:[#allocation3 + $0x2]]
        %s407 = smul.u32 %s406, 16
        %s408 = scalar_lea.vmem %s121, %s407 [#allocation4]
        %v409 = vld [vmem:[%s408] sm:$0xff]
        %v410 = vld [vmem:[%s408 + $0x8] sm:$0xff]
        %412 = vset.pattern.permute.xlu0 0
        %413 = vperm.xlu0 %412, %v404
        %v414 = vpop.permute.xlu0 %413
        %417 = vset.pattern.permute.xlu0 0
        %418 = vperm.xlu0 %417, %v405
        %v419 = vpop.permute.xlu0 %418
        %v421 = vlaneseq
        %v422 = vshrl.u32 %v421, 7
        %v423 = vsub.s32 0, %v422
        %v424 = vrot.slane %v409, %v423
        %v425 = vadd.f32 %v414, %v424
        %v426 = vadd.f32 %v419, %v424
        %427 = vset.pattern.permute.xlu0 1
        %428 = vperm.xlu0 %427, %v404
        %v429 = vpop.permute.xlu0 %428
        %431 = vset.pattern.permute.xlu0 1
        %432 = vperm.xlu0 %431, %v405
        %v433 = vpop.permute.xlu0 %432
        %v435 = vlaneseq
        %v436 = vshrl.u32 %v435, 7
        %v437 = vsub.s32 1, %v436
        %v438 = vrot.slane %v409, %v437
        %v439 = vadd.f32 %v429, %v438
        %v440 = vadd.f32 %v433, %v438
        %v441 = vmax.f32 %v425, %v439
        %v442 = vmax.f32 %v426, %v440
        %443 = vset.pattern.permute.xlu0 2
        %444 = vperm.xlu0 %443, %v404
        %v445 = vpop.permute.xlu0 %444
        %447 = vset.pattern.permute.xlu0 2
        %448 = vperm.xlu0 %447, %v405
        %v449 = vpop.permute.xlu0 %448
        %v451 = vlaneseq
        %v452 = vshrl.u32 %v451, 7
        %v453 = vsub.s32 2, %v452
        %v454 = vrot.slane %v409, %v453
        %v455 = vadd.f32 %v445, %v454
        %v456 = vadd.f32 %v449, %v454
        %v457 = vmax.f32 %v441, %v455
        %v458 = vmax.f32 %v442, %v456
        %459 = vset.pattern.permute.xlu0 3
        %460 = vperm.xlu0 %459, %v404
        %v461 = vpop.permute.xlu0 %460
        %463 = vset.pattern.permute.xlu0 3
        %464 = vperm.xlu0 %463, %v405
        %v465 = vpop.permute.xlu0 %464
        %v467 = vlaneseq
        %v468 = vshrl.u32 %v467, 7
        %v469 = vsub.s32 3, %v468
        %v470 = vrot.slane %v409, %v469
        %v471 = vadd.f32 %v461, %v470
        %v472 = vadd.f32 %v465, %v470
        %v473 = vmax.f32 %v457, %v471
        %v474 = vmax.f32 %v458, %v472
        %475 = vset.pattern.permute.xlu0 4
        %476 = vperm.xlu0 %475, %v404
        %v477 = vpop.permute.xlu0 %476
        %479 = vset.pattern.permute.xlu0 4
        %480 = vperm.xlu0 %479, %v405
        %v481 = vpop.permute.xlu0 %480
        %v483 = vlaneseq
        %v484 = vshrl.u32 %v483, 7
        %v485 = vsub.s32 4, %v484
        %v486 = vrot.slane %v409, %v485
        %v487 = vadd.f32 %v477, %v486
        %v488 = vadd.f32 %v481, %v486
        %v489 = vmax.f32 %v473, %v487
        %v490 = vmax.f32 %v474, %v488
        %491 = vset.pattern.permute.xlu0 5
        %492 = vperm.xlu0 %491, %v404
        %v493 = vpop.permute.xlu0 %492
        %495 = vset.pattern.permute.xlu0 5
        %496 = vperm.xlu0 %495, %v405
        %v497 = vpop.permute.xlu0 %496
        %v499 = vlaneseq
        %v500 = vshrl.u32 %v499, 7
        %v501 = vsub.s32 5, %v500
        %v502 = vrot.slane %v409, %v501
        %v503 = vadd.f32 %v493, %v502
        %v504 = vadd.f32 %v497, %v502
        %v505 = vmax.f32 %v489, %v503
        %v506 = vmax.f32 %v490, %v504
        %507 = vset.pattern.permute.xlu0 6
        %508 = vperm.xlu0 %507, %v404
        %v509 = vpop.permute.xlu0 %508
        %511 = vset.pattern.permute.xlu0 6
        %512 = vperm.xlu0 %511, %v405
        %v513 = vpop.permute.xlu0 %512
        %v515 = vlaneseq
        %v516 = vshrl.u32 %v515, 7
        %v517 = vsub.s32 6, %v516
        %v518 = vrot.slane %v409, %v517
        %v519 = vadd.f32 %v509, %v518
        %v520 = vadd.f32 %v513, %v518
        %v521 = vmax.f32 %v505, %v519
        %v522 = vmax.f32 %v506, %v520
        %523 = vset.pattern.permute.xlu0 7
        %524 = vperm.xlu0 %523, %v404
        %v525 = vpop.permute.xlu0 %524
        %527 = vset.pattern.permute.xlu0 7
        %528 = vperm.xlu0 %527, %v405
        %v529 = vpop.permute.xlu0 %528
        %v531 = vlaneseq
        %v532 = vshrl.u32 %v531, 7
        %v533 = vsub.s32 7, %v532
        %v534 = vrot.slane %v409, %v533
        %v535 = vadd.f32 %v525, %v534
        %v536 = vadd.f32 %v529, %v534
        %v537 = vmax.f32 %v521, %v535
        %v538 = vmax.f32 %v522, %v536
        %539 = vset.pattern.permute.xlu0 8
        %540 = vperm.xlu0 %539, %v404
        %v541 = vpop.permute.xlu0 %540
        %543 = vset.pattern.permute.xlu0 8
        %544 = vperm.xlu0 %543, %v405
        %v545 = vpop.permute.xlu0 %544
        %v547 = vlaneseq
        %v548 = vshrl.u32 %v547, 7
        %v549 = vsub.s32 0, %v548
        %v550 = vrot.slane %v410, %v549
        %v551 = vadd.f32 %v541, %v550
        %v552 = vadd.f32 %v545, %v550
        %v553 = vmax.f32 %v537, %v551
        %v554 = vmax.f32 %v538, %v552
        %555 = vset.pattern.permute.xlu0 9
        %556 = vperm.xlu0 %555, %v404
        %v557 = vpop.permute.xlu0 %556
        %559 = vset.pattern.permute.xlu0 9
        %560 = vperm.xlu0 %559, %v405
        %v561 = vpop.permute.xlu0 %560
        %v563 = vlaneseq
        %v564 = vshrl.u32 %v563, 7
        %v565 = vsub.s32 1, %v564
        %v566 = vrot.slane %v410, %v565
        %v567 = vadd.f32 %v557, %v566
        %v568 = vadd.f32 %v561, %v566
        %v569 = vmax.f32 %v553, %v567
        %v570 = vmax.f32 %v554, %v568
        %571 = vset.pattern.permute.xlu0 10
        %572 = vperm.xlu0 %571, %v404
        %v573 = vpop.permute.xlu0 %572
        %575 = vset.pattern.permute.xlu0 10
        %576 = vperm.xlu0 %575, %v405
        %v577 = vpop.permute.xlu0 %576
        %v579 = vlaneseq
        %v580 = vshrl.u32 %v579, 7
        %v581 = vsub.s32 2, %v580
        %v582 = vrot.slane %v410, %v581
        %v583 = vadd.f32 %v573, %v582
        %v584 = vadd.f32 %v577, %v582
        %v585 = vmax.f32 %v569, %v583
        %v586 = vmax.f32 %v570, %v584
        %587 = vset.pattern.permute.xlu0 11
        %588 = vperm.xlu0 %587, %v404
        %v589 = vpop.permute.xlu0 %588
        %591 = vset.pattern.permute.xlu0 11
        %592 = vperm.xlu0 %591, %v405
        %v593 = vpop.permute.xlu0 %592
        %v595 = vlaneseq
        %v596 = vshrl.u32 %v595, 7
        %v597 = vsub.s32 3, %v596
        %v598 = vrot.slane %v410, %v597
        %v599 = vadd.f32 %v589, %v598
        %v600 = vadd.f32 %v593, %v598
        %v601 = vmax.f32 %v585, %v599
        %v602 = vmax.f32 %v586, %v600
        %603 = vset.pattern.permute.xlu0 12
        %604 = vperm.xlu0 %603, %v404
        %v605 = vpop.permute.xlu0 %604
        %607 = vset.pattern.permute.xlu0 12
        %608 = vperm.xlu0 %607, %v405
        %v609 = vpop.permute.xlu0 %608
        %v611 = vlaneseq
        %v612 = vshrl.u32 %v611, 7
        %v613 = vsub.s32 4, %v612
        %v614 = vrot.slane %v410, %v613
        %v615 = vadd.f32 %v605, %v614
        %v616 = vadd.f32 %v609, %v614
        %v617 = vmax.f32 %v601, %v615
        %v618 = vmax.f32 %v602, %v616
        %619 = vset.pattern.permute.xlu0 13
        %620 = vperm.xlu0 %619, %v404
        %v621 = vpop.permute.xlu0 %620
        %623 = vset.pattern.permute.xlu0 13
        %624 = vperm.xlu0 %623, %v405
        %v625 = vpop.permute.xlu0 %624
        %v627 = vlaneseq
        %v628 = vshrl.u32 %v627, 7
        %v629 = vsub.s32 5, %v628
        %v630 = vrot.slane %v410, %v629
        %v631 = vadd.f32 %v621, %v630
        %v632 = vadd.f32 %v625, %v630
        %v633 = vmax.f32 %v617, %v631
        %v634 = vmax.f32 %v618, %v632
        %635 = vset.pattern.permute.xlu0 14
        %636 = vperm.xlu0 %635, %v404
        %v637 = vpop.permute.xlu0 %636
        %639 = vset.pattern.permute.xlu0 14
        %640 = vperm.xlu0 %639, %v405
        %v641 = vpop.permute.xlu0 %640
        %v643 = vlaneseq
        %v644 = vshrl.u32 %v643, 7
        %v645 = vsub.s32 6, %v644
        %v646 = vrot.slane %v410, %v645
        %v647 = vadd.f32 %v637, %v646
        %v648 = vadd.f32 %v641, %v646
        %v649 = vmax.f32 %v633, %v647
        %v650 = vmax.f32 %v634, %v648
        %651 = vset.pattern.permute.xlu0 15
        %652 = vperm.xlu0 %651, %v404
        %v653 = vpop.permute.xlu0 %652
        %655 = vset.pattern.permute.xlu0 15
        %656 = vperm.xlu0 %655, %v405
        %v657 = vpop.permute.xlu0 %656
        %v659 = vlaneseq
        %v660 = vshrl.u32 %v659, 7
        %v661 = vsub.s32 7, %v660
        %v662 = vrot.slane %v410, %v661
        %v663 = vadd.f32 %v653, %v662
        %v664 = vadd.f32 %v657, %v662
        %v665 = vmax.f32 %v649, %v663
        %v666 = vmax.f32 %v650, %v664
        %vm667 = vcmask 130048
        %668 = vst.msk [vmem:[%s139] sm:$0xff] %vm667, %v665
        %669 = vst.msk [vmem:[%s139 + $0x8] sm:$0xff] %vm667, %v666
        %s670 = sld [smem:[#allocation3 + $0x80]]
        %s671 = smul.u32 %s670, 16
        %s672 = scalar_lea.vmem %s121, %s671 [#allocation4]
        %v673 = vld [vmem:[%s672] sm:$0xff]
        %v674 = vld [vmem:[%s672 + $0x8] sm:$0xff]
        %s675 = sld [smem:[#allocation3 + $0x81]]
        %s676 = smul.u32 %s675, 16
        %s677 = scalar_lea.vmem %s121, %s676 [#allocation4]
        %v678 = vld [vmem:[%s677] sm:$0xff]
        %v679 = vld [vmem:[%s677 + $0x8] sm:$0xff]
        %681 = vset.pattern.permute.xlu0 0
        %682 = vperm.xlu0 %681, %v673
        %v683 = vpop.permute.xlu0 %682
        %686 = vset.pattern.permute.xlu0 0
        %687 = vperm.xlu0 %686, %v674
        %v688 = vpop.permute.xlu0 %687
        %v690 = vlaneseq
        %v691 = vshrl.u32 %v690, 7
        %v692 = vsub.s32 0, %v691
        %v693 = vrot.slane %v678, %v692
        %v694 = vadd.f32 %v683, %v693
        %v695 = vadd.f32 %v688, %v693
        %696 = vset.pattern.permute.xlu0 1
        %697 = vperm.xlu0 %696, %v673
        %v698 = vpop.permute.xlu0 %697
        %700 = vset.pattern.permute.xlu0 1
        %701 = vperm.xlu0 %700, %v674
        %v702 = vpop.permute.xlu0 %701
        %v704 = vlaneseq
        %v705 = vshrl.u32 %v704, 7
        %v706 = vsub.s32 1, %v705
        %v707 = vrot.slane %v678, %v706
        %v708 = vadd.f32 %v698, %v707
        %v709 = vadd.f32 %v702, %v707
        %v710 = vmax.f32 %v694, %v708
        %v711 = vmax.f32 %v695, %v709
        %712 = vset.pattern.permute.xlu0 2
        %713 = vperm.xlu0 %712, %v673
        %v714 = vpop.permute.xlu0 %713
        %716 = vset.pattern.permute.xlu0 2
        %717 = vperm.xlu0 %716, %v674
        %v718 = vpop.permute.xlu0 %717
        %v720 = vlaneseq
        %v721 = vshrl.u32 %v720, 7
        %v722 = vsub.s32 2, %v721
        %v723 = vrot.slane %v678, %v722
        %v724 = vadd.f32 %v714, %v723
        %v725 = vadd.f32 %v718, %v723
        %v726 = vmax.f32 %v710, %v724
        %v727 = vmax.f32 %v711, %v725
        %728 = vset.pattern.permute.xlu0 3
        %729 = vperm.xlu0 %728, %v673
        %v730 = vpop.permute.xlu0 %729
        %732 = vset.pattern.permute.xlu0 3
        %733 = vperm.xlu0 %732, %v674
        %v734 = vpop.permute.xlu0 %733
        %v736 = vlaneseq
        %v737 = vshrl.u32 %v736, 7
        %v738 = vsub.s32 3, %v737
        %v739 = vrot.slane %v678, %v738
        %v740 = vadd.f32 %v730, %v739
        %v741 = vadd.f32 %v734, %v739
        %v742 = vmax.f32 %v726, %v740
        %v743 = vmax.f32 %v727, %v741
        %744 = vset.pattern.permute.xlu0 4
        %745 = vperm.xlu0 %744, %v673
        %v746 = vpop.permute.xlu0 %745
        %748 = vset.pattern.permute.xlu0 4
        %749 = vperm.xlu0 %748, %v674
        %v750 = vpop.permute.xlu0 %749
        %v752 = vlaneseq
        %v753 = vshrl.u32 %v752, 7
        %v754 = vsub.s32 4, %v753
        %v755 = vrot.slane %v678, %v754
        %v756 = vadd.f32 %v746, %v755
        %v757 = vadd.f32 %v750, %v755
        %v758 = vmax.f32 %v742, %v756
        %v759 = vmax.f32 %v743, %v757
        %760 = vset.pattern.permute.xlu0 5
        %761 = vperm.xlu0 %760, %v673
        %v762 = vpop.permute.xlu0 %761
        %764 = vset.pattern.permute.xlu0 5
        %765 = vperm.xlu0 %764, %v674
        %v766 = vpop.permute.xlu0 %765
        %v768 = vlaneseq
        %v769 = vshrl.u32 %v768, 7
        %v770 = vsub.s32 5, %v769
        %v771 = vrot.slane %v678, %v770
        %v772 = vadd.f32 %v762, %v771
        %v773 = vadd.f32 %v766, %v771
        %v774 = vmax.f32 %v758, %v772
        %v775 = vmax.f32 %v759, %v773
        %776 = vset.pattern.permute.xlu0 6
        %777 = vperm.xlu0 %776, %v673
        %v778 = vpop.permute.xlu0 %777
        %780 = vset.pattern.permute.xlu0 6
        %781 = vperm.xlu0 %780, %v674
        %v782 = vpop.permute.xlu0 %781
        %v784 = vlaneseq
        %v785 = vshrl.u32 %v784, 7
        %v786 = vsub.s32 6, %v785
        %v787 = vrot.slane %v678, %v786
        %v788 = vadd.f32 %v778, %v787
        %v789 = vadd.f32 %v782, %v787
        %v790 = vmax.f32 %v774, %v788
        %v791 = vmax.f32 %v775, %v789
        %792 = vset.pattern.permute.xlu0 7
        %793 = vperm.xlu0 %792, %v673
        %v794 = vpop.permute.xlu0 %793
        %796 = vset.pattern.permute.xlu0 7
        %797 = vperm.xlu0 %796, %v674
        %v798 = vpop.permute.xlu0 %797
        %v800 = vlaneseq
        %v801 = vshrl.u32 %v800, 7
        %v802 = vsub.s32 7, %v801
        %v803 = vrot.slane %v678, %v802
        %v804 = vadd.f32 %v794, %v803
        %v805 = vadd.f32 %v798, %v803
        %v806 = vmax.f32 %v790, %v804
        %v807 = vmax.f32 %v791, %v805
        %808 = vset.pattern.permute.xlu0 8
        %809 = vperm.xlu0 %808, %v673
        %v810 = vpop.permute.xlu0 %809
        %812 = vset.pattern.permute.xlu0 8
        %813 = vperm.xlu0 %812, %v674
        %v814 = vpop.permute.xlu0 %813
        %v816 = vlaneseq
        %v817 = vshrl.u32 %v816, 7
        %v818 = vsub.s32 0, %v817
        %v819 = vrot.slane %v679, %v818
        %v820 = vadd.f32 %v810, %v819
        %v821 = vadd.f32 %v814, %v819
        %v822 = vmax.f32 %v806, %v820
        %v823 = vmax.f32 %v807, %v821
        %824 = vset.pattern.permute.xlu0 9
        %825 = vperm.xlu0 %824, %v673
        %v826 = vpop.permute.xlu0 %825
        %828 = vset.pattern.permute.xlu0 9
        %829 = vperm.xlu0 %828, %v674
        %v830 = vpop.permute.xlu0 %829
        %v832 = vlaneseq
        %v833 = vshrl.u32 %v832, 7
        %v834 = vsub.s32 1, %v833
        %v835 = vrot.slane %v679, %v834
        %v836 = vadd.f32 %v826, %v835
        %v837 = vadd.f32 %v830, %v835
        %v838 = vmax.f32 %v822, %v836
        %v839 = vmax.f32 %v823, %v837
        %840 = vset.pattern.permute.xlu0 10
        %841 = vperm.xlu0 %840, %v673
        %v842 = vpop.permute.xlu0 %841
        %844 = vset.pattern.permute.xlu0 10
        %845 = vperm.xlu0 %844, %v674
        %v846 = vpop.permute.xlu0 %845
        %v848 = vlaneseq
        %v849 = vshrl.u32 %v848, 7
        %v850 = vsub.s32 2, %v849
        %v851 = vrot.slane %v679, %v850
        %v852 = vadd.f32 %v842, %v851
        %v853 = vadd.f32 %v846, %v851
        %v854 = vmax.f32 %v838, %v852
        %v855 = vmax.f32 %v839, %v853
        %856 = vset.pattern.permute.xlu0 11
        %857 = vperm.xlu0 %856, %v673
        %v858 = vpop.permute.xlu0 %857
        %860 = vset.pattern.permute.xlu0 11
        %861 = vperm.xlu0 %860, %v674
        %v862 = vpop.permute.xlu0 %861
        %v864 = vlaneseq
        %v865 = vshrl.u32 %v864, 7
        %v866 = vsub.s32 3, %v865
        %v867 = vrot.slane %v679, %v866
        %v868 = vadd.f32 %v858, %v867
        %v869 = vadd.f32 %v862, %v867
        %v870 = vmax.f32 %v854, %v868
        %v871 = vmax.f32 %v855, %v869
        %872 = vset.pattern.permute.xlu0 12
        %873 = vperm.xlu0 %872, %v673
        %v874 = vpop.permute.xlu0 %873
        %876 = vset.pattern.permute.xlu0 12
        %877 = vperm.xlu0 %876, %v674
        %v878 = vpop.permute.xlu0 %877
        %v880 = vlaneseq
        %v881 = vshrl.u32 %v880, 7
        %v882 = vsub.s32 4, %v881
        %v883 = vrot.slane %v679, %v882
        %v884 = vadd.f32 %v874, %v883
        %v885 = vadd.f32 %v878, %v883
        %v886 = vmax.f32 %v870, %v884
        %v887 = vmax.f32 %v871, %v885
        %888 = vset.pattern.permute.xlu0 13
        %889 = vperm.xlu0 %888, %v673
        %v890 = vpop.permute.xlu0 %889
        %892 = vset.pattern.permute.xlu0 13
        %893 = vperm.xlu0 %892, %v674
        %v894 = vpop.permute.xlu0 %893
        %v896 = vlaneseq
        %v897 = vshrl.u32 %v896, 7
        %v898 = vsub.s32 5, %v897
        %v899 = vrot.slane %v679, %v898
        %v900 = vadd.f32 %v890, %v899
        %v901 = vadd.f32 %v894, %v899
        %v902 = vmax.f32 %v886, %v900
        %v903 = vmax.f32 %v887, %v901
        %904 = vset.pattern.permute.xlu0 14
        %905 = vperm.xlu0 %904, %v673
        %v906 = vpop.permute.xlu0 %905
        %908 = vset.pattern.permute.xlu0 14
        %909 = vperm.xlu0 %908, %v674
        %v910 = vpop.permute.xlu0 %909
        %v912 = vlaneseq
        %v913 = vshrl.u32 %v912, 7
        %v914 = vsub.s32 6, %v913
        %v915 = vrot.slane %v679, %v914
        %v916 = vadd.f32 %v906, %v915
        %v917 = vadd.f32 %v910, %v915
        %v918 = vmax.f32 %v902, %v916
        %v919 = vmax.f32 %v903, %v917
        %920 = vset.pattern.permute.xlu0 15
        %921 = vperm.xlu0 %920, %v673
        %v922 = vpop.permute.xlu0 %921
        %924 = vset.pattern.permute.xlu0 15
        %925 = vperm.xlu0 %924, %v674
        %v926 = vpop.permute.xlu0 %925
        %v928 = vlaneseq
        %v929 = vshrl.u32 %v928, 7
        %v930 = vsub.s32 7, %v929
        %v931 = vrot.slane %v679, %v930
        %v932 = vadd.f32 %v922, %v931
        %v933 = vadd.f32 %v926, %v931
        %v934 = vmax.f32 %v918, %v932
        %v935 = vmax.f32 %v919, %v933
        %s936 = sld [smem:[#allocation3 + $0x82]]
        %s937 = smul.u32 %s936, 16
        %s938 = scalar_lea.vmem %s121, %s937 [#allocation4]
        %v939 = vld [vmem:[%s938] sm:$0xff]
        %v940 = vld [vmem:[%s938 + $0x8] sm:$0xff]
        %942 = vset.pattern.permute.xlu0 0
        %943 = vperm.xlu0 %942, %v934
        %v944 = vpop.permute.xlu0 %943
        %947 = vset.pattern.permute.xlu0 0
        %948 = vperm.xlu0 %947, %v935
        %v949 = vpop.permute.xlu0 %948
        %v951 = vlaneseq
        %v952 = vshrl.u32 %v951, 7
        %v953 = vsub.s32 0, %v952
        %v954 = vrot.slane %v939, %v953
        %v955 = vadd.f32 %v944, %v954
        %v956 = vadd.f32 %v949, %v954
        %957 = vset.pattern.permute.xlu0 1
        %958 = vperm.xlu0 %957, %v934
        %v959 = vpop.permute.xlu0 %958
        %961 = vset.pattern.permute.xlu0 1
        %962 = vperm.xlu0 %961, %v935
        %v963 = vpop.permute.xlu0 %962
        %v965 = vlaneseq
        %v966 = vshrl.u32 %v965, 7
        %v967 = vsub.s32 1, %v966
        %v968 = vrot.slane %v939, %v967
        %v969 = vadd.f32 %v959, %v968
        %v970 = vadd.f32 %v963, %v968
        %v971 = vmax.f32 %v955, %v969
        %v972 = vmax.f32 %v956, %v970
        %973 = vset.pattern.permute.xlu0 2
        %974 = vperm.xlu0 %973, %v934
        %v975 = vpop.permute.xlu0 %974
        %977 = vset.pattern.permute.xlu0 2
        %978 = vperm.xlu0 %977, %v935
        %v979 = vpop.permute.xlu0 %978
        %v981 = vlaneseq
        %v982 = vshrl.u32 %v981, 7
        %v983 = vsub.s32 2, %v982
        %v984 = vrot.slane %v939, %v983
        %v985 = vadd.f32 %v975, %v984
        %v986 = vadd.f32 %v979, %v984
        %v987 = vmax.f32 %v971, %v985
        %v988 = vmax.f32 %v972, %v986
        %989 = vset.pattern.permute.xlu0 3
        %990 = vperm.xlu0 %989, %v934
        %v991 = vpop.permute.xlu0 %990
        %993 = vset.pattern.permute.xlu0 3
        %994 = vperm.xlu0 %993, %v935
        %v995 = vpop.permute.xlu0 %994
        %v997 = vlaneseq
        %v998 = vshrl.u32 %v997, 7
        %v999 = vsub.s32 3, %v998
        %v1000 = vrot.slane %v939, %v999
        %v1001 = vadd.f32 %v991, %v1000
        %v1002 = vadd.f32 %v995, %v1000
        %v1003 = vmax.f32 %v987, %v1001
        %v1004 = vmax.f32 %v988, %v1002
        %1005 = vset.pattern.permute.xlu0 4
        %1006 = vperm.xlu0 %1005, %v934
        %v1007 = vpop.permute.xlu0 %1006
        %1009 = vset.pattern.permute.xlu0 4
        %1010 = vperm.xlu0 %1009, %v935
        %v1011 = vpop.permute.xlu0 %1010
        %v1013 = vlaneseq
        %v1014 = vshrl.u32 %v1013, 7
        %v1015 = vsub.s32 4, %v1014
        %v1016 = vrot.slane %v939, %v1015
        %v1017 = vadd.f32 %v1007, %v1016
        %v1018 = vadd.f32 %v1011, %v1016
        %v1019 = vmax.f32 %v1003, %v1017
        %v1020 = vmax.f32 %v1004, %v1018
        %1021 = vset.pattern.permute.xlu0 5
        %1022 = vperm.xlu0 %1021, %v934
        %v1023 = vpop.permute.xlu0 %1022
        %1025 = vset.pattern.permute.xlu0 5
        %1026 = vperm.xlu0 %1025, %v935
        %v1027 = vpop.permute.xlu0 %1026
        %v1029 = vlaneseq
        %v1030 = vshrl.u32 %v1029, 7
        %v1031 = vsub.s32 5, %v1030
        %v1032 = vrot.slane %v939, %v1031
        %v1033 = vadd.f32 %v1023, %v1032
        %v1034 = vadd.f32 %v1027, %v1032
        %v1035 = vmax.f32 %v1019, %v1033
        %v1036 = vmax.f32 %v1020, %v1034
        %1037 = vset.pattern.permute.xlu0 6
        %1038 = vperm.xlu0 %1037, %v934
        %v1039 = vpop.permute.xlu0 %1038
        %1041 = vset.pattern.permute.xlu0 6
        %1042 = vperm.xlu0 %1041, %v935
        %v1043 = vpop.permute.xlu0 %1042
        %v1045 = vlaneseq
        %v1046 = vshrl.u32 %v1045, 7
        %v1047 = vsub.s32 6, %v1046
        %v1048 = vrot.slane %v939, %v1047
        %v1049 = vadd.f32 %v1039, %v1048
        %v1050 = vadd.f32 %v1043, %v1048
        %v1051 = vmax.f32 %v1035, %v1049
        %v1052 = vmax.f32 %v1036, %v1050
        %1053 = vset.pattern.permute.xlu0 7
        %1054 = vperm.xlu0 %1053, %v934
        %v1055 = vpop.permute.xlu0 %1054
        %1057 = vset.pattern.permute.xlu0 7
        %1058 = vperm.xlu0 %1057, %v935
        %v1059 = vpop.permute.xlu0 %1058
        %v1061 = vlaneseq
        %v1062 = vshrl.u32 %v1061, 7
        %v1063 = vsub.s32 7, %v1062
        %v1064 = vrot.slane %v939, %v1063
        %v1065 = vadd.f32 %v1055, %v1064
        %v1066 = vadd.f32 %v1059, %v1064
        %v1067 = vmax.f32 %v1051, %v1065
        %v1068 = vmax.f32 %v1052, %v1066
        %1069 = vset.pattern.permute.xlu0 8
        %1070 = vperm.xlu0 %1069, %v934
        %v1071 = vpop.permute.xlu0 %1070
        %1073 = vset.pattern.permute.xlu0 8
        %1074 = vperm.xlu0 %1073, %v935
        %v1075 = vpop.permute.xlu0 %1074
        %v1077 = vlaneseq
        %v1078 = vshrl.u32 %v1077, 7
        %v1079 = vsub.s32 0, %v1078
        %v1080 = vrot.slane %v940, %v1079
        %v1081 = vadd.f32 %v1071, %v1080
        %v1082 = vadd.f32 %v1075, %v1080
        %v1083 = vmax.f32 %v1067, %v1081
        %v1084 = vmax.f32 %v1068, %v1082
        %1085 = vset.pattern.permute.xlu0 9
        %1086 = vperm.xlu0 %1085, %v934
        %v1087 = vpop.permute.xlu0 %1086
        %1089 = vset.pattern.permute.xlu0 9
        %1090 = vperm.xlu0 %1089, %v935
        %v1091 = vpop.permute.xlu0 %1090
        %v1093 = vlaneseq
        %v1094 = vshrl.u32 %v1093, 7
        %v1095 = vsub.s32 1, %v1094
        %v1096 = vrot.slane %v940, %v1095
        %v1097 = vadd.f32 %v1087, %v1096
        %v1098 = vadd.f32 %v1091, %v1096
        %v1099 = vmax.f32 %v1083, %v1097
        %v1100 = vmax.f32 %v1084, %v1098
        %1101 = vset.pattern.permute.xlu0 10
        %1102 = vperm.xlu0 %1101, %v934
        %v1103 = vpop.permute.xlu0 %1102
        %1105 = vset.pattern.permute.xlu0 10
        %1106 = vperm.xlu0 %1105, %v935
        %v1107 = vpop.permute.xlu0 %1106
        %v1109 = vlaneseq
        %v1110 = vshrl.u32 %v1109, 7
        %v1111 = vsub.s32 2, %v1110
        %v1112 = vrot.slane %v940, %v1111
        %v1113 = vadd.f32 %v1103, %v1112
        %v1114 = vadd.f32 %v1107, %v1112
        %v1115 = vmax.f32 %v1099, %v1113
        %v1116 = vmax.f32 %v1100, %v1114
        %1117 = vset.pattern.permute.xlu0 11
        %1118 = vperm.xlu0 %1117, %v934
        %v1119 = vpop.permute.xlu0 %1118
        %1121 = vset.pattern.permute.xlu0 11
        %1122 = vperm.xlu0 %1121, %v935
        %v1123 = vpop.permute.xlu0 %1122
        %v1125 = vlaneseq
        %v1126 = vshrl.u32 %v1125, 7
        %v1127 = vsub.s32 3, %v1126
        %v1128 = vrot.slane %v940, %v1127
        %v1129 = vadd.f32 %v1119, %v1128
        %v1130 = vadd.f32 %v1123, %v1128
        %v1131 = vmax.f32 %v1115, %v1129
        %v1132 = vmax.f32 %v1116, %v1130
        %1133 = vset.pattern.permute.xlu0 12
        %1134 = vperm.xlu0 %1133, %v934
        %v1135 = vpop.permute.xlu0 %1134
        %1137 = vset.pattern.permute.xlu0 12
        %1138 = vperm.xlu0 %1137, %v935
        %v1139 = vpop.permute.xlu0 %1138
        %v1141 = vlaneseq
        %v1142 = vshrl.u32 %v1141, 7
        %v1143 = vsub.s32 4, %v1142
        %v1144 = vrot.slane %v940, %v1143
        %v1145 = vadd.f32 %v1135, %v1144
        %v1146 = vadd.f32 %v1139, %v1144
        %v1147 = vmax.f32 %v1131, %v1145
        %v1148 = vmax.f32 %v1132, %v1146
        %1149 = vset.pattern.permute.xlu0 13
        %1150 = vperm.xlu0 %1149, %v934
        %v1151 = vpop.permute.xlu0 %1150
        %1153 = vset.pattern.permute.xlu0 13
        %1154 = vperm.xlu0 %1153, %v935
        %v1155 = vpop.permute.xlu0 %1154
        %v1157 = vlaneseq
        %v1158 = vshrl.u32 %v1157, 7
        %v1159 = vsub.s32 5, %v1158
        %v1160 = vrot.slane %v940, %v1159
        %v1161 = vadd.f32 %v1151, %v1160
        %v1162 = vadd.f32 %v1155, %v1160
        %v1163 = vmax.f32 %v1147, %v1161
        %v1164 = vmax.f32 %v1148, %v1162
        %1165 = vset.pattern.permute.xlu0 14
        %1166 = vperm.xlu0 %1165, %v934
        %v1167 = vpop.permute.xlu0 %1166
        %1169 = vset.pattern.permute.xlu0 14
        %1170 = vperm.xlu0 %1169, %v935
        %v1171 = vpop.permute.xlu0 %1170
        %v1173 = vlaneseq
        %v1174 = vshrl.u32 %v1173, 7
        %v1175 = vsub.s32 6, %v1174
        %v1176 = vrot.slane %v940, %v1175
        %v1177 = vadd.f32 %v1167, %v1176
        %v1178 = vadd.f32 %v1171, %v1176
        %v1179 = vmax.f32 %v1163, %v1177
        %v1180 = vmax.f32 %v1164, %v1178
        %1181 = vset.pattern.permute.xlu0 15
        %1182 = vperm.xlu0 %1181, %v934
        %v1183 = vpop.permute.xlu0 %1182
        %1185 = vset.pattern.permute.xlu0 15
        %1186 = vperm.xlu0 %1185, %v935
        %v1187 = vpop.permute.xlu0 %1186
        %v1189 = vlaneseq
        %v1190 = vshrl.u32 %v1189, 7
        %v1191 = vsub.s32 7, %v1190
        %v1192 = vrot.slane %v940, %v1191
        %v1193 = vadd.f32 %v1183, %v1192
        %v1194 = vadd.f32 %v1187, %v1192
        %v1195 = vmax.f32 %v1179, %v1193
        %v1196 = vmax.f32 %v1180, %v1194
        %s1197 = scalar_lea.vmem %s139, 16 [#allocation7]
        %1198 = vst.msk [vmem:[%s1197] sm:$0xff] %vm667, %v1195
        %1199 = vst.msk [vmem:[%s1197 + $0x8] sm:$0xff] %vm667, %v1196
        %s1200 = sld [smem:[#allocation3 + $0x100]]
        %s1201 = smul.u32 %s1200, 16
        %s1202 = scalar_lea.vmem %s121, %s1201 [#allocation4]
        %v1203 = vld [vmem:[%s1202] sm:$0xff]
        %v1204 = vld [vmem:[%s1202 + $0x8] sm:$0xff]
        %s1205 = sld [smem:[#allocation3 + $0x101]]
        %s1206 = smul.u32 %s1205, 16
        %s1207 = scalar_lea.vmem %s121, %s1206 [#allocation4]
        %v1208 = vld [vmem:[%s1207] sm:$0xff]
        %v1209 = vld [vmem:[%s1207 + $0x8] sm:$0xff]
        %1211 = vset.pattern.permute.xlu0 0
        %1212 = vperm.xlu0 %1211, %v1203
        %v1213 = vpop.permute.xlu0 %1212
        %1216 = vset.pattern.permute.xlu0 0
        %1217 = vperm.xlu0 %1216, %v1204
        %v1218 = vpop.permute.xlu0 %1217
        %v1220 = vlaneseq
        %v1221 = vshrl.u32 %v1220, 7
        %v1222 = vsub.s32 0, %v1221
        %v1223 = vrot.slane %v1208, %v1222
        %v1224 = vadd.f32 %v1213, %v1223
        %v1225 = vadd.f32 %v1218, %v1223
        %1226 = vset.pattern.permute.xlu0 1
        %1227 = vperm.xlu0 %1226, %v1203
        %v1228 = vpop.permute.xlu0 %1227
        %1230 = vset.pattern.permute.xlu0 1
        %1231 = vperm.xlu0 %1230, %v1204
        %v1232 = vpop.permute.xlu0 %1231
        %v1234 = vlaneseq
        %v1235 = vshrl.u32 %v1234, 7
        %v1236 = vsub.s32 1, %v1235
        %v1237 = vrot.slane %v1208, %v1236
        %v1238 = vadd.f32 %v1228, %v1237
        %v1239 = vadd.f32 %v1232, %v1237
        %v1240 = vmax.f32 %v1224, %v1238
        %v1241 = vmax.f32 %v1225, %v1239
        %1242 = vset.pattern.permute.xlu0 2
        %1243 = vperm.xlu0 %1242, %v1203
        %v1244 = vpop.permute.xlu0 %1243
        %1246 = vset.pattern.permute.xlu0 2
        %1247 = vperm.xlu0 %1246, %v1204
        %v1248 = vpop.permute.xlu0 %1247
        %v1250 = vlaneseq
        %v1251 = vshrl.u32 %v1250, 7
        %v1252 = vsub.s32 2, %v1251
        %v1253 = vrot.slane %v1208, %v1252
        %v1254 = vadd.f32 %v1244, %v1253
        %v1255 = vadd.f32 %v1248, %v1253
        %v1256 = vmax.f32 %v1240, %v1254
        %v1257 = vmax.f32 %v1241, %v1255
        %1258 = vset.pattern.permute.xlu0 3
        %1259 = vperm.xlu0 %1258, %v1203
        %v1260 = vpop.permute.xlu0 %1259
        %1262 = vset.pattern.permute.xlu0 3
        %1263 = vperm.xlu0 %1262, %v1204
        %v1264 = vpop.permute.xlu0 %1263
        %v1266 = vlaneseq
        %v1267 = vshrl.u32 %v1266, 7
        %v1268 = vsub.s32 3, %v1267
        %v1269 = vrot.slane %v1208, %v1268
        %v1270 = vadd.f32 %v1260, %v1269
        %v1271 = vadd.f32 %v1264, %v1269
        %v1272 = vmax.f32 %v1256, %v1270
        %v1273 = vmax.f32 %v1257, %v1271
        %1274 = vset.pattern.permute.xlu0 4
        %1275 = vperm.xlu0 %1274, %v1203
        %v1276 = vpop.permute.xlu0 %1275
        %1278 = vset.pattern.permute.xlu0 4
        %1279 = vperm.xlu0 %1278, %v1204
        %v1280 = vpop.permute.xlu0 %1279
        %v1282 = vlaneseq
        %v1283 = vshrl.u32 %v1282, 7
        %v1284 = vsub.s32 4, %v1283
        %v1285 = vrot.slane %v1208, %v1284
        %v1286 = vadd.f32 %v1276, %v1285
        %v1287 = vadd.f32 %v1280, %v1285
        %v1288 = vmax.f32 %v1272, %v1286
        %v1289 = vmax.f32 %v1273, %v1287
        %1290 = vset.pattern.permute.xlu0 5
        %1291 = vperm.xlu0 %1290, %v1203
        %v1292 = vpop.permute.xlu0 %1291
        %1294 = vset.pattern.permute.xlu0 5
        %1295 = vperm.xlu0 %1294, %v1204
        %v1296 = vpop.permute.xlu0 %1295
        %v1298 = vlaneseq
        %v1299 = vshrl.u32 %v1298, 7
        %v1300 = vsub.s32 5, %v1299
        %v1301 = vrot.slane %v1208, %v1300
        %v1302 = vadd.f32 %v1292, %v1301
        %v1303 = vadd.f32 %v1296, %v1301
        %v1304 = vmax.f32 %v1288, %v1302
        %v1305 = vmax.f32 %v1289, %v1303
        %1306 = vset.pattern.permute.xlu0 6
        %1307 = vperm.xlu0 %1306, %v1203
        %v1308 = vpop.permute.xlu0 %1307
        %1310 = vset.pattern.permute.xlu0 6
        %1311 = vperm.xlu0 %1310, %v1204
        %v1312 = vpop.permute.xlu0 %1311
        %v1314 = vlaneseq
        %v1315 = vshrl.u32 %v1314, 7
        %v1316 = vsub.s32 6, %v1315
        %v1317 = vrot.slane %v1208, %v1316
        %v1318 = vadd.f32 %v1308, %v1317
        %v1319 = vadd.f32 %v1312, %v1317
        %v1320 = vmax.f32 %v1304, %v1318
        %v1321 = vmax.f32 %v1305, %v1319
        %1322 = vset.pattern.permute.xlu0 7
        %1323 = vperm.xlu0 %1322, %v1203
        %v1324 = vpop.permute.xlu0 %1323
        %1326 = vset.pattern.permute.xlu0 7
        %1327 = vperm.xlu0 %1326, %v1204
        %v1328 = vpop.permute.xlu0 %1327
        %v1330 = vlaneseq
        %v1331 = vshrl.u32 %v1330, 7
        %v1332 = vsub.s32 7, %v1331
        %v1333 = vrot.slane %v1208, %v1332
        %v1334 = vadd.f32 %v1324, %v1333
        %v1335 = vadd.f32 %v1328, %v1333
        %v1336 = vmax.f32 %v1320, %v1334
        %v1337 = vmax.f32 %v1321, %v1335
        %1338 = vset.pattern.permute.xlu0 8
        %1339 = vperm.xlu0 %1338, %v1203
        %v1340 = vpop.permute.xlu0 %1339
        %1342 = vset.pattern.permute.xlu0 8
        %1343 = vperm.xlu0 %1342, %v1204
        %v1344 = vpop.permute.xlu0 %1343
        %v1346 = vlaneseq
        %v1347 = vshrl.u32 %v1346, 7
        %v1348 = vsub.s32 0, %v1347
        %v1349 = vrot.slane %v1209, %v1348
        %v1350 = vadd.f32 %v1340, %v1349
        %v1351 = vadd.f32 %v1344, %v1349
        %v1352 = vmax.f32 %v1336, %v1350
        %v1353 = vmax.f32 %v1337, %v1351
        %1354 = vset.pattern.permute.xlu0 9
        %1355 = vperm.xlu0 %1354, %v1203
        %v1356 = vpop.permute.xlu0 %1355
        %1358 = vset.pattern.permute.xlu0 9
        %1359 = vperm.xlu0 %1358, %v1204
        %v1360 = vpop.permute.xlu0 %1359
        %v1362 = vlaneseq
        %v1363 = vshrl.u32 %v1362, 7
        %v1364 = vsub.s32 1, %v1363
        %v1365 = vrot.slane %v1209, %v1364
        %v1366 = vadd.f32 %v1356, %v1365
        %v1367 = vadd.f32 %v1360, %v1365
        %v1368 = vmax.f32 %v1352, %v1366
        %v1369 = vmax.f32 %v1353, %v1367
        %1370 = vset.pattern.permute.xlu0 10
        %1371 = vperm.xlu0 %1370, %v1203
        %v1372 = vpop.permute.xlu0 %1371
        %1374 = vset.pattern.permute.xlu0 10
        %1375 = vperm.xlu0 %1374, %v1204
        %v1376 = vpop.permute.xlu0 %1375
        %v1378 = vlaneseq
        %v1379 = vshrl.u32 %v1378, 7
        %v1380 = vsub.s32 2, %v1379
        %v1381 = vrot.slane %v1209, %v1380
        %v1382 = vadd.f32 %v1372, %v1381
        %v1383 = vadd.f32 %v1376, %v1381
        %v1384 = vmax.f32 %v1368, %v1382
        %v1385 = vmax.f32 %v1369, %v1383
        %1386 = vset.pattern.permute.xlu0 11
        %1387 = vperm.xlu0 %1386, %v1203
        %v1388 = vpop.permute.xlu0 %1387
        %1390 = vset.pattern.permute.xlu0 11
        %1391 = vperm.xlu0 %1390, %v1204
        %v1392 = vpop.permute.xlu0 %1391
        %v1394 = vlaneseq
        %v1395 = vshrl.u32 %v1394, 7
        %v1396 = vsub.s32 3, %v1395
        %v1397 = vrot.slane %v1209, %v1396
        %v1398 = vadd.f32 %v1388, %v1397
        %v1399 = vadd.f32 %v1392, %v1397
        %v1400 = vmax.f32 %v1384, %v1398
        %v1401 = vmax.f32 %v1385, %v1399
        %1402 = vset.pattern.permute.xlu0 12
        %1403 = vperm.xlu0 %1402, %v1203
        %v1404 = vpop.permute.xlu0 %1403
        %1406 = vset.pattern.permute.xlu0 12
        %1407 = vperm.xlu0 %1406, %v1204
        %v1408 = vpop.permute.xlu0 %1407
        %v1410 = vlaneseq
        %v1411 = vshrl.u32 %v1410, 7
        %v1412 = vsub.s32 4, %v1411
        %v1413 = vrot.slane %v1209, %v1412
        %v1414 = vadd.f32 %v1404, %v1413
        %v1415 = vadd.f32 %v1408, %v1413
        %v1416 = vmax.f32 %v1400, %v1414
        %v1417 = vmax.f32 %v1401, %v1415
        %1418 = vset.pattern.permute.xlu0 13
        %1419 = vperm.xlu0 %1418, %v1203
        %v1420 = vpop.permute.xlu0 %1419
        %1422 = vset.pattern.permute.xlu0 13
        %1423 = vperm.xlu0 %1422, %v1204
        %v1424 = vpop.permute.xlu0 %1423
        %v1426 = vlaneseq
        %v1427 = vshrl.u32 %v1426, 7
        %v1428 = vsub.s32 5, %v1427
        %v1429 = vrot.slane %v1209, %v1428
        %v1430 = vadd.f32 %v1420, %v1429
        %v1431 = vadd.f32 %v1424, %v1429
        %v1432 = vmax.f32 %v1416, %v1430
        %v1433 = vmax.f32 %v1417, %v1431
        %1434 = vset.pattern.permute.xlu0 14
        %1435 = vperm.xlu0 %1434, %v1203
        %v1436 = vpop.permute.xlu0 %1435
        %1438 = vset.pattern.permute.xlu0 14
        %1439 = vperm.xlu0 %1438, %v1204
        %v1440 = vpop.permute.xlu0 %1439
        %v1442 = vlaneseq
        %v1443 = vshrl.u32 %v1442, 7
        %v1444 = vsub.s32 6, %v1443
        %v1445 = vrot.slane %v1209, %v1444
        %v1446 = vadd.f32 %v1436, %v1445
        %v1447 = vadd.f32 %v1440, %v1445
        %v1448 = vmax.f32 %v1432, %v1446
        %v1449 = vmax.f32 %v1433, %v1447
        %1450 = vset.pattern.permute.xlu0 15
        %1451 = vperm.xlu0 %1450, %v1203
        %v1452 = vpop.permute.xlu0 %1451
        %1454 = vset.pattern.permute.xlu0 15
        %1455 = vperm.xlu0 %1454, %v1204
        %v1456 = vpop.permute.xlu0 %1455
        %v1458 = vlaneseq
        %v1459 = vshrl.u32 %v1458, 7
        %v1460 = vsub.s32 7, %v1459
        %v1461 = vrot.slane %v1209, %v1460
        %v1462 = vadd.f32 %v1452, %v1461
        %v1463 = vadd.f32 %v1456, %v1461
        %v1464 = vmax.f32 %v1448, %v1462
        %v1465 = vmax.f32 %v1449, %v1463
        %s1466 = sld [smem:[#allocation3 + $0x102]]
        %s1467 = smul.u32 %s1466, 16
        %s1468 = scalar_lea.vmem %s121, %s1467 [#allocation4]
        %v1469 = vld [vmem:[%s1468] sm:$0xff]
        %v1470 = vld [vmem:[%s1468 + $0x8] sm:$0xff]
        %1472 = vset.pattern.permute.xlu0 0
        %1473 = vperm.xlu0 %1472, %v1464
        %v1474 = vpop.permute.xlu0 %1473
        %1477 = vset.pattern.permute.xlu0 0
        %1478 = vperm.xlu0 %1477, %v1465
        %v1479 = vpop.permute.xlu0 %1478
        %v1481 = vlaneseq
        %v1482 = vshrl.u32 %v1481, 7
        %v1483 = vsub.s32 0, %v1482
        %v1484 = vrot.slane %v1469, %v1483
        %v1485 = vadd.f32 %v1474, %v1484
        %v1486 = vadd.f32 %v1479, %v1484
        %1487 = vset.pattern.permute.xlu0 1
        %1488 = vperm.xlu0 %1487, %v1464
        %v1489 = vpop.permute.xlu0 %1488
        %1491 = vset.pattern.permute.xlu0 1
        %1492 = vperm.xlu0 %1491, %v1465
        %v1493 = vpop.permute.xlu0 %1492
        %v1495 = vlaneseq
        %v1496 = vshrl.u32 %v1495, 7
        %v1497 = vsub.s32 1, %v1496
        %v1498 = vrot.slane %v1469, %v1497
        %v1499 = vadd.f32 %v1489, %v1498
        %v1500 = vadd.f32 %v1493, %v1498
        %v1501 = vmax.f32 %v1485, %v1499
        %v1502 = vmax.f32 %v1486, %v1500
        %1503 = vset.pattern.permute.xlu0 2
        %1504 = vperm.xlu0 %1503, %v1464
        %v1505 = vpop.permute.xlu0 %1504
        %1507 = vset.pattern.permute.xlu0 2
        %1508 = vperm.xlu0 %1507, %v1465
        %v1509 = vpop.permute.xlu0 %1508
        %v1511 = vlaneseq
        %v1512 = vshrl.u32 %v1511, 7
        %v1513 = vsub.s32 2, %v1512
        %v1514 = vrot.slane %v1469, %v1513
        %v1515 = vadd.f32 %v1505, %v1514
        %v1516 = vadd.f32 %v1509, %v1514
        %v1517 = vmax.f32 %v1501, %v1515
        %v1518 = vmax.f32 %v1502, %v1516
        %1519 = vset.pattern.permute.xlu0 3
        %1520 = vperm.xlu0 %1519, %v1464
        %v1521 = vpop.permute.xlu0 %1520
        %1523 = vset.pattern.permute.xlu0 3
        %1524 = vperm.xlu0 %1523, %v1465
        %v1525 = vpop.permute.xlu0 %1524
        %v1527 = vlaneseq
        %v1528 = vshrl.u32 %v1527, 7
        %v1529 = vsub.s32 3, %v1528
        %v1530 = vrot.slane %v1469, %v1529
        %v1531 = vadd.f32 %v1521, %v1530
        %v1532 = vadd.f32 %v1525, %v1530
        %v1533 = vmax.f32 %v1517, %v1531
        %v1534 = vmax.f32 %v1518, %v1532
        %1535 = vset.pattern.permute.xlu0 4
        %1536 = vperm.xlu0 %1535, %v1464
        %v1537 = vpop.permute.xlu0 %1536
        %1539 = vset.pattern.permute.xlu0 4
        %1540 = vperm.xlu0 %1539, %v1465
        %v1541 = vpop.permute.xlu0 %1540
        %v1543 = vlaneseq
        %v1544 = vshrl.u32 %v1543, 7
        %v1545 = vsub.s32 4, %v1544
        %v1546 = vrot.slane %v1469, %v1545
        %v1547 = vadd.f32 %v1537, %v1546
        %v1548 = vadd.f32 %v1541, %v1546
        %v1549 = vmax.f32 %v1533, %v1547
        %v1550 = vmax.f32 %v1534, %v1548
        %1551 = vset.pattern.permute.xlu0 5
        %1552 = vperm.xlu0 %1551, %v1464
        %v1553 = vpop.permute.xlu0 %1552
        %1555 = vset.pattern.permute.xlu0 5
        %1556 = vperm.xlu0 %1555, %v1465
        %v1557 = vpop.permute.xlu0 %1556
        %v1559 = vlaneseq
        %v1560 = vshrl.u32 %v1559, 7
        %v1561 = vsub.s32 5, %v1560
        %v1562 = vrot.slane %v1469, %v1561
        %v1563 = vadd.f32 %v1553, %v1562
        %v1564 = vadd.f32 %v1557, %v1562
        %v1565 = vmax.f32 %v1549, %v1563
        %v1566 = vmax.f32 %v1550, %v1564
        %1567 = vset.pattern.permute.xlu0 6
        %1568 = vperm.xlu0 %1567, %v1464
        %v1569 = vpop.permute.xlu0 %1568
        %1571 = vset.pattern.permute.xlu0 6
        %1572 = vperm.xlu0 %1571, %v1465
        %v1573 = vpop.permute.xlu0 %1572
        %v1575 = vlaneseq
        %v1576 = vshrl.u32 %v1575, 7
        %v1577 = vsub.s32 6, %v1576
        %v1578 = vrot.slane %v1469, %v1577
        %v1579 = vadd.f32 %v1569, %v1578
        %v1580 = vadd.f32 %v1573, %v1578
        %v1581 = vmax.f32 %v1565, %v1579
        %v1582 = vmax.f32 %v1566, %v1580
        %1583 = vset.pattern.permute.xlu0 7
        %1584 = vperm.xlu0 %1583, %v1464
        %v1585 = vpop.permute.xlu0 %1584
        %1587 = vset.pattern.permute.xlu0 7
        %1588 = vperm.xlu0 %1587, %v1465
        %v1589 = vpop.permute.xlu0 %1588
        %v1591 = vlaneseq
        %v1592 = vshrl.u32 %v1591, 7
        %v1593 = vsub.s32 7, %v1592
        %v1594 = vrot.slane %v1469, %v1593
        %v1595 = vadd.f32 %v1585, %v1594
        %v1596 = vadd.f32 %v1589, %v1594
        %v1597 = vmax.f32 %v1581, %v1595
        %v1598 = vmax.f32 %v1582, %v1596
        %1599 = vset.pattern.permute.xlu0 8
        %1600 = vperm.xlu0 %1599, %v1464
        %v1601 = vpop.permute.xlu0 %1600
        %1603 = vset.pattern.permute.xlu0 8
        %1604 = vperm.xlu0 %1603, %v1465
        %v1605 = vpop.permute.xlu0 %1604
        %v1607 = vlaneseq
        %v1608 = vshrl.u32 %v1607, 7
        %v1609 = vsub.s32 0, %v1608
        %v1610 = vrot.slane %v1470, %v1609
        %v1611 = vadd.f32 %v1601, %v1610
        %v1612 = vadd.f32 %v1605, %v1610
        %v1613 = vmax.f32 %v1597, %v1611
        %v1614 = vmax.f32 %v1598, %v1612
        %1615 = vset.pattern.permute.xlu0 9
        %1616 = vperm.xlu0 %1615, %v1464
        %v1617 = vpop.permute.xlu0 %1616
        %1619 = vset.pattern.permute.xlu0 9
        %1620 = vperm.xlu0 %1619, %v1465
        %v1621 = vpop.permute.xlu0 %1620
        %v1623 = vlaneseq
        %v1624 = vshrl.u32 %v1623, 7
        %v1625 = vsub.s32 1, %v1624
        %v1626 = vrot.slane %v1470, %v1625
        %v1627 = vadd.f32 %v1617, %v1626
        %v1628 = vadd.f32 %v1621, %v1626
        %v1629 = vmax.f32 %v1613, %v1627
        %v1630 = vmax.f32 %v1614, %v1628
        %1631 = vset.pattern.permute.xlu0 10
        %1632 = vperm.xlu0 %1631, %v1464
        %v1633 = vpop.permute.xlu0 %1632
        %1635 = vset.pattern.permute.xlu0 10
        %1636 = vperm.xlu0 %1635, %v1465
        %v1637 = vpop.permute.xlu0 %1636
        %v1639 = vlaneseq
        %v1640 = vshrl.u32 %v1639, 7
        %v1641 = vsub.s32 2, %v1640
        %v1642 = vrot.slane %v1470, %v1641
        %v1643 = vadd.f32 %v1633, %v1642
        %v1644 = vadd.f32 %v1637, %v1642
        %v1645 = vmax.f32 %v1629, %v1643
        %v1646 = vmax.f32 %v1630, %v1644
        %1647 = vset.pattern.permute.xlu0 11
        %1648 = vperm.xlu0 %1647, %v1464
        %v1649 = vpop.permute.xlu0 %1648
        %1651 = vset.pattern.permute.xlu0 11
        %1652 = vperm.xlu0 %1651, %v1465
        %v1653 = vpop.permute.xlu0 %1652
        %v1655 = vlaneseq
        %v1656 = vshrl.u32 %v1655, 7
        %v1657 = vsub.s32 3, %v1656
        %v1658 = vrot.slane %v1470, %v1657
        %v1659 = vadd.f32 %v1649, %v1658
        %v1660 = vadd.f32 %v1653, %v1658
        %v1661 = vmax.f32 %v1645, %v1659
        %v1662 = vmax.f32 %v1646, %v1660
        %1663 = vset.pattern.permute.xlu0 12
        %1664 = vperm.xlu0 %1663, %v1464
        %v1665 = vpop.permute.xlu0 %1664
        %1667 = vset.pattern.permute.xlu0 12
        %1668 = vperm.xlu0 %1667, %v1465
        %v1669 = vpop.permute.xlu0 %1668
        %v1671 = vlaneseq
        %v1672 = vshrl.u32 %v1671, 7
        %v1673 = vsub.s32 4, %v1672
        %v1674 = vrot.slane %v1470, %v1673
        %v1675 = vadd.f32 %v1665, %v1674
        %v1676 = vadd.f32 %v1669, %v1674
        %v1677 = vmax.f32 %v1661, %v1675
        %v1678 = vmax.f32 %v1662, %v1676
        %1679 = vset.pattern.permute.xlu0 13
        %1680 = vperm.xlu0 %1679, %v1464
        %v1681 = vpop.permute.xlu0 %1680
        %1683 = vset.pattern.permute.xlu0 13
        %1684 = vperm.xlu0 %1683, %v1465
        %v1685 = vpop.permute.xlu0 %1684
        %v1687 = vlaneseq
        %v1688 = vshrl.u32 %v1687, 7
        %v1689 = vsub.s32 5, %v1688
        %v1690 = vrot.slane %v1470, %v1689
        %v1691 = vadd.f32 %v1681, %v1690
        %v1692 = vadd.f32 %v1685, %v1690
        %v1693 = vmax.f32 %v1677, %v1691
        %v1694 = vmax.f32 %v1678, %v1692
        %1695 = vset.pattern.permute.xlu0 14
        %1696 = vperm.xlu0 %1695, %v1464
        %v1697 = vpop.permute.xlu0 %1696
        %1699 = vset.pattern.permute.xlu0 14
        %1700 = vperm.xlu0 %1699, %v1465
        %v1701 = vpop.permute.xlu0 %1700
        %v1703 = vlaneseq
        %v1704 = vshrl.u32 %v1703, 7
        %v1705 = vsub.s32 6, %v1704
        %v1706 = vrot.slane %v1470, %v1705
        %v1707 = vadd.f32 %v1697, %v1706
        %v1708 = vadd.f32 %v1701, %v1706
        %v1709 = vmax.f32 %v1693, %v1707
        %v1710 = vmax.f32 %v1694, %v1708
        %1711 = vset.pattern.permute.xlu0 15
        %1712 = vperm.xlu0 %1711, %v1464
        %v1713 = vpop.permute.xlu0 %1712
        %1715 = vset.pattern.permute.xlu0 15
        %1716 = vperm.xlu0 %1715, %v1465
        %v1717 = vpop.permute.xlu0 %1716
        %v1719 = vlaneseq
        %v1720 = vshrl.u32 %v1719, 7
        %v1721 = vsub.s32 7, %v1720
        %v1722 = vrot.slane %v1470, %v1721
        %v1723 = vadd.f32 %v1713, %v1722
        %v1724 = vadd.f32 %v1717, %v1722
        %v1725 = vmax.f32 %v1709, %v1723
        %v1726 = vmax.f32 %v1710, %v1724
        %s1727 = scalar_lea.vmem %s139, 32 [#allocation7]
        %1728 = vst.msk [vmem:[%s1727] sm:$0xff] %vm667, %v1725
        %1729 = vst.msk [vmem:[%s1727 + $0x8] sm:$0xff] %vm667, %v1726
        %s1730 = sld [smem:[#allocation3 + $0x180]]
        %s1731 = smul.u32 %s1730, 16
        %s1732 = scalar_lea.vmem %s121, %s1731 [#allocation4]
        %v1733 = vld [vmem:[%s1732] sm:$0xff]
        %v1734 = vld [vmem:[%s1732 + $0x8] sm:$0xff]
        %s1735 = sld [smem:[#allocation3 + $0x181]]
        %s1736 = smul.u32 %s1735, 16
        %s1737 = scalar_lea.vmem %s121, %s1736 [#allocation4]
        %v1738 = vld [vmem:[%s1737] sm:$0xff]
        %v1739 = vld [vmem:[%s1737 + $0x8] sm:$0xff]
        %1741 = vset.pattern.permute.xlu0 0
        %1742 = vperm.xlu0 %1741, %v1733
        %v1743 = vpop.permute.xlu0 %1742
        %1746 = vset.pattern.permute.xlu0 0
        %1747 = vperm.xlu0 %1746, %v1734
        %v1748 = vpop.permute.xlu0 %1747
        %v1750 = vlaneseq
        %v1751 = vshrl.u32 %v1750, 7
        %v1752 = vsub.s32 0, %v1751
        %v1753 = vrot.slane %v1738, %v1752
        %v1754 = vadd.f32 %v1743, %v1753
        %v1755 = vadd.f32 %v1748, %v1753
        %1756 = vset.pattern.permute.xlu0 1
        %1757 = vperm.xlu0 %1756, %v1733
        %v1758 = vpop.permute.xlu0 %1757
        %1760 = vset.pattern.permute.xlu0 1
        %1761 = vperm.xlu0 %1760, %v1734
        %v1762 = vpop.permute.xlu0 %1761
        %v1764 = vlaneseq
        %v1765 = vshrl.u32 %v1764, 7
        %v1766 = vsub.s32 1, %v1765
        %v1767 = vrot.slane %v1738, %v1766
        %v1768 = vadd.f32 %v1758, %v1767
        %v1769 = vadd.f32 %v1762, %v1767
        %v1770 = vmax.f32 %v1754, %v1768
        %v1771 = vmax.f32 %v1755, %v1769
        %1772 = vset.pattern.permute.xlu0 2
        %1773 = vperm.xlu0 %1772, %v1733
        %v1774 = vpop.permute.xlu0 %1773
        %1776 = vset.pattern.permute.xlu0 2
        %1777 = vperm.xlu0 %1776, %v1734
        %v1778 = vpop.permute.xlu0 %1777
        %v1780 = vlaneseq
        %v1781 = vshrl.u32 %v1780, 7
        %v1782 = vsub.s32 2, %v1781
        %v1783 = vrot.slane %v1738, %v1782
        %v1784 = vadd.f32 %v1774, %v1783
        %v1785 = vadd.f32 %v1778, %v1783
        %v1786 = vmax.f32 %v1770, %v1784
        %v1787 = vmax.f32 %v1771, %v1785
        %1788 = vset.pattern.permute.xlu0 3
        %1789 = vperm.xlu0 %1788, %v1733
        %v1790 = vpop.permute.xlu0 %1789
        %1792 = vset.pattern.permute.xlu0 3
        %1793 = vperm.xlu0 %1792, %v1734
        %v1794 = vpop.permute.xlu0 %1793
        %v1796 = vlaneseq
        %v1797 = vshrl.u32 %v1796, 7
        %v1798 = vsub.s32 3, %v1797
        %v1799 = vrot.slane %v1738, %v1798
        %v1800 = vadd.f32 %v1790, %v1799
        %v1801 = vadd.f32 %v1794, %v1799
        %v1802 = vmax.f32 %v1786, %v1800
        %v1803 = vmax.f32 %v1787, %v1801
        %1804 = vset.pattern.permute.xlu0 4
        %1805 = vperm.xlu0 %1804, %v1733
        %v1806 = vpop.permute.xlu0 %1805
        %1808 = vset.pattern.permute.xlu0 4
        %1809 = vperm.xlu0 %1808, %v1734
        %v1810 = vpop.permute.xlu0 %1809
        %v1812 = vlaneseq
        %v1813 = vshrl.u32 %v1812, 7
        %v1814 = vsub.s32 4, %v1813
        %v1815 = vrot.slane %v1738, %v1814
        %v1816 = vadd.f32 %v1806, %v1815
        %v1817 = vadd.f32 %v1810, %v1815
        %v1818 = vmax.f32 %v1802, %v1816
        %v1819 = vmax.f32 %v1803, %v1817
        %1820 = vset.pattern.permute.xlu0 5
        %1821 = vperm.xlu0 %1820, %v1733
        %v1822 = vpop.permute.xlu0 %1821
        %1824 = vset.pattern.permute.xlu0 5
        %1825 = vperm.xlu0 %1824, %v1734
        %v1826 = vpop.permute.xlu0 %1825
        %v1828 = vlaneseq
        %v1829 = vshrl.u32 %v1828, 7
        %v1830 = vsub.s32 5, %v1829
        %v1831 = vrot.slane %v1738, %v1830
        %v1832 = vadd.f32 %v1822, %v1831
        %v1833 = vadd.f32 %v1826, %v1831
        %v1834 = vmax.f32 %v1818, %v1832
        %v1835 = vmax.f32 %v1819, %v1833
        %1836 = vset.pattern.permute.xlu0 6
        %1837 = vperm.xlu0 %1836, %v1733
        %v1838 = vpop.permute.xlu0 %1837
        %1840 = vset.pattern.permute.xlu0 6
        %1841 = vperm.xlu0 %1840, %v1734
        %v1842 = vpop.permute.xlu0 %1841
        %v1844 = vlaneseq
        %v1845 = vshrl.u32 %v1844, 7
        %v1846 = vsub.s32 6, %v1845
        %v1847 = vrot.slane %v1738, %v1846
        %v1848 = vadd.f32 %v1838, %v1847
        %v1849 = vadd.f32 %v1842, %v1847
        %v1850 = vmax.f32 %v1834, %v1848
        %v1851 = vmax.f32 %v1835, %v1849
        %1852 = vset.pattern.permute.xlu0 7
        %1853 = vperm.xlu0 %1852, %v1733
        %v1854 = vpop.permute.xlu0 %1853
        %1856 = vset.pattern.permute.xlu0 7
        %1857 = vperm.xlu0 %1856, %v1734
        %v1858 = vpop.permute.xlu0 %1857
        %v1860 = vlaneseq
        %v1861 = vshrl.u32 %v1860, 7
        %v1862 = vsub.s32 7, %v1861
        %v1863 = vrot.slane %v1738, %v1862
        %v1864 = vadd.f32 %v1854, %v1863
        %v1865 = vadd.f32 %v1858, %v1863
        %v1866 = vmax.f32 %v1850, %v1864
        %v1867 = vmax.f32 %v1851, %v1865
        %1868 = vset.pattern.permute.xlu0 8
        %1869 = vperm.xlu0 %1868, %v1733
        %v1870 = vpop.permute.xlu0 %1869
        %1872 = vset.pattern.permute.xlu0 8
        %1873 = vperm.xlu0 %1872, %v1734
        %v1874 = vpop.permute.xlu0 %1873
        %v1876 = vlaneseq
        %v1877 = vshrl.u32 %v1876, 7
        %v1878 = vsub.s32 0, %v1877
        %v1879 = vrot.slane %v1739, %v1878
        %v1880 = vadd.f32 %v1870, %v1879
        %v1881 = vadd.f32 %v1874, %v1879
        %v1882 = vmax.f32 %v1866, %v1880
        %v1883 = vmax.f32 %v1867, %v1881
        %1884 = vset.pattern.permute.xlu0 9
        %1885 = vperm.xlu0 %1884, %v1733
        %v1886 = vpop.permute.xlu0 %1885
        %1888 = vset.pattern.permute.xlu0 9
        %1889 = vperm.xlu0 %1888, %v1734
        %v1890 = vpop.permute.xlu0 %1889
        %v1892 = vlaneseq
        %v1893 = vshrl.u32 %v1892, 7
        %v1894 = vsub.s32 1, %v1893
        %v1895 = vrot.slane %v1739, %v1894
        %v1896 = vadd.f32 %v1886, %v1895
        %v1897 = vadd.f32 %v1890, %v1895
        %v1898 = vmax.f32 %v1882, %v1896
        %v1899 = vmax.f32 %v1883, %v1897
        %1900 = vset.pattern.permute.xlu0 10
        %1901 = vperm.xlu0 %1900, %v1733
        %v1902 = vpop.permute.xlu0 %1901
        %1904 = vset.pattern.permute.xlu0 10
        %1905 = vperm.xlu0 %1904, %v1734
        %v1906 = vpop.permute.xlu0 %1905
        %v1908 = vlaneseq
        %v1909 = vshrl.u32 %v1908, 7
        %v1910 = vsub.s32 2, %v1909
        %v1911 = vrot.slane %v1739, %v1910
        %v1912 = vadd.f32 %v1902, %v1911
        %v1913 = vadd.f32 %v1906, %v1911
        %v1914 = vmax.f32 %v1898, %v1912
        %v1915 = vmax.f32 %v1899, %v1913
        %1916 = vset.pattern.permute.xlu0 11
        %1917 = vperm.xlu0 %1916, %v1733
        %v1918 = vpop.permute.xlu0 %1917
        %1920 = vset.pattern.permute.xlu0 11
        %1921 = vperm.xlu0 %1920, %v1734
        %v1922 = vpop.permute.xlu0 %1921
        %v1924 = vlaneseq
        %v1925 = vshrl.u32 %v1924, 7
        %v1926 = vsub.s32 3, %v1925
        %v1927 = vrot.slane %v1739, %v1926
        %v1928 = vadd.f32 %v1918, %v1927
        %v1929 = vadd.f32 %v1922, %v1927
        %v1930 = vmax.f32 %v1914, %v1928
        %v1931 = vmax.f32 %v1915, %v1929
        %1932 = vset.pattern.permute.xlu0 12
        %1933 = vperm.xlu0 %1932, %v1733
        %v1934 = vpop.permute.xlu0 %1933
        %1936 = vset.pattern.permute.xlu0 12
        %1937 = vperm.xlu0 %1936, %v1734
        %v1938 = vpop.permute.xlu0 %1937
        %v1940 = vlaneseq
        %v1941 = vshrl.u32 %v1940, 7
        %v1942 = vsub.s32 4, %v1941
        %v1943 = vrot.slane %v1739, %v1942
        %v1944 = vadd.f32 %v1934, %v1943
        %v1945 = vadd.f32 %v1938, %v1943
        %v1946 = vmax.f32 %v1930, %v1944
        %v1947 = vmax.f32 %v1931, %v1945
        %1948 = vset.pattern.permute.xlu0 13
        %1949 = vperm.xlu0 %1948, %v1733
        %v1950 = vpop.permute.xlu0 %1949
        %1952 = vset.pattern.permute.xlu0 13
        %1953 = vperm.xlu0 %1952, %v1734
        %v1954 = vpop.permute.xlu0 %1953
        %v1956 = vlaneseq
        %v1957 = vshrl.u32 %v1956, 7
        %v1958 = vsub.s32 5, %v1957
        %v1959 = vrot.slane %v1739, %v1958
        %v1960 = vadd.f32 %v1950, %v1959
        %v1961 = vadd.f32 %v1954, %v1959
        %v1962 = vmax.f32 %v1946, %v1960
        %v1963 = vmax.f32 %v1947, %v1961
        %1964 = vset.pattern.permute.xlu0 14
        %1965 = vperm.xlu0 %1964, %v1733
        %v1966 = vpop.permute.xlu0 %1965
        %1968 = vset.pattern.permute.xlu0 14
        %1969 = vperm.xlu0 %1968, %v1734
        %v1970 = vpop.permute.xlu0 %1969
        %v1972 = vlaneseq
        %v1973 = vshrl.u32 %v1972, 7
        %v1974 = vsub.s32 6, %v1973
        %v1975 = vrot.slane %v1739, %v1974
        %v1976 = vadd.f32 %v1966, %v1975
        %v1977 = vadd.f32 %v1970, %v1975
        %v1978 = vmax.f32 %v1962, %v1976
        %v1979 = vmax.f32 %v1963, %v1977
        %1980 = vset.pattern.permute.xlu0 15
        %1981 = vperm.xlu0 %1980, %v1733
        %v1982 = vpop.permute.xlu0 %1981
        %1984 = vset.pattern.permute.xlu0 15
        %1985 = vperm.xlu0 %1984, %v1734
        %v1986 = vpop.permute.xlu0 %1985
        %v1988 = vlaneseq
        %v1989 = vshrl.u32 %v1988, 7
        %v1990 = vsub.s32 7, %v1989
        %v1991 = vrot.slane %v1739, %v1990
        %v1992 = vadd.f32 %v1982, %v1991
        %v1993 = vadd.f32 %v1986, %v1991
        %v1994 = vmax.f32 %v1978, %v1992
        %v1995 = vmax.f32 %v1979, %v1993
        %s1996 = sld [smem:[#allocation3 + $0x182]]
        %s1997 = smul.u32 %s1996, 16
        %s1998 = scalar_lea.vmem %s121, %s1997 [#allocation4]
        %v1999 = vld [vmem:[%s1998] sm:$0xff]
        %v2000 = vld [vmem:[%s1998 + $0x8] sm:$0xff]
        %2002 = vset.pattern.permute.xlu0 0
        %2003 = vperm.xlu0 %2002, %v1994
        %v2004 = vpop.permute.xlu0 %2003
        %2007 = vset.pattern.permute.xlu0 0
        %2008 = vperm.xlu0 %2007, %v1995
        %v2009 = vpop.permute.xlu0 %2008
        %v2011 = vlaneseq
        %v2012 = vshrl.u32 %v2011, 7
        %v2013 = vsub.s32 0, %v2012
        %v2014 = vrot.slane %v1999, %v2013
        %v2015 = vadd.f32 %v2004, %v2014
        %v2016 = vadd.f32 %v2009, %v2014
        %2017 = vset.pattern.permute.xlu0 1
        %2018 = vperm.xlu0 %2017, %v1994
        %v2019 = vpop.permute.xlu0 %2018
        %2021 = vset.pattern.permute.xlu0 1
        %2022 = vperm.xlu0 %2021, %v1995
        %v2023 = vpop.permute.xlu0 %2022
        %v2025 = vlaneseq
        %v2026 = vshrl.u32 %v2025, 7
        %v2027 = vsub.s32 1, %v2026
        %v2028 = vrot.slane %v1999, %v2027
        %v2029 = vadd.f32 %v2019, %v2028
        %v2030 = vadd.f32 %v2023, %v2028
        %v2031 = vmax.f32 %v2015, %v2029
        %v2032 = vmax.f32 %v2016, %v2030
        %2033 = vset.pattern.permute.xlu0 2
        %2034 = vperm.xlu0 %2033, %v1994
        %v2035 = vpop.permute.xlu0 %2034
        %2037 = vset.pattern.permute.xlu0 2
        %2038 = vperm.xlu0 %2037, %v1995
        %v2039 = vpop.permute.xlu0 %2038
        %v2041 = vlaneseq
        %v2042 = vshrl.u32 %v2041, 7
        %v2043 = vsub.s32 2, %v2042
        %v2044 = vrot.slane %v1999, %v2043
        %v2045 = vadd.f32 %v2035, %v2044
        %v2046 = vadd.f32 %v2039, %v2044
        %v2047 = vmax.f32 %v2031, %v2045
        %v2048 = vmax.f32 %v2032, %v2046
        %2049 = vset.pattern.permute.xlu0 3
        %2050 = vperm.xlu0 %2049, %v1994
        %v2051 = vpop.permute.xlu0 %2050
        %2053 = vset.pattern.permute.xlu0 3
        %2054 = vperm.xlu0 %2053, %v1995
        %v2055 = vpop.permute.xlu0 %2054
        %v2057 = vlaneseq
        %v2058 = vshrl.u32 %v2057, 7
        %v2059 = vsub.s32 3, %v2058
        %v2060 = vrot.slane %v1999, %v2059
        %v2061 = vadd.f32 %v2051, %v2060
        %v2062 = vadd.f32 %v2055, %v2060
        %v2063 = vmax.f32 %v2047, %v2061
        %v2064 = vmax.f32 %v2048, %v2062
        %2065 = vset.pattern.permute.xlu0 4
        %2066 = vperm.xlu0 %2065, %v1994
        %v2067 = vpop.permute.xlu0 %2066
        %2069 = vset.pattern.permute.xlu0 4
        %2070 = vperm.xlu0 %2069, %v1995
        %v2071 = vpop.permute.xlu0 %2070
        %v2073 = vlaneseq
        %v2074 = vshrl.u32 %v2073, 7
        %v2075 = vsub.s32 4, %v2074
        %v2076 = vrot.slane %v1999, %v2075
        %v2077 = vadd.f32 %v2067, %v2076
        %v2078 = vadd.f32 %v2071, %v2076
        %v2079 = vmax.f32 %v2063, %v2077
        %v2080 = vmax.f32 %v2064, %v2078
        %2081 = vset.pattern.permute.xlu0 5
        %2082 = vperm.xlu0 %2081, %v1994
        %v2083 = vpop.permute.xlu0 %2082
        %2085 = vset.pattern.permute.xlu0 5
        %2086 = vperm.xlu0 %2085, %v1995
        %v2087 = vpop.permute.xlu0 %2086
        %v2089 = vlaneseq
        %v2090 = vshrl.u32 %v2089, 7
        %v2091 = vsub.s32 5, %v2090
        %v2092 = vrot.slane %v1999, %v2091
        %v2093 = vadd.f32 %v2083, %v2092
        %v2094 = vadd.f32 %v2087, %v2092
        %v2095 = vmax.f32 %v2079, %v2093
        %v2096 = vmax.f32 %v2080, %v2094
        %2097 = vset.pattern.permute.xlu0 6
        %2098 = vperm.xlu0 %2097, %v1994
        %v2099 = vpop.permute.xlu0 %2098
        %2101 = vset.pattern.permute.xlu0 6
        %2102 = vperm.xlu0 %2101, %v1995
        %v2103 = vpop.permute.xlu0 %2102
        %v2105 = vlaneseq
        %v2106 = vshrl.u32 %v2105, 7
        %v2107 = vsub.s32 6, %v2106
        %v2108 = vrot.slane %v1999, %v2107
        %v2109 = vadd.f32 %v2099, %v2108
        %v2110 = vadd.f32 %v2103, %v2108
        %v2111 = vmax.f32 %v2095, %v2109
        %v2112 = vmax.f32 %v2096, %v2110
        %2113 = vset.pattern.permute.xlu0 7
        %2114 = vperm.xlu0 %2113, %v1994
        %v2115 = vpop.permute.xlu0 %2114
        %2117 = vset.pattern.permute.xlu0 7
        %2118 = vperm.xlu0 %2117, %v1995
        %v2119 = vpop.permute.xlu0 %2118
        %v2121 = vlaneseq
        %v2122 = vshrl.u32 %v2121, 7
        %v2123 = vsub.s32 7, %v2122
        %v2124 = vrot.slane %v1999, %v2123
        %v2125 = vadd.f32 %v2115, %v2124
        %v2126 = vadd.f32 %v2119, %v2124
        %v2127 = vmax.f32 %v2111, %v2125
        %v2128 = vmax.f32 %v2112, %v2126
        %2129 = vset.pattern.permute.xlu0 8
        %2130 = vperm.xlu0 %2129, %v1994
        %v2131 = vpop.permute.xlu0 %2130
        %2133 = vset.pattern.permute.xlu0 8
        %2134 = vperm.xlu0 %2133, %v1995
        %v2135 = vpop.permute.xlu0 %2134
        %v2137 = vlaneseq
        %v2138 = vshrl.u32 %v2137, 7
        %v2139 = vsub.s32 0, %v2138
        %v2140 = vrot.slane %v2000, %v2139
        %v2141 = vadd.f32 %v2131, %v2140
        %v2142 = vadd.f32 %v2135, %v2140
        %v2143 = vmax.f32 %v2127, %v2141
        %v2144 = vmax.f32 %v2128, %v2142
        %2145 = vset.pattern.permute.xlu0 9
        %2146 = vperm.xlu0 %2145, %v1994
        %v2147 = vpop.permute.xlu0 %2146
        %2149 = vset.pattern.permute.xlu0 9
        %2150 = vperm.xlu0 %2149, %v1995
        %v2151 = vpop.permute.xlu0 %2150
        %v2153 = vlaneseq
        %v2154 = vshrl.u32 %v2153, 7
        %v2155 = vsub.s32 1, %v2154
        %v2156 = vrot.slane %v2000, %v2155
        %v2157 = vadd.f32 %v2147, %v2156
        %v2158 = vadd.f32 %v2151, %v2156
        %v2159 = vmax.f32 %v2143, %v2157
        %v2160 = vmax.f32 %v2144, %v2158
        %2161 = vset.pattern.permute.xlu0 10
        %2162 = vperm.xlu0 %2161, %v1994
        %v2163 = vpop.permute.xlu0 %2162
        %2165 = vset.pattern.permute.xlu0 10
        %2166 = vperm.xlu0 %2165, %v1995
        %v2167 = vpop.permute.xlu0 %2166
        %v2169 = vlaneseq
        %v2170 = vshrl.u32 %v2169, 7
        %v2171 = vsub.s32 2, %v2170
        %v2172 = vrot.slane %v2000, %v2171
        %v2173 = vadd.f32 %v2163, %v2172
        %v2174 = vadd.f32 %v2167, %v2172
        %v2175 = vmax.f32 %v2159, %v2173
        %v2176 = vmax.f32 %v2160, %v2174
        %2177 = vset.pattern.permute.xlu0 11
        %2178 = vperm.xlu0 %2177, %v1994
        %v2179 = vpop.permute.xlu0 %2178
        %2181 = vset.pattern.permute.xlu0 11
        %2182 = vperm.xlu0 %2181, %v1995
        %v2183 = vpop.permute.xlu0 %2182
        %v2185 = vlaneseq
        %v2186 = vshrl.u32 %v2185, 7
        %v2187 = vsub.s32 3, %v2186
        %v2188 = vrot.slane %v2000, %v2187
        %v2189 = vadd.f32 %v2179, %v2188
        %v2190 = vadd.f32 %v2183, %v2188
        %v2191 = vmax.f32 %v2175, %v2189
        %v2192 = vmax.f32 %v2176, %v2190
        %2193 = vset.pattern.permute.xlu0 12
        %2194 = vperm.xlu0 %2193, %v1994
        %v2195 = vpop.permute.xlu0 %2194
        %2197 = vset.pattern.permute.xlu0 12
        %2198 = vperm.xlu0 %2197, %v1995
        %v2199 = vpop.permute.xlu0 %2198
        %v2201 = vlaneseq
        %v2202 = vshrl.u32 %v2201, 7
        %v2203 = vsub.s32 4, %v2202
        %v2204 = vrot.slane %v2000, %v2203
        %v2205 = vadd.f32 %v2195, %v2204
        %v2206 = vadd.f32 %v2199, %v2204
        %v2207 = vmax.f32 %v2191, %v2205
        %v2208 = vmax.f32 %v2192, %v2206
        %2209 = vset.pattern.permute.xlu0 13
        %2210 = vperm.xlu0 %2209, %v1994
        %v2211 = vpop.permute.xlu0 %2210
        %2213 = vset.pattern.permute.xlu0 13
        %2214 = vperm.xlu0 %2213, %v1995
        %v2215 = vpop.permute.xlu0 %2214
        %v2217 = vlaneseq
        %v2218 = vshrl.u32 %v2217, 7
        %v2219 = vsub.s32 5, %v2218
        %v2220 = vrot.slane %v2000, %v2219
        %v2221 = vadd.f32 %v2211, %v2220
        %v2222 = vadd.f32 %v2215, %v2220
        %v2223 = vmax.f32 %v2207, %v2221
        %v2224 = vmax.f32 %v2208, %v2222
        %2225 = vset.pattern.permute.xlu0 14
        %2226 = vperm.xlu0 %2225, %v1994
        %v2227 = vpop.permute.xlu0 %2226
        %2229 = vset.pattern.permute.xlu0 14
        %2230 = vperm.xlu0 %2229, %v1995
        %v2231 = vpop.permute.xlu0 %2230
        %v2233 = vlaneseq
        %v2234 = vshrl.u32 %v2233, 7
        %v2235 = vsub.s32 6, %v2234
        %v2236 = vrot.slane %v2000, %v2235
        %v2237 = vadd.f32 %v2227, %v2236
        %v2238 = vadd.f32 %v2231, %v2236
        %v2239 = vmax.f32 %v2223, %v2237
        %v2240 = vmax.f32 %v2224, %v2238
        %2241 = vset.pattern.permute.xlu0 15
        %2242 = vperm.xlu0 %2241, %v1994
        %v2243 = vpop.permute.xlu0 %2242
        %2245 = vset.pattern.permute.xlu0 15
        %2246 = vperm.xlu0 %2245, %v1995
        %v2247 = vpop.permute.xlu0 %2246
        %v2249 = vlaneseq
        %v2250 = vshrl.u32 %v2249, 7
        %v2251 = vsub.s32 7, %v2250
        %v2252 = vrot.slane %v2000, %v2251
        %v2253 = vadd.f32 %v2243, %v2252
        %v2254 = vadd.f32 %v2247, %v2252
        %v2255 = vmax.f32 %v2239, %v2253
        %v2256 = vmax.f32 %v2240, %v2254
        %s2257 = scalar_lea.vmem %s139, 48 [#allocation7]
        %2258 = vst.msk [vmem:[%s2257] sm:$0xff] %vm667, %v2255
        %2259 = vst.msk [vmem:[%s2257 + $0x8] sm:$0xff] %vm667, %v2256
        %s2260 = sand.u32 %s57, 1
        %s2261 = scalar_lea.sflag [#allocation6], %s2260
        %s2262 = sand.u32 %s57, 1
        %s2263 = smul.addr %s2262, 64
        %s2264 = scalar_lea.vmem [#allocation7], %s2263
        // Predicated region
        $region29: #{tpu_custom_call.1} parent=23 // pred_check
          %p2265 = pneg %p67
        $region30: #{tpu_custom_call.1} parent=23 // pred_check_branch
          %2267 = sbr.rel (%p2265) target = $region32
        $region31: #{tpu_custom_call.1} parent=23 // pred_region
          %s2269 = ssub.s32 1024, 1024
          %2270 = vsyncadd %s2261, %s2269
          %s2271 = smul.addr %s23, 8
          %s2272 = smul.addr %s2271, 128
          %s2273 = scalar_lea.hbm %s2, %s2272
          %s2274 = sshll.u32 %s2264, 4
          %s2275 = int_to_ptr.vmem [resolvable:$true] %s2274
          %2280 = dma.vmem_to_hbm [thread:$0]  %s2275, 1024, %s2273, %s2261, 128, 128, 8
        $region32: #{tpu_custom_call.1} parent=23 // pred_fallthru
          _
      $region24: #{tpu_custom_call.1} parent=5 // pred_fallthru
        _
      %p2281 = scmp.le.s32.totalorder 2, %s18
      // Predicated region
      $region33: #{tpu_custom_call.1} parent=5 // pred_check
        %p2282 = pneg %p2281
      $region34: #{tpu_custom_call.1} parent=5 // pred_check_branch
        %2284 = sbr.rel (%p2282) target = $region36
      $region35: #{tpu_custom_call.1} parent=5 // pred_region
        %s2285 = ssub.s32 %s18, 2
        // Predicated region
        $region37: #{tpu_custom_call.1} parent=35 // pred_check
          %p2286 = pneg %p73
        $region38: #{tpu_custom_call.1} parent=35 // pred_check_branch
          %2288 = sbr.rel (%p2286) target = $region40
        $region39: #{tpu_custom_call.1} parent=35 // pred_region
          %s2289 = sand.u32 %s58, 1
          %s2290 = scalar_lea.sflag [#allocation6], %s2289
          %s2291 = sand.u32 %s58, 1
          %s2292 = smul.addr %s2291, 64
          %s2293 = scalar_lea.vmem [#allocation7], %s2292
          %2294 = dma.done %s2290, 1024
        $region40: #{tpu_custom_call.1} parent=35 // pred_fallthru
          _
      $region36: #{tpu_custom_call.1} parent=5 // pred_fallthru
        _
    $region6: #{tpu_custom_call.1} parent=1 // loop_footer
      %s22 = sadd.s32 1, %s18
    $region7: #{tpu_custom_call.1} parent=1 // loop_footer_branch
      %17 = sbr.rel target = $region3
    $region8: #{tpu_custom_call.1} parent=1 // loop_exit
      _
    %2295 = vsyncpa [#allocation5], 1
    %s2296 = scalar_lea.sflag [#allocation5], 1
    %2297 = vsyncpa %s2296, 1
    %2298 = vsyncpa [#allocation6], 1
    %s2299 = scalar_lea.sflag [#allocation6], 1
    %2300 = vsyncpa %s2299, 1

</llo_original>
